<compile_context>
chip_gen: v5e
topology: v5e:2x2
jax: 0.10.0
libtpu: 0.0.40
codegen_flags: <defaults>
</compile_context>

<pallas_src>
import functools

import jax
import jax.numpy as jnp
from jax.experimental import pallas as pl
from jax.experimental.pallas import tpu as pltpu

_NEG_BIG = -1e9  # additive mask value (bf16-safe, unlike -9e15)


def _round_up(x, m):
    return (x + m - 1) // m * m


def _row_tile(n):
    # Small graphs: one full-extent tile.  Large graphs: 256-row tiles
    # (bigger than 128 per the perf review; multiple of 128 lanes / 8 sublanes).
    if n <= 512:
        return _round_up(n, 8)
    return 256


# ----------------------------------------------------------------------------
# Fused AE encoder / decoder kernels
# ----------------------------------------------------------------------------
def _ae_encoder_kernel(x_ref, w1_ref, b1_ref, w2_ref, b2_ref, w3_ref, b3_ref,
                       wz_ref, bz_ref, h1_ref, h2_ref, h3_ref, z_ref):
    def lin(x, w_ref, b_ref, relu):
        y = jnp.dot(x.astype(jnp.bfloat16), w_ref[...].astype(jnp.bfloat16),
                    preferred_element_type=jnp.float32) + b_ref[...]
        return jnp.maximum(y, 0.0) if relu else y

    h1 = lin(x_ref[...], w1_ref, b1_ref, True)
    h2 = lin(h1, w2_ref, b2_ref, True)
    h3 = lin(h2, w3_ref, b3_ref, True)
    z = lin(h3, wz_ref, bz_ref, False)
    # enc_h* only feed the GAT sigma-mix -> store bf16; z stays f32.
    h1_ref[...] = h1.astype(h1_ref.dtype)
    h2_ref[...] = h2.astype(h2_ref.dtype)
    h3_ref[...] = h3.astype(h3_ref.dtype)
    z_ref[...] = z


def ae_encoder(x, params, tile):
    n, n_in = x.shape
    layers = [params["enc1"], params["enc2"], params["enc3"], params["zlay"]]
    args = [x]
    in_specs = [pl.BlockSpec((tile, n_in), lambda i: (i, 0))]
    out_shapes, out_specs = [], []
    flops = 0
    total_bytes = 4 * n * n_in
    for li, (w, b) in enumerate(layers):
        fin, fout = w.shape
        args += [w, b.reshape(1, fout)]
        in_specs += [pl.BlockSpec((fin, fout), lambda i: (0, 0)),
                     pl.BlockSpec((1, fout), lambda i: (0, 0))]
        odt = jnp.float32 if li == 3 else jnp.bfloat16
        out_shapes.append(jax.ShapeDtypeStruct((n, fout), odt))
        out_specs.append(pl.BlockSpec((tile, fout), lambda i: (i, 0)))
        flops += 2 * n * fin * fout
        total_bytes += 4 * (fin * fout + fout) + 2 * n * fout
    return pl.pallas_call(
        _ae_encoder_kernel,
        out_shape=tuple(out_shapes),
        grid=(n // tile,),
        in_specs=in_specs,
        out_specs=tuple(out_specs),
        compiler_params=pltpu.CompilerParams(dimension_semantics=("parallel",)),
        cost_estimate=pl.CostEstimate(flops=int(flops), transcendentals=0,
                                      bytes_accessed=int(total_bytes)),
    )(*args)


def _ae_decoder_kernel(z_ref, w1_ref, b1_ref, w2_ref, b2_ref, w3_ref, b3_ref,
                       wx_ref, bx_ref, xbar_ref):
    def lin(x, w_ref, b_ref, relu):
        y = jnp.dot(x.astype(jnp.bfloat16), w_ref[...].astype(jnp.bfloat16),
                    preferred_element_type=jnp.float32) + b_ref[...]
        return jnp.maximum(y, 0.0) if relu else y

    h = lin(z_ref[...], w1_ref, b1_ref, True)
    h = lin(h, w2_ref, b2_ref, True)
    h = lin(h, w3_ref, b3_ref, True)
    xbar_ref[...] = lin(h, wx_ref, bx_ref, False)


def ae_decoder(z, params, tile):
    n, n_z = z.shape
    layers = [params["dec1"], params["dec2"], params["dec3"], params["xbar"]]
    args = [z]
    in_specs = [pl.BlockSpec((tile, n_z), lambda i: (i, 0))]
    flops = 0
    total_bytes = 4 * n * n_z
    for w, b in layers:
        fin, fout = w.shape
        args += [w, b.reshape(1, fout)]
        in_specs += [pl.BlockSpec((fin, fout), lambda i: (0, 0)),
                     pl.BlockSpec((1, fout), lambda i: (0, 0))]
        flops += 2 * n * fin * fout
        total_bytes += 4 * (fin * fout + fout)
    n_out = layers[-1][0].shape[1]
    total_bytes += 4 * n * n_out
    return pl.pallas_call(
        _ae_decoder_kernel,
        out_shape=jax.ShapeDtypeStruct((n, n_out), jnp.float32),
        grid=(n // tile,),
        in_specs=in_specs,
        out_specs=pl.BlockSpec((tile, n_out), lambda i: (i, 0)),
        compiler_params=pltpu.CompilerParams(dimension_semantics=("parallel",)),
        cost_estimate=pl.CostEstimate(flops=int(flops), transcendentals=0,
                                      bytes_accessed=int(total_bytes)),
    )(*args)


# ----------------------------------------------------------------------------
# GAT layer: projection kernel (sigma-mix + attention coefficients fused)
#            + flash-style attention kernel with block-sparsity skip
# ----------------------------------------------------------------------------
def _gat_proj_kernel(h_ref, w_ref, asrc_ref, adst_ref, wh_ref, fsrc_ref, fdst_ref):
    wh = jnp.dot(h_ref[...].astype(jnp.bfloat16), w_ref[...].astype(jnp.bfloat16),
                 preferred_element_type=jnp.float32)
    wh_ref[...] = wh.astype(wh_ref.dtype)
    # attention coefficients computed ONCE per row (hoisted out of attention loop)
    fsrc_ref[...] = jnp.sum(wh * asrc_ref[...], axis=1, keepdims=True)
    fdst_ref[...] = jnp.sum(wh * adst_ref[...], axis=1, keepdims=True)


def _gat_proj_mix_kernel(h_ref, tra_ref, w_ref, asrc_ref, adst_ref,
                         wh_ref, fsrc_ref, fdst_ref, *, sigma):
    hm = ((1.0 - sigma) * h_ref[...].astype(jnp.float32)
          + sigma * tra_ref[...].astype(jnp.float32))
    wh = jnp.dot(hm.astype(jnp.bfloat16), w_ref[...].astype(jnp.bfloat16),
                 preferred_element_type=jnp.float32)
    wh_ref[...] = wh.astype(wh_ref.dtype)
    fsrc_ref[...] = jnp.sum(wh * asrc_ref[...], axis=1, keepdims=True)
    fdst_ref[...] = jnp.sum(wh * adst_ref[...], axis=1, keepdims=True)


def gat_project(h, w, a, tile, tra=None, sigma=0.5):
    n, fin = h.shape
    fout = w.shape[1]
    a_src = a[:fout, 0].reshape(1, fout)
    a_dst = a[fout:, 0].reshape(1, fout)
    h_spec = pl.BlockSpec((tile, fin), lambda i: (i, 0))
    w_spec = pl.BlockSpec((fin, fout), lambda i: (0, 0))
    vec_spec = pl.BlockSpec((1, fout), lambda i: (0, 0))
    out_shapes = (jax.ShapeDtypeStruct((n, fout), jnp.bfloat16),  # Wh (bf16, re-streamed)
                  jax.ShapeDtypeStruct((n, 1), jnp.float32),      # f_src
                  jax.ShapeDtypeStruct((n, 1), jnp.float32))      # f_dst
    out_specs = (pl.BlockSpec((tile, fout), lambda i: (i, 0)),
                 pl.BlockSpec((tile, 1), lambda i: (i, 0)),
                 pl.BlockSpec((tile, 1), lambda i: (i, 0)))
    n_h = 1 if tra is None else 2
    cost = pl.CostEstimate(
        flops=int(2 * n * fin * fout + 4 * n * fout
                  + (0 if tra is None else 3 * n * fin)),
        transcendentals=0,
        bytes_accessed=int(4 * (n_h * n * fin + fin * fout) + 2 * n * fout + 8 * n))
    cp = pltpu.CompilerParams(dimension_semantics=("parallel",))
    if tra is None:
        return pl.pallas_call(
            _gat_proj_kernel,
            out_shape=out_shapes,
            grid=(n // tile,),
            in_specs=[h_spec, w_spec, vec_spec, vec_spec],
            out_specs=out_specs,
            compiler_params=cp,
            cost_estimate=cost,
        )(h, w, a_src, a_dst)
    return pl.pallas_call(
        functools.partial(_gat_proj_mix_kernel, sigma=float(sigma)),
        out_shape=out_shapes,
        grid=(n // tile,),
        in_specs=[h_spec, h_spec, w_spec, vec_spec, vec_spec],
        out_specs=out_specs,
        compiler_params=cp,
        cost_estimate=cost,
    )(h, tra, w, a_src, a_dst)


def _gat_attn_kernel(nnz_ref, whk_ref, fsrc_ref, fdst_ref, bias_ref, o_ref,
                     m_sc, l_sc, acc_sc, *, alpha, concat, final_softmax):
    qi = pl.program_id(0)
    ki = pl.program_id(1)

    @pl.when(ki == 0)
    def _():
        m_sc[...] = jnp.full_like(m_sc, -jnp.inf)
        l_sc[...] = jnp.zeros_like(l_sc)
        acc_sc[...] = jnp.zeros_like(acc_sc)

    # Skip (qi, ki) tile pairs with no edges: every entry in them is masked to
    # -1e9 and contributes exactly zero after the softmax, so m/l/acc are
    # unchanged.  block_nnz is scalar-prefetched into SMEM.
    @pl.when(nnz_ref[qi, ki] > 0)
    def _():
        e = fsrc_ref[...] + fdst_ref[...]                        # [tq,1]+[1,tk] -> [tq,tk]
        e = jnp.where(e > 0.0, e, alpha * e)                     # LeakyReLU
        e = e + bias_ref[...].astype(jnp.float32)                # adjacency mask
        m_prev = m_sc[...]
        m_new = jnp.maximum(m_prev, jnp.max(e, axis=1, keepdims=True))
        corr = jnp.exp(m_prev - m_new)
        p = jnp.exp(e - m_new)
        l_sc[...] = corr * l_sc[...] + jnp.sum(p, axis=1, keepdims=True)
        acc_sc[...] = corr * acc_sc[...] + jnp.dot(
            p.astype(jnp.bfloat16), whk_ref[...],
            preferred_element_type=jnp.float32)
        m_sc[...] = m_new

    @pl.when(ki == pl.num_programs(1) - 1)
    def _():
        l = l_sc[...]
        # rows that saw no edge at all (only padded rows, given self-loops) -> 0
        l = jnp.where(l > 0.0, l, 1.0)
        out = acc_sc[...] / l    # exact division: runs once per query tile
        if concat:
            # ELU: exp only on the clamped-negative branch (no overflow on positives)
            out = jnp.where(out > 0.0, out, jnp.exp(jnp.minimum(out, 0.0)) - 1.0)
        elif final_softmax:
            s = out - jnp.max(out, axis=1, keepdims=True)
            ps = jnp.exp(s)
            out = ps / jnp.sum(ps, axis=1, keepdims=True)
        o_ref[...] = out.astype(o_ref.dtype)


def gat_attention(wh, f_src, f_dst_row, adj_bias, block_nnz, tile, *, alpha,
                  concat, final_softmax=False, out_dtype=jnp.bfloat16):
    n, fout = wh.shape
    nt = n // tile
    cost = pl.CostEstimate(
        flops=int(2 * n * n * fout + 10 * n * n),
        transcendentals=int(2 * n * n),
        bytes_accessed=int(2 * n * n + 2 * n * fout * nt + 8 * n + 4 * n * fout))
    grid_spec = pltpu.PrefetchScalarGridSpec(
        num_scalar_prefetch=1,                 # block_nnz -> SMEM
        grid=(nt, nt),
        in_specs=[
            pl.BlockSpec((tile, fout), lambda qi, ki, nnz: (ki, 0)),   # Wh keys (bf16)
            pl.BlockSpec((tile, 1), lambda qi, ki, nnz: (qi, 0)),      # f_src  [tq,1]
            pl.BlockSpec((1, tile), lambda qi, ki, nnz: (0, ki)),      # f_dst  [1,tk]
            pl.BlockSpec((tile, tile), lambda qi, ki, nnz: (qi, ki)),  # adj bias (bf16)
        ],
        out_specs=pl.BlockSpec((tile, fout), lambda qi, ki, nnz: (qi, 0)),
        scratch_shapes=[
            pltpu.VMEM((tile, 1), jnp.float32),     # m (running max)
            pltpu.VMEM((tile, 1), jnp.float32),     # l (running denom)
            pltpu.VMEM((tile, fout), jnp.float32),  # acc
        ],
    )
    return pl.pallas_call(
        functools.partial(_gat_attn_kernel, alpha=float(alpha), concat=concat,
                          final_softmax=final_softmax),
        out_shape=jax.ShapeDtypeStruct((n, fout), out_dtype),
        grid_spec=grid_spec,
        compiler_params=pltpu.CompilerParams(
            dimension_semantics=("parallel", "arbitrary")),
        cost_estimate=cost,
    )(block_nnz, wh, f_src, f_dst_row, adj_bias)


# ----------------------------------------------------------------------------
# Soft cluster assignment q (Student-t kernel)
# ----------------------------------------------------------------------------
def _q_kernel(z_ref, mut_ref, mu2_ref, o_ref, *, v):
    z = z_ref[...]                                                  # [tile, Dz]
    z2 = jnp.sum(z * z, axis=1, keepdims=True)                      # [tile, 1]
    cross = jnp.dot(z, mut_ref[...], preferred_element_type=jnp.float32)  # [tile, K]
    dist2 = jnp.maximum(z2 + mu2_ref[...] - 2.0 * cross, 0.0)
    q = 1.0 / (1.0 + dist2 / v)
    p_exp = (v + 1.0) / 2.0
    if p_exp != 1.0:
        q = q ** p_exp
    o_ref[...] = q / jnp.sum(q, axis=1, keepdims=True)              # row normalize


def soft_assign(z, cluster_centers, tile, v=1.0):
    n, dz = z.shape
    k = cluster_centers.shape[0]
    mu_t = cluster_centers.T                                        # [Dz, K]: no in-kernel transpose
    mu2 = jnp.sum(cluster_centers * cluster_centers, axis=1).reshape(1, k)
    return pl.pallas_call(
        functools.partial(_q_kernel, v=float(v)),
        out_shape=jax.ShapeDtypeStruct((n, k), jnp.float32),
        grid=(n // tile,),
        in_specs=[
            pl.BlockSpec((tile, dz), lambda i: (i, 0)),
            pl.BlockSpec((dz, k), lambda i: (0, 0)),
            pl.BlockSpec((1, k), lambda i: (0, 0)),
        ],
        out_specs=pl.BlockSpec((tile, k), lambda i: (i, 0)),
        compiler_params=pltpu.CompilerParams(dimension_semantics=("parallel",)),
        cost_estimate=pl.CostEstimate(flops=int(2 * n * dz * k + 8 * n * k),
                                      transcendentals=0,
                                      bytes_accessed=int(4 * (n * dz + 2 * k * dz + n * k))),
    )(z, mu_t, mu2)


# ----------------------------------------------------------------------------
# Parameter init (deterministic, mirrors the shapes declared in __init__)
# ----------------------------------------------------------------------------
def _init_linear(key, fin, fout):
    kw, kb = jax.random.split(key)
    bound = 1.0 / jnp.sqrt(fin)
    w = jax.random.uniform(kw, (fin, fout), jnp.float32, -bound, bound)
    b = jax.random.uniform(kb, (fout,), jnp.float32, -bound, bound)
    return w, b


def _init_gat(key, fin, fout):
    kw, ka = jax.random.split(key)
    gain = 1.414  # xavier_uniform with gain=1.414 (standard pyGAT init)
    lim_w = gain * jnp.sqrt(6.0 / (fin + fout))
    lim_a = gain * jnp.sqrt(6.0 / (2 * fout + 1))
    w = jax.random.uniform(kw, (fin, fout), jnp.float32, -lim_w, lim_w)
    a = jax.random.uniform(ka, (2 * fout, 1), jnp.float32, -lim_a, lim_a)
    return w, a


def init_params(key, dims):
    (n_enc_1, n_enc_2, n_enc_3, n_dec_1, n_dec_2, n_dec_3,
     n_input, n_z, n_clusters) = dims
    keys = jax.random.split(key, 16)
    p = {}
    p["enc1"] = _init_linear(keys[0], n_input, n_enc_1)
    p["enc2"] = _init_linear(keys[1], n_enc_1, n_enc_2)
    p["enc3"] = _init_linear(keys[2], n_enc_2, n_enc_3)
    p["zlay"] = _init_linear(keys[3], n_enc_3, n_z)
    p["dec1"] = _init_linear(keys[4], n_z, n_dec_1)
    p["dec2"] = _init_linear(keys[5], n_dec_1, n_dec_2)
    p["dec3"] = _init_linear(keys[6], n_dec_2, n_dec_3)
    p["xbar"] = _init_linear(keys[7], n_dec_3, n_input)
    p["gnn1"] = _init_gat(keys[8], n_input, n_enc_1)
    p["gnn2"] = _init_gat(keys[9], n_enc_1, n_enc_2)
    p["gnn3"] = _init_gat(keys[10], n_enc_2, n_enc_3)
    p["gnn4"] = _init_gat(keys[11], n_enc_3, n_z)
    p["gnn5"] = _init_gat(keys[12], n_z, n_clusters)
    std = jnp.sqrt(2.0 / (n_clusters + n_z))  # xavier_normal_
    p["cluster"] = std * jax.random.normal(keys[13], (n_clusters, n_z), jnp.float32)
    return p


# ----------------------------------------------------------------------------
# Model forward (preprocessing/glue in plain JAX, compute in Pallas kernels)
# ----------------------------------------------------------------------------
def model_gat_forward(params, x, adj, *, v=1.0, alpha=0.2, sigma=0.5):
    n = x.shape[0]
    tile = _row_tile(n)
    n_pad = _round_up(n, tile)
    if n_pad != n:
        x = jnp.pad(x, ((0, n_pad - n), (0, 0)))
        adj = jnp.pad(adj, ((0, n_pad - n), (0, n_pad - n)))

    # adjacency as additive bias (bf16), computed ONCE and reused by all 5 layers
    adj_bias = jnp.where(adj > 0, 0.0, _NEG_BIG).astype(jnp.bfloat16)
    # per-(query tile, key tile) edge counts -> SMEM block-skip table for attention
    nt = n_pad // tile
    block_nnz = (adj > 0).astype(jnp.int32).reshape(nt, tile, nt, tile).sum(axis=(1, 3))

    # --- AE (two fused pallas_calls) ---
    enc_h1, enc_h2, enc_h3, z = ae_encoder(x, params, tile)
    x_bar = ae_decoder(z, params, tile)

    # --- GAT stack with AE feature fusion folded into the projection kernel ---
    def gat(h, name, tra, concat, final_softmax=False):
        w, a = params[name]
        wh, f_src, f_dst = gat_project(h, w, a, tile, tra=tra, sigma=sigma)
        f_dst_row = f_dst.reshape(1, n_pad)  # lane-major row vector for the key axis
        out_dtype = jnp.float32 if final_softmax else jnp.bfloat16
        return gat_attention(wh, f_src, f_dst_row, adj_bias, block_nnz, tile,
                             alpha=alpha, concat=concat,
                             final_softmax=final_softmax, out_dtype=out_dtype)

    h = gat(x, "gnn1", None, True)
    h = gat(h, "gnn2", enc_h1, True)
    h = gat(h, "gnn3", enc_h2, True)
    h = gat(h, "gnn4", enc_h3, True)
    predict = gat(h, "gnn5", z, False, final_softmax=True)  # softmax fused in epilogue

    # --- soft cluster assignment q ---
    q = soft_assign(z, params["cluster"], tile, v=v)

    if n_pad != n:
        x_bar, q, predict, z = x_bar[:n], q[:n], predict[:n], z[:n]
    return x_bar, q, predict, z


# ----------------------------------------------------------------------------
# Demo
# ----------------------------------------------------------------------------
if __name__ == "__main__":
    N = 16            # number of graph nodes
    n_input = 32
    n_enc_1, n_enc_2, n_enc_3 = 64, 64, 32
    n_dec_1, n_dec_2, n_dec_3 = 32, 64, 64
    n_z = 16
    n_clusters = 8

    key = jax.random.PRNGKey(0)
    k_param, k_x, k_adj = jax.random.split(key, 3)

    params = init_params(
        k_param,
        (n_enc_1, n_enc_2, n_enc_3, n_dec_1, n_dec_2, n_dec_3,
         n_input, n_z, n_clusters),
    )

    x = jax.random.normal(k_x, (N, n_input), jnp.float32)
    # random symmetric binary adjacency with self-loops
    a_raw = jax.random.uniform(k_adj, (N, N), jnp.float32)
    adj = ((a_raw + a_raw.T) * 0.5 > 0.6).astype(jnp.float32)
    adj = jnp.maximum(adj, jnp.eye(N, dtype=jnp.float32))

    fwd = jax.jit(functools.partial(model_gat_forward, v=1.0, alpha=0.2, sigma=0.5))
    x_bar, q, predict, z = fwd(params, x, adj)
    jax.block_until_ready((x_bar, q, predict, z))

    assert x_bar.shape == (N, n_input)
    assert q.shape == (N, n_clusters)
    assert predict.shape == (N, n_clusters)
    assert z.shape == (N, n_z)
    assert bool(jnp.all(jnp.isfinite(x_bar)))
    assert bool(jnp.all(jnp.isfinite(predict)))
    # q and predict rows must sum to 1
    assert bool(jnp.allclose(jnp.sum(q, axis=1), 1.0, atol=1e-4))
    assert bool(jnp.allclose(jnp.sum(predict, axis=1), 1.0, atol=1e-4))

    print("KERNEL_OK")
</pallas_src>

<mosaic_0001>
module attributes {stable_mosaic.version = 11 : i64} {
  func.func @_gat_proj_kernel(%arg0: i32, %arg1: memref<16x32xf32, #tpu.memory_space<vmem>>, %arg2: memref<32x64xf32, #tpu.memory_space<vmem>>, %arg3: memref<1x64xf32, #tpu.memory_space<vmem>>, %arg4: memref<1x64xf32, #tpu.memory_space<vmem>>, %arg5: memref<16x64xbf16, #tpu.memory_space<vmem>>, %arg6: memref<16x1xf32, #tpu.memory_space<vmem>>, %arg7: memref<16x1xf32, #tpu.memory_space<vmem>>) attributes {dimension_semantics = [#tpu.dimension_semantics<parallel>], iteration_bounds = array<i64: 1>, scalar_prefetch = 0 : i64, scratch_operands = 0 : i64, tpu.core_type = #tpu.core_type<tc>, window_params = [{transform_indices = @transform_0, window_bounds = array<i64: 16, 32>}, {pipeline_mode = #tpu.pipeline_mode<synchronous>, transform_indices = @transform_1, window_bounds = array<i64: 32, 64>}, {pipeline_mode = #tpu.pipeline_mode<synchronous>, transform_indices = @transform_2, window_bounds = array<i64: 1, 64>}, {pipeline_mode = #tpu.pipeline_mode<synchronous>, transform_indices = @transform_3, window_bounds = array<i64: 1, 64>}, {transform_indices = @transform_4, window_bounds = array<i64: 16, 64>}, {transform_indices = @transform_5, window_bounds = array<i64: 16, 1>}, {transform_indices = @transform_6, window_bounds = array<i64: 16, 1>}]} {
    %c0 = arith.constant 0 : index
    %c0_0 = arith.constant 0 : index
    %0 = vector.load %arg1[%c0, %c0_0] : memref<16x32xf32, #tpu.memory_space<vmem>>, vector<16x32xf32>
    %1 = arith.truncf %0 : vector<16x32xf32> to vector<16x32xbf16>
    %c0_1 = arith.constant 0 : index
    %c0_2 = arith.constant 0 : index
    %2 = vector.load %arg2[%c0_1, %c0_2] : memref<32x64xf32, #tpu.memory_space<vmem>>, vector<32x64xf32>
    %3 = arith.truncf %2 : vector<32x64xf32> to vector<32x64xbf16>
    %cst = arith.constant dense<0.000000e+00> : vector<16x64xf32>
    %4 = tpu.matmul %1, %3, %cst {dimension_numbers = #tpu.dot_dimension_numbers<[1], [0], [0], [1], [0, 0, 1, 1], [], []>} : vector<16x32xbf16>, vector<32x64xbf16>, vector<16x64xf32> -> vector<16x64xf32>
    %5 = arith.truncf %4 : vector<16x64xf32> to vector<16x64xbf16>
    %c0_3 = arith.constant 0 : index
    %c0_4 = arith.constant 0 : index
    %6 = vector.load %arg5[%c0_3, %c0_4] : memref<16x64xbf16, #tpu.memory_space<vmem>>, vector<16x64xbf16>
    tpu.vector_store %arg5[%c0_3, %c0_4], %5 {strides = array<i32>} : memref<16x64xbf16, #tpu.memory_space<vmem>>, vector<16x64xbf16>,
    %c0_5 = arith.constant 0 : index
    %c0_6 = arith.constant 0 : index
    %7 = vector.load %arg3[%c0_5, %c0_6] : memref<1x64xf32, #tpu.memory_space<vmem>>, vector<1x64xf32>
    %8 = vector.broadcast %7 : vector<1x64xf32> to vector<16x64xf32>
    %9 = arith.mulf %4, %8 : vector<16x64xf32>
    %cst_7 = arith.constant dense<0.000000e+00> : vector<16xf32>
    %10 = vector.multi_reduction <add>, %9, %cst_7 [1] : vector<16x64xf32> to vector<16xf32>
    %11 = vector.shape_cast %10 : vector<16xf32> to vector<16x1xf32>
    %c0_8 = arith.constant 0 : index
    %c0_9 = arith.constant 0 : index
    %12 = vector.load %arg6[%c0_8, %c0_9] : memref<16x1xf32, #tpu.memory_space<vmem>>, vector<16x1xf32>
    tpu.vector_store %arg6[%c0_8, %c0_9], %11 {strides = array<i32>} : memref<16x1xf32, #tpu.memory_space<vmem>>, vector<16x1xf32>,
    %c0_10 = arith.constant 0 : index
    %c0_11 = arith.constant 0 : index
    %13 = vector.load %arg4[%c0_10, %c0_11] : memref<1x64xf32, #tpu.memory_space<vmem>>, vector<1x64xf32>
    %14 = vector.broadcast %13 : vector<1x64xf32> to vector<16x64xf32>
    %15 = arith.mulf %4, %14 : vector<16x64xf32>
    %cst_12 = arith.constant dense<0.000000e+00> : vector<16xf32>
    %16 = vector.multi_reduction <add>, %15, %cst_12 [1] : vector<16x64xf32> to vector<16xf32>
    %17 = vector.shape_cast %16 : vector<16xf32> to vector<16x1xf32>
    %c0_13 = arith.constant 0 : index
    %c0_14 = arith.constant 0 : index
    %18 = vector.load %arg7[%c0_13, %c0_14] : memref<16x1xf32, #tpu.memory_space<vmem>>, vector<16x1xf32>
    tpu.vector_store %arg7[%c0_13, %c0_14], %17 {strides = array<i32>} : memref<16x1xf32, #tpu.memory_space<vmem>>, vector<16x1xf32>,
    return
  }
  func.func @transform_0(%arg0: i32) -> (i32, i32) {
    %c0_i32 = arith.constant 0 : i32
    %c0_i32_0 = arith.constant 0 : i32
    return %arg0, %c0_i32 : i32, i32
  }
  func.func @transform_1(%arg0: i32) -> (i32, i32) {
    %c0_i32 = arith.constant 0 : i32
    %c0_i32_0 = arith.constant 0 : i32
    %c0_i32_1 = arith.constant 0 : i32
    return %c0_i32, %c0_i32_0 : i32, i32
  }
  func.func @transform_2(%arg0: i32) -> (i32, i32) {
    %c0_i32 = arith.constant 0 : i32
    %c0_i32_0 = arith.constant 0 : i32
    %c0_i32_1 = arith.constant 0 : i32
    return %c0_i32, %c0_i32_0 : i32, i32
  }
  func.func @transform_3(%arg0: i32) -> (i32, i32) {
    %c0_i32 = arith.constant 0 : i32
    %c0_i32_0 = arith.constant 0 : i32
    %c0_i32_1 = arith.constant 0 : i32
    return %c0_i32, %c0_i32_0 : i32, i32
  }
  func.func @transform_4(%arg0: i32) -> (i32, i32) {
    %c0_i32 = arith.constant 0 : i32
    %c0_i32_0 = arith.constant 0 : i32
    return %arg0, %c0_i32 : i32, i32
  }
  func.func @transform_5(%arg0: i32) -> (i32, i32) {
    %c0_i32 = arith.constant 0 : i32
    %c0_i32_0 = arith.constant 0 : i32
    return %arg0, %c0_i32 : i32, i32
  }
  func.func @transform_6(%arg0: i32) -> (i32, i32) {
    %c0_i32 = arith.constant 0 : i32
    %c0_i32_0 = arith.constant 0 : i32
    return %arg0, %c0_i32 : i32, i32
  }
}

module attributes {stable_mosaic.version = 11 : i64} {
  func.func @_gat_attn_kernel(%arg0: i32, %arg1: i32, %arg2: memref<1x1xi32, #tpu.memory_space<smem>>, %arg3: memref<16x64xbf16, #tpu.memory_space<vmem>>, %arg4: memref<16x1xf32, #tpu.memory_space<vmem>>, %arg5: memref<1x16xf32, #tpu.memory_space<vmem>>, %arg6: memref<16x16xbf16, #tpu.memory_space<vmem>>, %arg7: memref<16x64xbf16, #tpu.memory_space<vmem>>, %arg8: memref<16x1xf32, #tpu.memory_space<vmem>>, %arg9: memref<16x1xf32, #tpu.memory_space<vmem>>, %arg10: memref<16x64xf32, #tpu.memory_space<vmem>>) attributes {dimension_semantics = [#tpu.dimension_semantics<parallel>, #tpu.dimension_semantics<arbitrary>], iteration_bounds = array<i64: 1, 1>, scalar_prefetch = 1 : i64, scratch_operands = 3 : i64, tpu.core_type = #tpu.core_type<tc>, window_params = [{transform_indices = @transform_0, window_bounds = array<i64: 16, 64>}, {transform_indices = @transform_1, window_bounds = array<i64: 16, 1>}, {transform_indices = @transform_2, window_bounds = array<i64: 1, 16>}, {transform_indices = @transform_3, window_bounds = array<i64: 16, 16>}, {transform_indices = @transform_4, window_bounds = array<i64: 16, 64>}]} {
    %c0_i32 = arith.constant 0 : i32
    %0 = arith.cmpi eq, %arg1, %c0_i32 : i32
    %1 = arith.extui %0 : i1 to i32
    %c0_i32_0 = arith.constant 0 : i32
    %2 = arith.cmpi ne, %1, %c0_i32_0 : i32
    scf.if %2 {
      %cst = arith.constant 0xFF800000 : f32
      %12 = vector.broadcast %cst : f32 to vector<16x1xf32>
      %c0 = arith.constant 0 : index
      %c0_5 = arith.constant 0 : index
      %13 = vector.load %arg8[%c0, %c0_5] : memref<16x1xf32, #tpu.memory_space<vmem>>, vector<16x1xf32>
      tpu.vector_store %arg8[%c0, %c0_5], %12 {strides = array<i32>} : memref<16x1xf32, #tpu.memory_space<vmem>>, vector<16x1xf32>,
      %cst_6 = arith.constant 0.000000e+00 : f32
      %14 = vector.broadcast %cst_6 : f32 to vector<16x1xf32>
      %c0_7 = arith.constant 0 : index
      %c0_8 = arith.constant 0 : index
      %15 = vector.load %arg9[%c0_7, %c0_8] : memref<16x1xf32, #tpu.memory_space<vmem>>, vector<16x1xf32>
      tpu.vector_store %arg9[%c0_7, %c0_8], %14 {strides = array<i32>} : memref<16x1xf32, #tpu.memory_space<vmem>>, vector<16x1xf32>,
      %cst_9 = arith.constant 0.000000e+00 : f32
      %16 = vector.broadcast %cst_9 : f32 to vector<16x64xf32>
      %c0_10 = arith.constant 0 : index
      %c0_11 = arith.constant 0 : index
      %17 = vector.load %arg10[%c0_10, %c0_11] : memref<16x64xf32, #tpu.memory_space<vmem>>, vector<16x64xf32>
      tpu.vector_store %arg10[%c0_10, %c0_11], %16 {strides = array<i32>} : memref<16x64xf32, #tpu.memory_space<vmem>>, vector<16x64xf32>,
    } else {
    }
    %3 = arith.index_cast %arg0 : i32 to index
    %4 = arith.index_cast %arg1 : i32 to index
    %5 = memref.load %arg2[%3, %4] : memref<1x1xi32, #tpu.memory_space<smem>>
    %c0_i32_1 = arith.constant 0 : i32
    %6 = arith.cmpi sgt, %5, %c0_i32_1 : i32
    %7 = arith.extui %6 : i1 to i32
    %c0_i32_2 = arith.constant 0 : i32
    %8 = arith.cmpi ne, %7, %c0_i32_2 : i32
    scf.if %8 {
      %c0 = arith.constant 0 : index
      %c0_5 = arith.constant 0 : index
      %12 = vector.load %arg4[%c0, %c0_5] : memref<16x1xf32, #tpu.memory_space<vmem>>, vector<16x1xf32>
      %c0_6 = arith.constant 0 : index
      %c0_7 = arith.constant 0 : index
      %13 = vector.load %arg5[%c0_6, %c0_7] : memref<1x16xf32, #tpu.memory_space<vmem>>, vector<1x16xf32>
      %14 = vector.broadcast %12 : vector<16x1xf32> to vector<16x16xf32>
      %15 = vector.broadcast %13 : vector<1x16xf32> to vector<16x16xf32>
      %16 = arith.addf %14, %15 : vector<16x16xf32>
      %cst = arith.constant 0.000000e+00 : f32
      %17 = vector.broadcast %cst : f32 to vector<16x16xf32>
      %18 = arith.cmpf ogt, %16, %17 : vector<16x16xf32>
      %cst_8 = arith.constant 2.000000e-01 : f32
      %19 = vector.broadcast %cst_8 : f32 to vector<16x16xf32>
      %20 = arith.mulf %19, %16 : vector<16x16xf32>
      %21 = arith.select %18, %16, %20 : vector<16x16xi1>, vector<16x16xf32>
      %c0_9 = arith.constant 0 : index
      %c0_10 = arith.constant 0 : index
      %22 = vector.load %arg6[%c0_9, %c0_10] : memref<16x16xbf16, #tpu.memory_space<vmem>>, vector<16x16xbf16>
      %23 = arith.extf %22 : vector<16x16xbf16> to vector<16x16xf32>
      %24 = arith.addf %21, %23 : vector<16x16xf32>
      %c0_11 = arith.constant 0 : index
      %c0_12 = arith.constant 0 : index
      %25 = vector.load %arg8[%c0_11, %c0_12] : memref<16x1xf32, #tpu.memory_space<vmem>>, vector<16x1xf32>
      %cst_13 = arith.constant dense<0xFF800000> : vector<16xf32>
      %26 = vector.multi_reduction <maximumf>, %24, %cst_13 [1] : vector<16x16xf32> to vector<16xf32>
      %27 = vector.shape_cast %26 : vector<16xf32> to vector<16x1xf32>
      %28 = arith.maximumf %25, %27 : vector<16x1xf32>
      %29 = arith.subf %25, %28 : vector<16x1xf32>
      %30 = math.exp %29 : vector<16x1xf32>
      %31 = vector.broadcast %28 : vector<16x1xf32> to vector<16x16xf32>
      %32 = arith.subf %24, %31 : vector<16x16xf32>
      %33 = math.exp %32 : vector<16x16xf32>
      %c0_14 = arith.constant 0 : index
      %c0_15 = arith.constant 0 : index
      %34 = vector.load %arg9[%c0_14, %c0_15] : memref<16x1xf32, #tpu.memory_space<vmem>>, vector<16x1xf32>
      %35 = arith.mulf %30, %34 : vector<16x1xf32>
      %cst_16 = arith.constant dense<0.000000e+00> : vector<16xf32>
      %36 = vector.multi_reduction <add>, %33, %cst_16 [1] : vector<16x16xf32> to vector<16xf32>
      %37 = vector.shape_cast %36 : vector<16xf32> to vector<16x1xf32>
      %38 = arith.addf %35, %37 : vector<16x1xf32>
      %c0_17 = arith.constant 0 : index
      %c0_18 = arith.constant 0 : index
      %39 = vector.load %arg9[%c0_17, %c0_18] : memref<16x1xf32, #tpu.memory_space<vmem>>, vector<16x1xf32>
      tpu.vector_store %arg9[%c0_17, %c0_18], %38 {strides = array<i32>} : memref<16x1xf32, #tpu.memory_space<vmem>>, vector<16x1xf32>,
      %c0_19 = arith.constant 0 : index
      %c0_20 = arith.constant 0 : index
      %40 = vector.load %arg10[%c0_19, %c0_20] : memref<16x64xf32, #tpu.memory_space<vmem>>, vector<16x64xf32>
      %41 = vector.broadcast %30 : vector<16x1xf32> to vector<16x64xf32>
      %42 = arith.mulf %41, %40 : vector<16x64xf32>
      %43 = arith.truncf %33 : vector<16x16xf32> to vector<16x16xbf16>
      %c0_21 = arith.constant 0 : index
      %c0_22 = arith.constant 0 : index
      %44 = vector.load %arg3[%c0_21, %c0_22] : memref<16x64xbf16, #tpu.memory_space<vmem>>, vector<16x64xbf16>
      %cst_23 = arith.constant dense<0.000000e+00> : vector<16x64xf32>
      %45 = tpu.matmul %43, %44, %cst_23 {dimension_numbers = #tpu.dot_dimension_numbers<[1], [0], [0], [1], [0, 0, 1, 1], [], []>} : vector<16x16xbf16>, vector<16x64xbf16>, vector<16x64xf32> -> vector<16x64xf32>
      %46 = arith.addf %42, %45 : vector<16x64xf32>
      %c0_24 = arith.constant 0 : index
      %c0_25 = arith.constant 0 : index
      %47 = vector.load %arg10[%c0_24, %c0_25] : memref<16x64xf32, #tpu.memory_space<vmem>>, vector<16x64xf32>
      tpu.vector_store %arg10[%c0_24, %c0_25], %46 {strides = array<i32>} : memref<16x64xf32, #tpu.memory_space<vmem>>, vector<16x64xf32>,
      %c0_26 = arith.constant 0 : index
      %c0_27 = arith.constant 0 : index
      %48 = vector.load %arg8[%c0_26, %c0_27] : memref<16x1xf32, #tpu.memory_space<vmem>>, vector<16x1xf32>
      tpu.vector_store %arg8[%c0_26, %c0_27], %28 {strides = array<i32>} : memref<16x1xf32, #tpu.memory_space<vmem>>, vector<16x1xf32>,
    } else {
    }
    %c0_i32_3 = arith.constant 0 : i32
    %9 = arith.cmpi eq, %arg1, %c0_i32_3 : i32
    %10 = arith.extui %9 : i1 to i32
    %c0_i32_4 = arith.constant 0 : i32
    %11 = arith.cmpi ne, %10, %c0_i32_4 : i32
    scf.if %11 {
      %c0 = arith.constant 0 : index
      %c0_5 = arith.constant 0 : index
      %12 = vector.load %arg9[%c0, %c0_5] : memref<16x1xf32, #tpu.memory_space<vmem>>, vector<16x1xf32>
      %cst = arith.constant 0.000000e+00 : f32
      %13 = vector.broadcast %cst : f32 to vector<16x1xf32>
      %14 = arith.cmpf ogt, %12, %13 : vector<16x1xf32>
      %cst_6 = arith.constant 1.000000e+00 : f32
      %15 = vector.broadcast %cst_6 : f32 to vector<16x1xf32>
      %16 = arith.select %14, %12, %15 : vector<16x1xi1>, vector<16x1xf32>
      %c0_7 = arith.constant 0 : index
      %c0_8 = arith.constant 0 : index
      %17 = vector.load %arg10[%c0_7, %c0_8] : memref<16x64xf32, #tpu.memory_space<vmem>>, vector<16x64xf32>
      %18 = vector.broadcast %16 : vector<16x1xf32> to vector<16x64xf32>
      %19 = arith.divf %17, %18 : vector<16x64xf32>
      %cst_9 = arith.constant 0.000000e+00 : f32
      %20 = vector.broadcast %cst_9 : f32 to vector<16x64xf32>
      %21 = arith.cmpf ogt, %19, %20 : vector<16x64xf32>
      %cst_10 = arith.constant 0.000000e+00 : f32
      %22 = vector.broadcast %cst_10 : f32 to vector<16x64xf32>
      %23 = arith.minimumf %19, %22 : vector<16x64xf32>
      %24 = math.exp %23 : vector<16x64xf32>
      %cst_11 = arith.constant 1.000000e+00 : f32
      %25 = vector.broadcast %cst_11 : f32 to vector<16x64xf32>
      %26 = arith.subf %24, %25 : vector<16x64xf32>
      %27 = arith.select %21, %19, %26 : vector<16x64xi1>, vector<16x64xf32>
      %28 = arith.truncf %27 : vector<16x64xf32> to vector<16x64xbf16>
      %c0_12 = arith.constant 0 : index
      %c0_13 = arith.constant 0 : index
      %29 = vector.load %arg7[%c0_12, %c0_13] : memref<16x64xbf16, #tpu.memory_space<vmem>>, vector<16x64xbf16>
      tpu.vector_store %arg7[%c0_12, %c0_13], %28 {strides = array<i32>} : memref<16x64xbf16, #tpu.memory_space<vmem>>, vector<16x64xbf16>,
    } else {
    }
    return
  }
  func.func @transform_0(%arg0: i32, %arg1: i32, %arg2: memref<1x1xi32, #tpu.memory_space<smem>>) -> (i32, i32) {
    %c0_i32 = arith.constant 0 : i32
    %c0_i32_0 = arith.constant 0 : i32
    return %arg1, %c0_i32 : i32, i32
  }
  func.func @transform_1(%arg0: i32, %arg1: i32, %arg2: memref<1x1xi32, #tpu.memory_space<smem>>) -> (i32, i32) {
    %c0_i32 = arith.constant 0 : i32
    %c0_i32_0 = arith.constant 0 : i32
    return %arg0, %c0_i32 : i32, i32
  }
  func.func @transform_2(%arg0: i32, %arg1: i32, %arg2: memref<1x1xi32, #tpu.memory_space<smem>>) -> (i32, i32) {
    %c0_i32 = arith.constant 0 : i32
    %c0_i32_0 = arith.constant 0 : i32
    return %c0_i32, %arg1 : i32, i32
  }
  func.func @transform_3(%arg0: i32, %arg1: i32, %arg2: memref<1x1xi32, #tpu.memory_space<smem>>) -> (i32, i32) {
    %c0_i32 = arith.constant 0 : i32
    return %arg0, %arg1 : i32, i32
  }
  func.func @transform_4(%arg0: i32, %arg1: i32, %arg2: memref<1x1xi32, #tpu.memory_space<smem>>) -> (i32, i32) {
    %c0_i32 = arith.constant 0 : i32
    %c0_i32_0 = arith.constant 0 : i32
    return %arg0, %c0_i32 : i32, i32
  }
}

module attributes {stable_mosaic.version = 11 : i64} {
  func.func @_ae_encoder_kernel(%arg0: i32, %arg1: memref<16x32xf32, #tpu.memory_space<vmem>>, %arg2: memref<32x64xf32, #tpu.memory_space<vmem>>, %arg3: memref<1x64xf32, #tpu.memory_space<vmem>>, %arg4: memref<64x64xf32, #tpu.memory_space<vmem>>, %arg5: memref<1x64xf32, #tpu.memory_space<vmem>>, %arg6: memref<64x32xf32, #tpu.memory_space<vmem>>, %arg7: memref<1x32xf32, #tpu.memory_space<vmem>>, %arg8: memref<32x16xf32, #tpu.memory_space<vmem>>, %arg9: memref<1x16xf32, #tpu.memory_space<vmem>>, %arg10: memref<16x64xbf16, #tpu.memory_space<vmem>>, %arg11: memref<16x64xbf16, #tpu.memory_space<vmem>>, %arg12: memref<16x32xbf16, #tpu.memory_space<vmem>>, %arg13: memref<16x16xf32, #tpu.memory_space<vmem>>) attributes {dimension_semantics = [#tpu.dimension_semantics<parallel>], iteration_bounds = array<i64: 1>, scalar_prefetch = 0 : i64, scratch_operands = 0 : i64, tpu.core_type = #tpu.core_type<tc>, window_params = [{transform_indices = @transform_0, window_bounds = array<i64: 16, 32>}, {pipeline_mode = #tpu.pipeline_mode<synchronous>, transform_indices = @transform_1, window_bounds = array<i64: 32, 64>}, {pipeline_mode = #tpu.pipeline_mode<synchronous>, transform_indices = @transform_2, window_bounds = array<i64: 1, 64>}, {pipeline_mode = #tpu.pipeline_mode<synchronous>, transform_indices = @transform_3, window_bounds = array<i64: 64, 64>}, {pipeline_mode = #tpu.pipeline_mode<synchronous>, transform_indices = @transform_4, window_bounds = array<i64: 1, 64>}, {pipeline_mode = #tpu.pipeline_mode<synchronous>, transform_indices = @transform_5, window_bounds = array<i64: 64, 32>}, {pipeline_mode = #tpu.pipeline_mode<synchronous>, transform_indices = @transform_6, window_bounds = array<i64: 1, 32>}, {pipeline_mode = #tpu.pipeline_mode<synchronous>, transform_indices = @transform_7, window_bounds = array<i64: 32, 16>}, {pipeline_mode = #tpu.pipeline_mode<synchronous>, transform_indices = @transform_8, window_bounds = array<i64: 1, 16>}, {transform_indices = @transform_9, window_bounds = array<i64: 16, 64>}, {transform_indices = @transform_10, window_bounds = array<i64: 16, 64>}, {transform_indices = @transform_11, window_bounds = array<i64: 16, 32>}, {transform_indices = @transform_12, window_bounds = array<i64: 16, 16>}]} {
    %c0 = arith.constant 0 : index
    %c0_0 = arith.constant 0 : index
    %0 = vector.load %arg1[%c0, %c0_0] : memref<16x32xf32, #tpu.memory_space<vmem>>, vector<16x32xf32>
    %1 = arith.truncf %0 : vector<16x32xf32> to vector<16x32xbf16>
    %c0_1 = arith.constant 0 : index
    %c0_2 = arith.constant 0 : index
    %2 = vector.load %arg2[%c0_1, %c0_2] : memref<32x64xf32, #tpu.memory_space<vmem>>, vector<32x64xf32>
    %3 = arith.truncf %2 : vector<32x64xf32> to vector<32x64xbf16>
    %cst = arith.constant dense<0.000000e+00> : vector<16x64xf32>
    %4 = tpu.matmul %1, %3, %cst {dimension_numbers = #tpu.dot_dimension_numbers<[1], [0], [0], [1], [0, 0, 1, 1], [], []>} : vector<16x32xbf16>, vector<32x64xbf16>, vector<16x64xf32> -> vector<16x64xf32>
    %c0_3 = arith.constant 0 : index
    %c0_4 = arith.constant 0 : index
    %5 = vector.load %arg3[%c0_3, %c0_4] : memref<1x64xf32, #tpu.memory_space<vmem>>, vector<1x64xf32>
    %6 = vector.broadcast %5 : vector<1x64xf32> to vector<16x64xf32>
    %7 = arith.addf %4, %6 : vector<16x64xf32>
    %cst_5 = arith.constant 0.000000e+00 : f32
    %8 = vector.broadcast %cst_5 : f32 to vector<16x64xf32>
    %9 = arith.maximumf %7, %8 : vector<16x64xf32>
    %10 = arith.truncf %9 : vector<16x64xf32> to vector<16x64xbf16>
    %c0_6 = arith.constant 0 : index
    %c0_7 = arith.constant 0 : index
    %11 = vector.load %arg4[%c0_6, %c0_7] : memref<64x64xf32, #tpu.memory_space<vmem>>, vector<64x64xf32>
    %12 = arith.truncf %11 : vector<64x64xf32> to vector<64x64xbf16>
    %cst_8 = arith.constant dense<0.000000e+00> : vector<16x64xf32>
    %13 = tpu.matmul %10, %12, %cst_8 {dimension_numbers = #tpu.dot_dimension_numbers<[1], [0], [0], [1], [0, 0, 1, 1], [], []>} : vector<16x64xbf16>, vector<64x64xbf16>, vector<16x64xf32> -> vector<16x64xf32>
    %c0_9 = arith.constant 0 : index
    %c0_10 = arith.constant 0 : index
    %14 = vector.load %arg5[%c0_9, %c0_10] : memref<1x64xf32, #tpu.memory_space<vmem>>, vector<1x64xf32>
    %15 = vector.broadcast %14 : vector<1x64xf32> to vector<16x64xf32>
    %16 = arith.addf %13, %15 : vector<16x64xf32>
    %cst_11 = arith.constant 0.000000e+00 : f32
    %17 = vector.broadcast %cst_11 : f32 to vector<16x64xf32>
    %18 = arith.maximumf %16, %17 : vector<16x64xf32>
    %19 = arith.truncf %18 : vector<16x64xf32> to vector<16x64xbf16>
    %c0_12 = arith.constant 0 : index
    %c0_13 = arith.constant 0 : index
    %20 = vector.load %arg6[%c0_12, %c0_13] : memref<64x32xf32, #tpu.memory_space<vmem>>, vector<64x32xf32>
    %21 = arith.truncf %20 : vector<64x32xf32> to vector<64x32xbf16>
    %cst_14 = arith.constant dense<0.000000e+00> : vector<16x32xf32>
    %22 = tpu.matmul %19, %21, %cst_14 {dimension_numbers = #tpu.dot_dimension_numbers<[1], [0], [0], [1], [0, 0, 1, 1], [], []>} : vector<16x64xbf16>, vector<64x32xbf16>, vector<16x32xf32> -> vector<16x32xf32>
    %c0_15 = arith.constant 0 : index
    %c0_16 = arith.constant 0 : index
    %23 = vector.load %arg7[%c0_15, %c0_16] : memref<1x32xf32, #tpu.memory_space<vmem>>, vector<1x32xf32>
    %24 = vector.broadcast %23 : vector<1x32xf32> to vector<16x32xf32>
    %25 = arith.addf %22, %24 : vector<16x32xf32>
    %cst_17 = arith.constant 0.000000e+00 : f32
    %26 = vector.broadcast %cst_17 : f32 to vector<16x32xf32>
    %27 = arith.maximumf %25, %26 : vector<16x32xf32>
    %28 = arith.truncf %27 : vector<16x32xf32> to vector<16x32xbf16>
    %c0_18 = arith.constant 0 : index
    %c0_19 = arith.constant 0 : index
    %29 = vector.load %arg8[%c0_18, %c0_19] : memref<32x16xf32, #tpu.memory_space<vmem>>, vector<32x16xf32>
    %30 = arith.truncf %29 : vector<32x16xf32> to vector<32x16xbf16>
    %cst_20 = arith.constant dense<0.000000e+00> : vector<16x16xf32>
    %31 = tpu.matmul %28, %30, %cst_20 {dimension_numbers = #tpu.dot_dimension_numbers<[1], [0], [0], [1], [0, 0, 1, 1], [], []>} : vector<16x32xbf16>, vector<32x16xbf16>, vector<16x16xf32> -> vector<16x16xf32>
    %c0_21 = arith.constant 0 : index
    %c0_22 = arith.constant 0 : index
    %32 = vector.load %arg9[%c0_21, %c0_22] : memref<1x16xf32, #tpu.memory_space<vmem>>, vector<1x16xf32>
    %33 = vector.broadcast %32 : vector<1x16xf32> to vector<16x16xf32>
    %34 = arith.addf %31, %33 : vector<16x16xf32>
    %35 = arith.truncf %9 : vector<16x64xf32> to vector<16x64xbf16>
    %c0_23 = arith.constant 0 : index
    %c0_24 = arith.constant 0 : index
    %36 = vector.load %arg10[%c0_23, %c0_24] : memref<16x64xbf16, #tpu.memory_space<vmem>>, vector<16x64xbf16>
    tpu.vector_store %arg10[%c0_23, %c0_24], %35 {strides = array<i32>} : memref<16x64xbf16, #tpu.memory_space<vmem>>, vector<16x64xbf16>,
    %37 = arith.truncf %18 : vector<16x64xf32> to vector<16x64xbf16>
    %c0_25 = arith.constant 0 : index
    %c0_26 = arith.constant 0 : index
    %38 = vector.load %arg11[%c0_25, %c0_26] : memref<16x64xbf16, #tpu.memory_space<vmem>>, vector<16x64xbf16>
    tpu.vector_store %arg11[%c0_25, %c0_26], %37 {strides = array<i32>} : memref<16x64xbf16, #tpu.memory_space<vmem>>, vector<16x64xbf16>,
    %39 = arith.truncf %27 : vector<16x32xf32> to vector<16x32xbf16>
    %c0_27 = arith.constant 0 : index
    %c0_28 = arith.constant 0 : index
    %40 = vector.load %arg12[%c0_27, %c0_28] : memref<16x32xbf16, #tpu.memory_space<vmem>>, vector<16x32xbf16>
    tpu.vector_store %arg12[%c0_27, %c0_28], %39 {strides = array<i32>} : memref<16x32xbf16, #tpu.memory_space<vmem>>, vector<16x32xbf16>,
    %c0_29 = arith.constant 0 : index
    %c0_30 = arith.constant 0 : index
    %41 = vector.load %arg13[%c0_29, %c0_30] : memref<16x16xf32, #tpu.memory_space<vmem>>, vector<16x16xf32>
    tpu.vector_store %arg13[%c0_29, %c0_30], %34 {strides = array<i32>} : memref<16x16xf32, #tpu.memory_space<vmem>>, vector<16x16xf32>,
    return
  }
  func.func @transform_0(%arg0: i32) -> (i32, i32) {
    %c0_i32 = arith.constant 0 : i32
    %c0_i32_0 = arith.constant 0 : i32
    return %arg0, %c0_i32 : i32, i32
  }
  func.func @transform_1(%arg0: i32) -> (i32, i32) {
    %c0_i32 = arith.constant 0 : i32
    %c0_i32_0 = arith.constant 0 : i32
    %c0_i32_1 = arith.constant 0 : i32
    return %c0_i32, %c0_i32_0 : i32, i32
  }
  func.func @transform_2(%arg0: i32) -> (i32, i32) {
    %c0_i32 = arith.constant 0 : i32
    %c0_i32_0 = arith.constant 0 : i32
    %c0_i32_1 = arith.constant 0 : i32
    return %c0_i32, %c0_i32_0 : i32, i32
  }
  func.func @transform_3(%arg0: i32) -> (i32, i32) {
    %c0_i32 = arith.constant 0 : i32
    %c0_i32_0 = arith.constant 0 : i32
    %c0_i32_1 = arith.constant 0 : i32
    return %c0_i32, %c0_i32_0 : i32, i32
  }
  func.func @transform_4(%arg0: i32) -> (i32, i32) {
    %c0_i32 = arith.constant 0 : i32
    %c0_i32_0 = arith.constant 0 : i32
    %c0_i32_1 = arith.constant 0 : i32
    return %c0_i32, %c0_i32_0 : i32, i32
  }
  func.func @transform_5(%arg0: i32) -> (i32, i32) {
    %c0_i32 = arith.constant 0 : i32
    %c0_i32_0 = arith.constant 0 : i32
    %c0_i32_1 = arith.constant 0 : i32
    return %c0_i32, %c0_i32_0 : i32, i32
  }
  func.func @transform_6(%arg0: i32) -> (i32, i32) {
    %c0_i32 = arith.constant 0 : i32
    %c0_i32_0 = arith.constant 0 : i32
    %c0_i32_1 = arith.constant 0 : i32
    return %c0_i32, %c0_i32_0 : i32, i32
  }
  func.func @transform_7(%arg0: i32) -> (i32, i32) {
    %c0_i32 = arith.constant 0 : i32
    %c0_i32_0 = arith.constant 0 : i32
    %c0_i32_1 = arith.constant 0 : i32
    return %c0_i32, %c0_i32_0 : i32, i32
  }
  func.func @transform_8(%arg0: i32) -> (i32, i32) {
    %c0_i32 = arith.constant 0 : i32
    %c0_i32_0 = arith.constant 0 : i32
    %c0_i32_1 = arith.constant 0 : i32
    return %c0_i32, %c0_i32_0 : i32, i32
  }
  func.func @transform_9(%arg0: i32) -> (i32, i32) {
    %c0_i32 = arith.constant 0 : i32
    %c0_i32_0 = arith.constant 0 : i32
    return %arg0, %c0_i32 : i32, i32
  }
  func.func @transform_10(%arg0: i32) -> (i32, i32) {
    %c0_i32 = arith.constant 0 : i32
    %c0_i32_0 = arith.constant 0 : i32
    return %arg0, %c0_i32 : i32, i32
  }
  func.func @transform_11(%arg0: i32) -> (i32, i32) {
    %c0_i32 = arith.constant 0 : i32
    %c0_i32_0 = arith.constant 0 : i32
    return %arg0, %c0_i32 : i32, i32
  }
  func.func @transform_12(%arg0: i32) -> (i32, i32) {
    %c0_i32 = arith.constant 0 : i32
    %c0_i32_0 = arith.constant 0 : i32
    return %arg0, %c0_i32 : i32, i32
  }
}

module attributes {stable_mosaic.version = 11 : i64} {
  func.func @_gat_proj_mix_kernel(%arg0: i32, %arg1: memref<16x64xbf16, #tpu.memory_space<vmem>>, %arg2: memref<16x64xbf16, #tpu.memory_space<vmem>>, %arg3: memref<64x64xf32, #tpu.memory_space<vmem>>, %arg4: memref<1x64xf32, #tpu.memory_space<vmem>>, %arg5: memref<1x64xf32, #tpu.memory_space<vmem>>, %arg6: memref<16x64xbf16, #tpu.memory_space<vmem>>, %arg7: memref<16x1xf32, #tpu.memory_space<vmem>>, %arg8: memref<16x1xf32, #tpu.memory_space<vmem>>) attributes {dimension_semantics = [#tpu.dimension_semantics<parallel>], iteration_bounds = array<i64: 1>, scalar_prefetch = 0 : i64, scratch_operands = 0 : i64, tpu.core_type = #tpu.core_type<tc>, window_params = [{transform_indices = @transform_0, window_bounds = array<i64: 16, 64>}, {transform_indices = @transform_1, window_bounds = array<i64: 16, 64>}, {pipeline_mode = #tpu.pipeline_mode<synchronous>, transform_indices = @transform_2, window_bounds = array<i64: 64, 64>}, {pipeline_mode = #tpu.pipeline_mode<synchronous>, transform_indices = @transform_3, window_bounds = array<i64: 1, 64>}, {pipeline_mode = #tpu.pipeline_mode<synchronous>, transform_indices = @transform_4, window_bounds = array<i64: 1, 64>}, {transform_indices = @transform_5, window_bounds = array<i64: 16, 64>}, {transform_indices = @transform_6, window_bounds = array<i64: 16, 1>}, {transform_indices = @transform_7, window_bounds = array<i64: 16, 1>}]} {
    %c0 = arith.constant 0 : index
    %c0_0 = arith.constant 0 : index
    %0 = vector.load %arg1[%c0, %c0_0] : memref<16x64xbf16, #tpu.memory_space<vmem>>, vector<16x64xbf16>
    %1 = arith.extf %0 : vector<16x64xbf16> to vector<16x64xf32>
    %cst = arith.constant 5.000000e-01 : f32
    %2 = vector.broadcast %cst : f32 to vector<16x64xf32>
    %3 = arith.mulf %2, %1 : vector<16x64xf32>
    %c0_1 = arith.constant 0 : index
    %c0_2 = arith.constant 0 : index
    %4 = vector.load %arg2[%c0_1, %c0_2] : memref<16x64xbf16, #tpu.memory_space<vmem>>, vector<16x64xbf16>
    %5 = arith.extf %4 : vector<16x64xbf16> to vector<16x64xf32>
    %cst_3 = arith.constant 5.000000e-01 : f32
    %6 = vector.broadcast %cst_3 : f32 to vector<16x64xf32>
    %7 = arith.mulf %6, %5 : vector<16x64xf32>
    %8 = arith.addf %3, %7 : vector<16x64xf32>
    %9 = arith.truncf %8 : vector<16x64xf32> to vector<16x64xbf16>
    %c0_4 = arith.constant 0 : index
    %c0_5 = arith.constant 0 : index
    %10 = vector.load %arg3[%c0_4, %c0_5] : memref<64x64xf32, #tpu.memory_space<vmem>>, vector<64x64xf32>
    %11 = arith.truncf %10 : vector<64x64xf32> to vector<64x64xbf16>
    %cst_6 = arith.constant dense<0.000000e+00> : vector<16x64xf32>
    %12 = tpu.matmul %9, %11, %cst_6 {dimension_numbers = #tpu.dot_dimension_numbers<[1], [0], [0], [1], [0, 0, 1, 1], [], []>} : vector<16x64xbf16>, vector<64x64xbf16>, vector<16x64xf32> -> vector<16x64xf32>
    %13 = arith.truncf %12 : vector<16x64xf32> to vector<16x64xbf16>
    %c0_7 = arith.constant 0 : index
    %c0_8 = arith.constant 0 : index
    %14 = vector.load %arg6[%c0_7, %c0_8] : memref<16x64xbf16, #tpu.memory_space<vmem>>, vector<16x64xbf16>
    tpu.vector_store %arg6[%c0_7, %c0_8], %13 {strides = array<i32>} : memref<16x64xbf16, #tpu.memory_space<vmem>>, vector<16x64xbf16>,
    %c0_9 = arith.constant 0 : index
    %c0_10 = arith.constant 0 : index
    %15 = vector.load %arg4[%c0_9, %c0_10] : memref<1x64xf32, #tpu.memory_space<vmem>>, vector<1x64xf32>
    %16 = vector.broadcast %15 : vector<1x64xf32> to vector<16x64xf32>
    %17 = arith.mulf %12, %16 : vector<16x64xf32>
    %cst_11 = arith.constant dense<0.000000e+00> : vector<16xf32>
    %18 = vector.multi_reduction <add>, %17, %cst_11 [1] : vector<16x64xf32> to vector<16xf32>
    %19 = vector.shape_cast %18 : vector<16xf32> to vector<16x1xf32>
    %c0_12 = arith.constant 0 : index
    %c0_13 = arith.constant 0 : index
    %20 = vector.load %arg7[%c0_12, %c0_13] : memref<16x1xf32, #tpu.memory_space<vmem>>, vector<16x1xf32>
    tpu.vector_store %arg7[%c0_12, %c0_13], %19 {strides = array<i32>} : memref<16x1xf32, #tpu.memory_space<vmem>>, vector<16x1xf32>,
    %c0_14 = arith.constant 0 : index
    %c0_15 = arith.constant 0 : index
    %21 = vector.load %arg5[%c0_14, %c0_15] : memref<1x64xf32, #tpu.memory_space<vmem>>, vector<1x64xf32>
    %22 = vector.broadcast %21 : vector<1x64xf32> to vector<16x64xf32>
    %23 = arith.mulf %12, %22 : vector<16x64xf32>
    %cst_16 = arith.constant dense<0.000000e+00> : vector<16xf32>
    %24 = vector.multi_reduction <add>, %23, %cst_16 [1] : vector<16x64xf32> to vector<16xf32>
    %25 = vector.shape_cast %24 : vector<16xf32> to vector<16x1xf32>
    %c0_17 = arith.constant 0 : index
    %c0_18 = arith.constant 0 : index
    %26 = vector.load %arg8[%c0_17, %c0_18] : memref<16x1xf32, #tpu.memory_space<vmem>>, vector<16x1xf32>
    tpu.vector_store %arg8[%c0_17, %c0_18], %25 {strides = array<i32>} : memref<16x1xf32, #tpu.memory_space<vmem>>, vector<16x1xf32>,
    return
  }
  func.func @transform_0(%arg0: i32) -> (i32, i32) {
    %c0_i32 = arith.constant 0 : i32
    %c0_i32_0 = arith.constant 0 : i32
    return %arg0, %c0_i32 : i32, i32
  }
  func.func @transform_1(%arg0: i32) -> (i32, i32) {
    %c0_i32 = arith.constant 0 : i32
    %c0_i32_0 = arith.constant 0 : i32
    return %arg0, %c0_i32 : i32, i32
  }
  func.func @transform_2(%arg0: i32) -> (i32, i32) {
    %c0_i32 = arith.constant 0 : i32
    %c0_i32_0 = arith.constant 0 : i32
    %c0_i32_1 = arith.constant 0 : i32
    return %c0_i32, %c0_i32_0 : i32, i32
  }
  func.func @transform_3(%arg0: i32) -> (i32, i32) {
    %c0_i32 = arith.constant 0 : i32
    %c0_i32_0 = arith.constant 0 : i32
    %c0_i32_1 = arith.constant 0 : i32
    return %c0_i32, %c0_i32_0 : i32, i32
  }
  func.func @transform_4(%arg0: i32) -> (i32, i32) {
    %c0_i32 = arith.constant 0 : i32
    %c0_i32_0 = arith.constant 0 : i32
    %c0_i32_1 = arith.constant 0 : i32
    return %c0_i32, %c0_i32_0 : i32, i32
  }
  func.func @transform_5(%arg0: i32) -> (i32, i32) {
    %c0_i32 = arith.constant 0 : i32
    %c0_i32_0 = arith.constant 0 : i32
    return %arg0, %c0_i32 : i32, i32
  }
  func.func @transform_6(%arg0: i32) -> (i32, i32) {
    %c0_i32 = arith.constant 0 : i32
    %c0_i32_0 = arith.constant 0 : i32
    return %arg0, %c0_i32 : i32, i32
  }
  func.func @transform_7(%arg0: i32) -> (i32, i32) {
    %c0_i32 = arith.constant 0 : i32
    %c0_i32_0 = arith.constant 0 : i32
    return %arg0, %c0_i32 : i32, i32
  }
}

module attributes {stable_mosaic.version = 11 : i64} {
  func.func @_gat_proj_mix_kernel(%arg0: i32, %arg1: memref<16x64xbf16, #tpu.memory_space<vmem>>, %arg2: memref<16x64xbf16, #tpu.memory_space<vmem>>, %arg3: memref<64x32xf32, #tpu.memory_space<vmem>>, %arg4: memref<1x32xf32, #tpu.memory_space<vmem>>, %arg5: memref<1x32xf32, #tpu.memory_space<vmem>>, %arg6: memref<16x32xbf16, #tpu.memory_space<vmem>>, %arg7: memref<16x1xf32, #tpu.memory_space<vmem>>, %arg8: memref<16x1xf32, #tpu.memory_space<vmem>>) attributes {dimension_semantics = [#tpu.dimension_semantics<parallel>], iteration_bounds = array<i64: 1>, scalar_prefetch = 0 : i64, scratch_operands = 0 : i64, tpu.core_type = #tpu.core_type<tc>, window_params = [{transform_indices = @transform_0, window_bounds = array<i64: 16, 64>}, {transform_indices = @transform_1, window_bounds = array<i64: 16, 64>}, {pipeline_mode = #tpu.pipeline_mode<synchronous>, transform_indices = @transform_2, window_bounds = array<i64: 64, 32>}, {pipeline_mode = #tpu.pipeline_mode<synchronous>, transform_indices = @transform_3, window_bounds = array<i64: 1, 32>}, {pipeline_mode = #tpu.pipeline_mode<synchronous>, transform_indices = @transform_4, window_bounds = array<i64: 1, 32>}, {transform_indices = @transform_5, window_bounds = array<i64: 16, 32>}, {transform_indices = @transform_6, window_bounds = array<i64: 16, 1>}, {transform_indices = @transform_7, window_bounds = array<i64: 16, 1>}]} {
    %c0 = arith.constant 0 : index
    %c0_0 = arith.constant 0 : index
    %0 = vector.load %arg1[%c0, %c0_0] : memref<16x64xbf16, #tpu.memory_space<vmem>>, vector<16x64xbf16>
    %1 = arith.extf %0 : vector<16x64xbf16> to vector<16x64xf32>
    %cst = arith.constant 5.000000e-01 : f32
    %2 = vector.broadcast %cst : f32 to vector<16x64xf32>
    %3 = arith.mulf %2, %1 : vector<16x64xf32>
    %c0_1 = arith.constant 0 : index
    %c0_2 = arith.constant 0 : index
    %4 = vector.load %arg2[%c0_1, %c0_2] : memref<16x64xbf16, #tpu.memory_space<vmem>>, vector<16x64xbf16>
    %5 = arith.extf %4 : vector<16x64xbf16> to vector<16x64xf32>
    %cst_3 = arith.constant 5.000000e-01 : f32
    %6 = vector.broadcast %cst_3 : f32 to vector<16x64xf32>
    %7 = arith.mulf %6, %5 : vector<16x64xf32>
    %8 = arith.addf %3, %7 : vector<16x64xf32>
    %9 = arith.truncf %8 : vector<16x64xf32> to vector<16x64xbf16>
    %c0_4 = arith.constant 0 : index
    %c0_5 = arith.constant 0 : index
    %10 = vector.load %arg3[%c0_4, %c0_5] : memref<64x32xf32, #tpu.memory_space<vmem>>, vector<64x32xf32>
    %11 = arith.truncf %10 : vector<64x32xf32> to vector<64x32xbf16>
    %cst_6 = arith.constant dense<0.000000e+00> : vector<16x32xf32>
    %12 = tpu.matmul %9, %11, %cst_6 {dimension_numbers = #tpu.dot_dimension_numbers<[1], [0], [0], [1], [0, 0, 1, 1], [], []>} : vector<16x64xbf16>, vector<64x32xbf16>, vector<16x32xf32> -> vector<16x32xf32>
    %13 = arith.truncf %12 : vector<16x32xf32> to vector<16x32xbf16>
    %c0_7 = arith.constant 0 : index
    %c0_8 = arith.constant 0 : index
    %14 = vector.load %arg6[%c0_7, %c0_8] : memref<16x32xbf16, #tpu.memory_space<vmem>>, vector<16x32xbf16>
    tpu.vector_store %arg6[%c0_7, %c0_8], %13 {strides = array<i32>} : memref<16x32xbf16, #tpu.memory_space<vmem>>, vector<16x32xbf16>,
    %c0_9 = arith.constant 0 : index
    %c0_10 = arith.constant 0 : index
    %15 = vector.load %arg4[%c0_9, %c0_10] : memref<1x32xf32, #tpu.memory_space<vmem>>, vector<1x32xf32>
    %16 = vector.broadcast %15 : vector<1x32xf32> to vector<16x32xf32>
    %17 = arith.mulf %12, %16 : vector<16x32xf32>
    %cst_11 = arith.constant dense<0.000000e+00> : vector<16xf32>
    %18 = vector.multi_reduction <add>, %17, %cst_11 [1] : vector<16x32xf32> to vector<16xf32>
    %19 = vector.shape_cast %18 : vector<16xf32> to vector<16x1xf32>
    %c0_12 = arith.constant 0 : index
    %c0_13 = arith.constant 0 : index
    %20 = vector.load %arg7[%c0_12, %c0_13] : memref<16x1xf32, #tpu.memory_space<vmem>>, vector<16x1xf32>
    tpu.vector_store %arg7[%c0_12, %c0_13], %19 {strides = array<i32>} : memref<16x1xf32, #tpu.memory_space<vmem>>, vector<16x1xf32>,
    %c0_14 = arith.constant 0 : index
    %c0_15 = arith.constant 0 : index
    %21 = vector.load %arg5[%c0_14, %c0_15] : memref<1x32xf32, #tpu.memory_space<vmem>>, vector<1x32xf32>
    %22 = vector.broadcast %21 : vector<1x32xf32> to vector<16x32xf32>
    %23 = arith.mulf %12, %22 : vector<16x32xf32>
    %cst_16 = arith.constant dense<0.000000e+00> : vector<16xf32>
    %24 = vector.multi_reduction <add>, %23, %cst_16 [1] : vector<16x32xf32> to vector<16xf32>
    %25 = vector.shape_cast %24 : vector<16xf32> to vector<16x1xf32>
    %c0_17 = arith.constant 0 : index
    %c0_18 = arith.constant 0 : index
    %26 = vector.load %arg8[%c0_17, %c0_18] : memref<16x1xf32, #tpu.memory_space<vmem>>, vector<16x1xf32>
    tpu.vector_store %arg8[%c0_17, %c0_18], %25 {strides = array<i32>} : memref<16x1xf32, #tpu.memory_space<vmem>>, vector<16x1xf32>,
    return
  }
  func.func @transform_0(%arg0: i32) -> (i32, i32) {
    %c0_i32 = arith.constant 0 : i32
    %c0_i32_0 = arith.constant 0 : i32
    return %arg0, %c0_i32 : i32, i32
  }
  func.func @transform_1(%arg0: i32) -> (i32, i32) {
    %c0_i32 = arith.constant 0 : i32
    %c0_i32_0 = arith.constant 0 : i32
    return %arg0, %c0_i32 : i32, i32
  }
  func.func @transform_2(%arg0: i32) -> (i32, i32) {
    %c0_i32 = arith.constant 0 : i32
    %c0_i32_0 = arith.constant 0 : i32
    %c0_i32_1 = arith.constant 0 : i32
    return %c0_i32, %c0_i32_0 : i32, i32
  }
  func.func @transform_3(%arg0: i32) -> (i32, i32) {
    %c0_i32 = arith.constant 0 : i32
    %c0_i32_0 = arith.constant 0 : i32
    %c0_i32_1 = arith.constant 0 : i32
    return %c0_i32, %c0_i32_0 : i32, i32
  }
  func.func @transform_4(%arg0: i32) -> (i32, i32) {
    %c0_i32 = arith.constant 0 : i32
    %c0_i32_0 = arith.constant 0 : i32
    %c0_i32_1 = arith.constant 0 : i32
    return %c0_i32, %c0_i32_0 : i32, i32
  }
  func.func @transform_5(%arg0: i32) -> (i32, i32) {
    %c0_i32 = arith.constant 0 : i32
    %c0_i32_0 = arith.constant 0 : i32
    return %arg0, %c0_i32 : i32, i32
  }
  func.func @transform_6(%arg0: i32) -> (i32, i32) {
    %c0_i32 = arith.constant 0 : i32
    %c0_i32_0 = arith.constant 0 : i32
    return %arg0, %c0_i32 : i32, i32
  }
  func.func @transform_7(%arg0: i32) -> (i32, i32) {
    %c0_i32 = arith.constant 0 : i32
    %c0_i32_0 = arith.constant 0 : i32
    return %arg0, %c0_i32 : i32, i32
  }
}

module attributes {stable_mosaic.version = 11 : i64} {
  func.func @_gat_attn_kernel(%arg0: i32, %arg1: i32, %arg2: memref<1x1xi32, #tpu.memory_space<smem>>, %arg3: memref<16x32xbf16, #tpu.memory_space<vmem>>, %arg4: memref<16x1xf32, #tpu.memory_space<vmem>>, %arg5: memref<1x16xf32, #tpu.memory_space<vmem>>, %arg6: memref<16x16xbf16, #tpu.memory_space<vmem>>, %arg7: memref<16x32xbf16, #tpu.memory_space<vmem>>, %arg8: memref<16x1xf32, #tpu.memory_space<vmem>>, %arg9: memref<16x1xf32, #tpu.memory_space<vmem>>, %arg10: memref<16x32xf32, #tpu.memory_space<vmem>>) attributes {dimension_semantics = [#tpu.dimension_semantics<parallel>, #tpu.dimension_semantics<arbitrary>], iteration_bounds = array<i64: 1, 1>, scalar_prefetch = 1 : i64, scratch_operands = 3 : i64, tpu.core_type = #tpu.core_type<tc>, window_params = [{transform_indices = @transform_0, window_bounds = array<i64: 16, 32>}, {transform_indices = @transform_1, window_bounds = array<i64: 16, 1>}, {transform_indices = @transform_2, window_bounds = array<i64: 1, 16>}, {transform_indices = @transform_3, window_bounds = array<i64: 16, 16>}, {transform_indices = @transform_4, window_bounds = array<i64: 16, 32>}]} {
    %c0_i32 = arith.constant 0 : i32
    %0 = arith.cmpi eq, %arg1, %c0_i32 : i32
    %1 = arith.extui %0 : i1 to i32
    %c0_i32_0 = arith.constant 0 : i32
    %2 = arith.cmpi ne, %1, %c0_i32_0 : i32
    scf.if %2 {
      %cst = arith.constant 0xFF800000 : f32
      %12 = vector.broadcast %cst : f32 to vector<16x1xf32>
      %c0 = arith.constant 0 : index
      %c0_5 = arith.constant 0 : index
      %13 = vector.load %arg8[%c0, %c0_5] : memref<16x1xf32, #tpu.memory_space<vmem>>, vector<16x1xf32>
      tpu.vector_store %arg8[%c0, %c0_5], %12 {strides = array<i32>} : memref<16x1xf32, #tpu.memory_space<vmem>>, vector<16x1xf32>,
      %cst_6 = arith.constant 0.000000e+00 : f32
      %14 = vector.broadcast %cst_6 : f32 to vector<16x1xf32>
      %c0_7 = arith.constant 0 : index
      %c0_8 = arith.constant 0 : index
      %15 = vector.load %arg9[%c0_7, %c0_8] : memref<16x1xf32, #tpu.memory_space<vmem>>, vector<16x1xf32>
      tpu.vector_store %arg9[%c0_7, %c0_8], %14 {strides = array<i32>} : memref<16x1xf32, #tpu.memory_space<vmem>>, vector<16x1xf32>,
      %cst_9 = arith.constant 0.000000e+00 : f32
      %16 = vector.broadcast %cst_9 : f32 to vector<16x32xf32>
      %c0_10 = arith.constant 0 : index
      %c0_11 = arith.constant 0 : index
      %17 = vector.load %arg10[%c0_10, %c0_11] : memref<16x32xf32, #tpu.memory_space<vmem>>, vector<16x32xf32>
      tpu.vector_store %arg10[%c0_10, %c0_11], %16 {strides = array<i32>} : memref<16x32xf32, #tpu.memory_space<vmem>>, vector<16x32xf32>,
    } else {
    }
    %3 = arith.index_cast %arg0 : i32 to index
    %4 = arith.index_cast %arg1 : i32 to index
    %5 = memref.load %arg2[%3, %4] : memref<1x1xi32, #tpu.memory_space<smem>>
    %c0_i32_1 = arith.constant 0 : i32
    %6 = arith.cmpi sgt, %5, %c0_i32_1 : i32
    %7 = arith.extui %6 : i1 to i32
    %c0_i32_2 = arith.constant 0 : i32
    %8 = arith.cmpi ne, %7, %c0_i32_2 : i32
    scf.if %8 {
      %c0 = arith.constant 0 : index
      %c0_5 = arith.constant 0 : index
      %12 = vector.load %arg4[%c0, %c0_5] : memref<16x1xf32, #tpu.memory_space<vmem>>, vector<16x1xf32>
      %c0_6 = arith.constant 0 : index
      %c0_7 = arith.constant 0 : index
      %13 = vector.load %arg5[%c0_6, %c0_7] : memref<1x16xf32, #tpu.memory_space<vmem>>, vector<1x16xf32>
      %14 = vector.broadcast %12 : vector<16x1xf32> to vector<16x16xf32>
      %15 = vector.broadcast %13 : vector<1x16xf32> to vector<16x16xf32>
      %16 = arith.addf %14, %15 : vector<16x16xf32>
      %cst = arith.constant 0.000000e+00 : f32
      %17 = vector.broadcast %cst : f32 to vector<16x16xf32>
      %18 = arith.cmpf ogt, %16, %17 : vector<16x16xf32>
      %cst_8 = arith.constant 2.000000e-01 : f32
      %19 = vector.broadcast %cst_8 : f32 to vector<16x16xf32>
      %20 = arith.mulf %19, %16 : vector<16x16xf32>
      %21 = arith.select %18, %16, %20 : vector<16x16xi1>, vector<16x16xf32>
      %c0_9 = arith.constant 0 : index
      %c0_10 = arith.constant 0 : index
      %22 = vector.load %arg6[%c0_9, %c0_10] : memref<16x16xbf16, #tpu.memory_space<vmem>>, vector<16x16xbf16>
      %23 = arith.extf %22 : vector<16x16xbf16> to vector<16x16xf32>
      %24 = arith.addf %21, %23 : vector<16x16xf32>
      %c0_11 = arith.constant 0 : index
      %c0_12 = arith.constant 0 : index
      %25 = vector.load %arg8[%c0_11, %c0_12] : memref<16x1xf32, #tpu.memory_space<vmem>>, vector<16x1xf32>
      %cst_13 = arith.constant dense<0xFF800000> : vector<16xf32>
      %26 = vector.multi_reduction <maximumf>, %24, %cst_13 [1] : vector<16x16xf32> to vector<16xf32>
      %27 = vector.shape_cast %26 : vector<16xf32> to vector<16x1xf32>
      %28 = arith.maximumf %25, %27 : vector<16x1xf32>
      %29 = arith.subf %25, %28 : vector<16x1xf32>
      %30 = math.exp %29 : vector<16x1xf32>
      %31 = vector.broadcast %28 : vector<16x1xf32> to vector<16x16xf32>
      %32 = arith.subf %24, %31 : vector<16x16xf32>
      %33 = math.exp %32 : vector<16x16xf32>
      %c0_14 = arith.constant 0 : index
      %c0_15 = arith.constant 0 : index
      %34 = vector.load %arg9[%c0_14, %c0_15] : memref<16x1xf32, #tpu.memory_space<vmem>>, vector<16x1xf32>
      %35 = arith.mulf %30, %34 : vector<16x1xf32>
      %cst_16 = arith.constant dense<0.000000e+00> : vector<16xf32>
      %36 = vector.multi_reduction <add>, %33, %cst_16 [1] : vector<16x16xf32> to vector<16xf32>
      %37 = vector.shape_cast %36 : vector<16xf32> to vector<16x1xf32>
      %38 = arith.addf %35, %37 : vector<16x1xf32>
      %c0_17 = arith.constant 0 : index
      %c0_18 = arith.constant 0 : index
      %39 = vector.load %arg9[%c0_17, %c0_18] : memref<16x1xf32, #tpu.memory_space<vmem>>, vector<16x1xf32>
      tpu.vector_store %arg9[%c0_17, %c0_18], %38 {strides = array<i32>} : memref<16x1xf32, #tpu.memory_space<vmem>>, vector<16x1xf32>,
      %c0_19 = arith.constant 0 : index
      %c0_20 = arith.constant 0 : index
      %40 = vector.load %arg10[%c0_19, %c0_20] : memref<16x32xf32, #tpu.memory_space<vmem>>, vector<16x32xf32>
      %41 = vector.broadcast %30 : vector<16x1xf32> to vector<16x32xf32>
      %42 = arith.mulf %41, %40 : vector<16x32xf32>
      %43 = arith.truncf %33 : vector<16x16xf32> to vector<16x16xbf16>
      %c0_21 = arith.constant 0 : index
      %c0_22 = arith.constant 0 : index
      %44 = vector.load %arg3[%c0_21, %c0_22] : memref<16x32xbf16, #tpu.memory_space<vmem>>, vector<16x32xbf16>
      %cst_23 = arith.constant dense<0.000000e+00> : vector<16x32xf32>
      %45 = tpu.matmul %43, %44, %cst_23 {dimension_numbers = #tpu.dot_dimension_numbers<[1], [0], [0], [1], [0, 0, 1, 1], [], []>} : vector<16x16xbf16>, vector<16x32xbf16>, vector<16x32xf32> -> vector<16x32xf32>
      %46 = arith.addf %42, %45 : vector<16x32xf32>
      %c0_24 = arith.constant 0 : index
      %c0_25 = arith.constant 0 : index
      %47 = vector.load %arg10[%c0_24, %c0_25] : memref<16x32xf32, #tpu.memory_space<vmem>>, vector<16x32xf32>
      tpu.vector_store %arg10[%c0_24, %c0_25], %46 {strides = array<i32>} : memref<16x32xf32, #tpu.memory_space<vmem>>, vector<16x32xf32>,
      %c0_26 = arith.constant 0 : index
      %c0_27 = arith.constant 0 : index
      %48 = vector.load %arg8[%c0_26, %c0_27] : memref<16x1xf32, #tpu.memory_space<vmem>>, vector<16x1xf32>
      tpu.vector_store %arg8[%c0_26, %c0_27], %28 {strides = array<i32>} : memref<16x1xf32, #tpu.memory_space<vmem>>, vector<16x1xf32>,
    } else {
    }
    %c0_i32_3 = arith.constant 0 : i32
    %9 = arith.cmpi eq, %arg1, %c0_i32_3 : i32
    %10 = arith.extui %9 : i1 to i32
    %c0_i32_4 = arith.constant 0 : i32
    %11 = arith.cmpi ne, %10, %c0_i32_4 : i32
    scf.if %11 {
      %c0 = arith.constant 0 : index
      %c0_5 = arith.constant 0 : index
      %12 = vector.load %arg9[%c0, %c0_5] : memref<16x1xf32, #tpu.memory_space<vmem>>, vector<16x1xf32>
      %cst = arith.constant 0.000000e+00 : f32
      %13 = vector.broadcast %cst : f32 to vector<16x1xf32>
      %14 = arith.cmpf ogt, %12, %13 : vector<16x1xf32>
      %cst_6 = arith.constant 1.000000e+00 : f32
      %15 = vector.broadcast %cst_6 : f32 to vector<16x1xf32>
      %16 = arith.select %14, %12, %15 : vector<16x1xi1>, vector<16x1xf32>
      %c0_7 = arith.constant 0 : index
      %c0_8 = arith.constant 0 : index
      %17 = vector.load %arg10[%c0_7, %c0_8] : memref<16x32xf32, #tpu.memory_space<vmem>>, vector<16x32xf32>
      %18 = vector.broadcast %16 : vector<16x1xf32> to vector<16x32xf32>
      %19 = arith.divf %17, %18 : vector<16x32xf32>
      %cst_9 = arith.constant 0.000000e+00 : f32
      %20 = vector.broadcast %cst_9 : f32 to vector<16x32xf32>
      %21 = arith.cmpf ogt, %19, %20 : vector<16x32xf32>
      %cst_10 = arith.constant 0.000000e+00 : f32
      %22 = vector.broadcast %cst_10 : f32 to vector<16x32xf32>
      %23 = arith.minimumf %19, %22 : vector<16x32xf32>
      %24 = math.exp %23 : vector<16x32xf32>
      %cst_11 = arith.constant 1.000000e+00 : f32
      %25 = vector.broadcast %cst_11 : f32 to vector<16x32xf32>
      %26 = arith.subf %24, %25 : vector<16x32xf32>
      %27 = arith.select %21, %19, %26 : vector<16x32xi1>, vector<16x32xf32>
      %28 = arith.truncf %27 : vector<16x32xf32> to vector<16x32xbf16>
      %c0_12 = arith.constant 0 : index
      %c0_13 = arith.constant 0 : index
      %29 = vector.load %arg7[%c0_12, %c0_13] : memref<16x32xbf16, #tpu.memory_space<vmem>>, vector<16x32xbf16>
      tpu.vector_store %arg7[%c0_12, %c0_13], %28 {strides = array<i32>} : memref<16x32xbf16, #tpu.memory_space<vmem>>, vector<16x32xbf16>,
    } else {
    }
    return
  }
  func.func @transform_0(%arg0: i32, %arg1: i32, %arg2: memref<1x1xi32, #tpu.memory_space<smem>>) -> (i32, i32) {
    %c0_i32 = arith.constant 0 : i32
    %c0_i32_0 = arith.constant 0 : i32
    return %arg1, %c0_i32 : i32, i32
  }
  func.func @transform_1(%arg0: i32, %arg1: i32, %arg2: memref<1x1xi32, #tpu.memory_space<smem>>) -> (i32, i32) {
    %c0_i32 = arith.constant 0 : i32
    %c0_i32_0 = arith.constant 0 : i32
    return %arg0, %c0_i32 : i32, i32
  }
  func.func @transform_2(%arg0: i32, %arg1: i32, %arg2: memref<1x1xi32, #tpu.memory_space<smem>>) -> (i32, i32) {
    %c0_i32 = arith.constant 0 : i32
    %c0_i32_0 = arith.constant 0 : i32
    return %c0_i32, %arg1 : i32, i32
  }
  func.func @transform_3(%arg0: i32, %arg1: i32, %arg2: memref<1x1xi32, #tpu.memory_space<smem>>) -> (i32, i32) {
    %c0_i32 = arith.constant 0 : i32
    return %arg0, %arg1 : i32, i32
  }
  func.func @transform_4(%arg0: i32, %arg1: i32, %arg2: memref<1x1xi32, #tpu.memory_space<smem>>) -> (i32, i32) {
    %c0_i32 = arith.constant 0 : i32
    %c0_i32_0 = arith.constant 0 : i32
    return %arg0, %c0_i32 : i32, i32
  }
}

module attributes {stable_mosaic.version = 11 : i64} {
  func.func @_gat_proj_mix_kernel(%arg0: i32, %arg1: memref<16x32xbf16, #tpu.memory_space<vmem>>, %arg2: memref<16x32xbf16, #tpu.memory_space<vmem>>, %arg3: memref<32x16xf32, #tpu.memory_space<vmem>>, %arg4: memref<1x16xf32, #tpu.memory_space<vmem>>, %arg5: memref<1x16xf32, #tpu.memory_space<vmem>>, %arg6: memref<16x16xbf16, #tpu.memory_space<vmem>>, %arg7: memref<16x1xf32, #tpu.memory_space<vmem>>, %arg8: memref<16x1xf32, #tpu.memory_space<vmem>>) attributes {dimension_semantics = [#tpu.dimension_semantics<parallel>], iteration_bounds = array<i64: 1>, scalar_prefetch = 0 : i64, scratch_operands = 0 : i64, tpu.core_type = #tpu.core_type<tc>, window_params = [{transform_indices = @transform_0, window_bounds = array<i64: 16, 32>}, {transform_indices = @transform_1, window_bounds = array<i64: 16, 32>}, {pipeline_mode = #tpu.pipeline_mode<synchronous>, transform_indices = @transform_2, window_bounds = array<i64: 32, 16>}, {pipeline_mode = #tpu.pipeline_mode<synchronous>, transform_indices = @transform_3, window_bounds = array<i64: 1, 16>}, {pipeline_mode = #tpu.pipeline_mode<synchronous>, transform_indices = @transform_4, window_bounds = array<i64: 1, 16>}, {transform_indices = @transform_5, window_bounds = array<i64: 16, 16>}, {transform_indices = @transform_6, window_bounds = array<i64: 16, 1>}, {transform_indices = @transform_7, window_bounds = array<i64: 16, 1>}]} {
    %c0 = arith.constant 0 : index
    %c0_0 = arith.constant 0 : index
    %0 = vector.load %arg1[%c0, %c0_0] : memref<16x32xbf16, #tpu.memory_space<vmem>>, vector<16x32xbf16>
    %1 = arith.extf %0 : vector<16x32xbf16> to vector<16x32xf32>
    %cst = arith.constant 5.000000e-01 : f32
    %2 = vector.broadcast %cst : f32 to vector<16x32xf32>
    %3 = arith.mulf %2, %1 : vector<16x32xf32>
    %c0_1 = arith.constant 0 : index
    %c0_2 = arith.constant 0 : index
    %4 = vector.load %arg2[%c0_1, %c0_2] : memref<16x32xbf16, #tpu.memory_space<vmem>>, vector<16x32xbf16>
    %5 = arith.extf %4 : vector<16x32xbf16> to vector<16x32xf32>
    %cst_3 = arith.constant 5.000000e-01 : f32
    %6 = vector.broadcast %cst_3 : f32 to vector<16x32xf32>
    %7 = arith.mulf %6, %5 : vector<16x32xf32>
    %8 = arith.addf %3, %7 : vector<16x32xf32>
    %9 = arith.truncf %8 : vector<16x32xf32> to vector<16x32xbf16>
    %c0_4 = arith.constant 0 : index
    %c0_5 = arith.constant 0 : index
    %10 = vector.load %arg3[%c0_4, %c0_5] : memref<32x16xf32, #tpu.memory_space<vmem>>, vector<32x16xf32>
    %11 = arith.truncf %10 : vector<32x16xf32> to vector<32x16xbf16>
    %cst_6 = arith.constant dense<0.000000e+00> : vector<16x16xf32>
    %12 = tpu.matmul %9, %11, %cst_6 {dimension_numbers = #tpu.dot_dimension_numbers<[1], [0], [0], [1], [0, 0, 1, 1], [], []>} : vector<16x32xbf16>, vector<32x16xbf16>, vector<16x16xf32> -> vector<16x16xf32>
    %13 = arith.truncf %12 : vector<16x16xf32> to vector<16x16xbf16>
    %c0_7 = arith.constant 0 : index
    %c0_8 = arith.constant 0 : index
    %14 = vector.load %arg6[%c0_7, %c0_8] : memref<16x16xbf16, #tpu.memory_space<vmem>>, vector<16x16xbf16>
    tpu.vector_store %arg6[%c0_7, %c0_8], %13 {strides = array<i32>} : memref<16x16xbf16, #tpu.memory_space<vmem>>, vector<16x16xbf16>,
    %c0_9 = arith.constant 0 : index
    %c0_10 = arith.constant 0 : index
    %15 = vector.load %arg4[%c0_9, %c0_10] : memref<1x16xf32, #tpu.memory_space<vmem>>, vector<1x16xf32>
    %16 = vector.broadcast %15 : vector<1x16xf32> to vector<16x16xf32>
    %17 = arith.mulf %12, %16 : vector<16x16xf32>
    %cst_11 = arith.constant dense<0.000000e+00> : vector<16xf32>
    %18 = vector.multi_reduction <add>, %17, %cst_11 [1] : vector<16x16xf32> to vector<16xf32>
    %19 = vector.shape_cast %18 : vector<16xf32> to vector<16x1xf32>
    %c0_12 = arith.constant 0 : index
    %c0_13 = arith.constant 0 : index
    %20 = vector.load %arg7[%c0_12, %c0_13] : memref<16x1xf32, #tpu.memory_space<vmem>>, vector<16x1xf32>
    tpu.vector_store %arg7[%c0_12, %c0_13], %19 {strides = array<i32>} : memref<16x1xf32, #tpu.memory_space<vmem>>, vector<16x1xf32>,
    %c0_14 = arith.constant 0 : index
    %c0_15 = arith.constant 0 : index
    %21 = vector.load %arg5[%c0_14, %c0_15] : memref<1x16xf32, #tpu.memory_space<vmem>>, vector<1x16xf32>
    %22 = vector.broadcast %21 : vector<1x16xf32> to vector<16x16xf32>
    %23 = arith.mulf %12, %22 : vector<16x16xf32>
    %cst_16 = arith.constant dense<0.000000e+00> : vector<16xf32>
    %24 = vector.multi_reduction <add>, %23, %cst_16 [1] : vector<16x16xf32> to vector<16xf32>
    %25 = vector.shape_cast %24 : vector<16xf32> to vector<16x1xf32>
    %c0_17 = arith.constant 0 : index
    %c0_18 = arith.constant 0 : index
    %26 = vector.load %arg8[%c0_17, %c0_18] : memref<16x1xf32, #tpu.memory_space<vmem>>, vector<16x1xf32>
    tpu.vector_store %arg8[%c0_17, %c0_18], %25 {strides = array<i32>} : memref<16x1xf32, #tpu.memory_space<vmem>>, vector<16x1xf32>,
    return
  }
  func.func @transform_0(%arg0: i32) -> (i32, i32) {
    %c0_i32 = arith.constant 0 : i32
    %c0_i32_0 = arith.constant 0 : i32
    return %arg0, %c0_i32 : i32, i32
  }
  func.func @transform_1(%arg0: i32) -> (i32, i32) {
    %c0_i32 = arith.constant 0 : i32
    %c0_i32_0 = arith.constant 0 : i32
    return %arg0, %c0_i32 : i32, i32
  }
  func.func @transform_2(%arg0: i32) -> (i32, i32) {
    %c0_i32 = arith.constant 0 : i32
    %c0_i32_0 = arith.constant 0 : i32
    %c0_i32_1 = arith.constant 0 : i32
    return %c0_i32, %c0_i32_0 : i32, i32
  }
  func.func @transform_3(%arg0: i32) -> (i32, i32) {
    %c0_i32 = arith.constant 0 : i32
    %c0_i32_0 = arith.constant 0 : i32
    %c0_i32_1 = arith.constant 0 : i32
    return %c0_i32, %c0_i32_0 : i32, i32
  }
  func.func @transform_4(%arg0: i32) -> (i32, i32) {
    %c0_i32 = arith.constant 0 : i32
    %c0_i32_0 = arith.constant 0 : i32
    %c0_i32_1 = arith.constant 0 : i32
    return %c0_i32, %c0_i32_0 : i32, i32
  }
  func.func @transform_5(%arg0: i32) -> (i32, i32) {
    %c0_i32 = arith.constant 0 : i32
    %c0_i32_0 = arith.constant 0 : i32
    return %arg0, %c0_i32 : i32, i32
  }
  func.func @transform_6(%arg0: i32) -> (i32, i32) {
    %c0_i32 = arith.constant 0 : i32
    %c0_i32_0 = arith.constant 0 : i32
    return %arg0, %c0_i32 : i32, i32
  }
  func.func @transform_7(%arg0: i32) -> (i32, i32) {
    %c0_i32 = arith.constant 0 : i32
    %c0_i32_0 = arith.constant 0 : i32
    return %arg0, %c0_i32 : i32, i32
  }
}

module attributes {stable_mosaic.version = 11 : i64} {
  func.func @_gat_attn_kernel(%arg0: i32, %arg1: i32, %arg2: memref<1x1xi32, #tpu.memory_space<smem>>, %arg3: memref<16x16xbf16, #tpu.memory_space<vmem>>, %arg4: memref<16x1xf32, #tpu.memory_space<vmem>>, %arg5: memref<1x16xf32, #tpu.memory_space<vmem>>, %arg6: memref<16x16xbf16, #tpu.memory_space<vmem>>, %arg7: memref<16x16xbf16, #tpu.memory_space<vmem>>, %arg8: memref<16x1xf32, #tpu.memory_space<vmem>>, %arg9: memref<16x1xf32, #tpu.memory_space<vmem>>, %arg10: memref<16x16xf32, #tpu.memory_space<vmem>>) attributes {dimension_semantics = [#tpu.dimension_semantics<parallel>, #tpu.dimension_semantics<arbitrary>], iteration_bounds = array<i64: 1, 1>, scalar_prefetch = 1 : i64, scratch_operands = 3 : i64, tpu.core_type = #tpu.core_type<tc>, window_params = [{transform_indices = @transform_0, window_bounds = array<i64: 16, 16>}, {transform_indices = @transform_1, window_bounds = array<i64: 16, 1>}, {transform_indices = @transform_2, window_bounds = array<i64: 1, 16>}, {transform_indices = @transform_3, window_bounds = array<i64: 16, 16>}, {transform_indices = @transform_4, window_bounds = array<i64: 16, 16>}]} {
    %c0_i32 = arith.constant 0 : i32
    %0 = arith.cmpi eq, %arg1, %c0_i32 : i32
    %1 = arith.extui %0 : i1 to i32
    %c0_i32_0 = arith.constant 0 : i32
    %2 = arith.cmpi ne, %1, %c0_i32_0 : i32
    scf.if %2 {
      %cst = arith.constant 0xFF800000 : f32
      %12 = vector.broadcast %cst : f32 to vector<16x1xf32>
      %c0 = arith.constant 0 : index
      %c0_5 = arith.constant 0 : index
      %13 = vector.load %arg8[%c0, %c0_5] : memref<16x1xf32, #tpu.memory_space<vmem>>, vector<16x1xf32>
      tpu.vector_store %arg8[%c0, %c0_5], %12 {strides = array<i32>} : memref<16x1xf32, #tpu.memory_space<vmem>>, vector<16x1xf32>,
      %cst_6 = arith.constant 0.000000e+00 : f32
      %14 = vector.broadcast %cst_6 : f32 to vector<16x1xf32>
      %c0_7 = arith.constant 0 : index
      %c0_8 = arith.constant 0 : index
      %15 = vector.load %arg9[%c0_7, %c0_8] : memref<16x1xf32, #tpu.memory_space<vmem>>, vector<16x1xf32>
      tpu.vector_store %arg9[%c0_7, %c0_8], %14 {strides = array<i32>} : memref<16x1xf32, #tpu.memory_space<vmem>>, vector<16x1xf32>,
      %cst_9 = arith.constant 0.000000e+00 : f32
      %16 = vector.broadcast %cst_9 : f32 to vector<16x16xf32>
      %c0_10 = arith.constant 0 : index
      %c0_11 = arith.constant 0 : index
      %17 = vector.load %arg10[%c0_10, %c0_11] : memref<16x16xf32, #tpu.memory_space<vmem>>, vector<16x16xf32>
      tpu.vector_store %arg10[%c0_10, %c0_11], %16 {strides = array<i32>} : memref<16x16xf32, #tpu.memory_space<vmem>>, vector<16x16xf32>,
    } else {
    }
    %3 = arith.index_cast %arg0 : i32 to index
    %4 = arith.index_cast %arg1 : i32 to index
    %5 = memref.load %arg2[%3, %4] : memref<1x1xi32, #tpu.memory_space<smem>>
    %c0_i32_1 = arith.constant 0 : i32
    %6 = arith.cmpi sgt, %5, %c0_i32_1 : i32
    %7 = arith.extui %6 : i1 to i32
    %c0_i32_2 = arith.constant 0 : i32
    %8 = arith.cmpi ne, %7, %c0_i32_2 : i32
    scf.if %8 {
      %c0 = arith.constant 0 : index
      %c0_5 = arith.constant 0 : index
      %12 = vector.load %arg4[%c0, %c0_5] : memref<16x1xf32, #tpu.memory_space<vmem>>, vector<16x1xf32>
      %c0_6 = arith.constant 0 : index
      %c0_7 = arith.constant 0 : index
      %13 = vector.load %arg5[%c0_6, %c0_7] : memref<1x16xf32, #tpu.memory_space<vmem>>, vector<1x16xf32>
      %14 = vector.broadcast %12 : vector<16x1xf32> to vector<16x16xf32>
      %15 = vector.broadcast %13 : vector<1x16xf32> to vector<16x16xf32>
      %16 = arith.addf %14, %15 : vector<16x16xf32>
      %cst = arith.constant 0.000000e+00 : f32
      %17 = vector.broadcast %cst : f32 to vector<16x16xf32>
      %18 = arith.cmpf ogt, %16, %17 : vector<16x16xf32>
      %cst_8 = arith.constant 2.000000e-01 : f32
      %19 = vector.broadcast %cst_8 : f32 to vector<16x16xf32>
      %20 = arith.mulf %19, %16 : vector<16x16xf32>
      %21 = arith.select %18, %16, %20 : vector<16x16xi1>, vector<16x16xf32>
      %c0_9 = arith.constant 0 : index
      %c0_10 = arith.constant 0 : index
      %22 = vector.load %arg6[%c0_9, %c0_10] : memref<16x16xbf16, #tpu.memory_space<vmem>>, vector<16x16xbf16>
      %23 = arith.extf %22 : vector<16x16xbf16> to vector<16x16xf32>
      %24 = arith.addf %21, %23 : vector<16x16xf32>
      %c0_11 = arith.constant 0 : index
      %c0_12 = arith.constant 0 : index
      %25 = vector.load %arg8[%c0_11, %c0_12] : memref<16x1xf32, #tpu.memory_space<vmem>>, vector<16x1xf32>
      %cst_13 = arith.constant dense<0xFF800000> : vector<16xf32>
      %26 = vector.multi_reduction <maximumf>, %24, %cst_13 [1] : vector<16x16xf32> to vector<16xf32>
      %27 = vector.shape_cast %26 : vector<16xf32> to vector<16x1xf32>
      %28 = arith.maximumf %25, %27 : vector<16x1xf32>
      %29 = arith.subf %25, %28 : vector<16x1xf32>
      %30 = math.exp %29 : vector<16x1xf32>
      %31 = vector.broadcast %28 : vector<16x1xf32> to vector<16x16xf32>
      %32 = arith.subf %24, %31 : vector<16x16xf32>
      %33 = math.exp %32 : vector<16x16xf32>
      %c0_14 = arith.constant 0 : index
      %c0_15 = arith.constant 0 : index
      %34 = vector.load %arg9[%c0_14, %c0_15] : memref<16x1xf32, #tpu.memory_space<vmem>>, vector<16x1xf32>
      %35 = arith.mulf %30, %34 : vector<16x1xf32>
      %cst_16 = arith.constant dense<0.000000e+00> : vector<16xf32>
      %36 = vector.multi_reduction <add>, %33, %cst_16 [1] : vector<16x16xf32> to vector<16xf32>
      %37 = vector.shape_cast %36 : vector<16xf32> to vector<16x1xf32>
      %38 = arith.addf %35, %37 : vector<16x1xf32>
      %c0_17 = arith.constant 0 : index
      %c0_18 = arith.constant 0 : index
      %39 = vector.load %arg9[%c0_17, %c0_18] : memref<16x1xf32, #tpu.memory_space<vmem>>, vector<16x1xf32>
      tpu.vector_store %arg9[%c0_17, %c0_18], %38 {strides = array<i32>} : memref<16x1xf32, #tpu.memory_space<vmem>>, vector<16x1xf32>,
      %c0_19 = arith.constant 0 : index
      %c0_20 = arith.constant 0 : index
      %40 = vector.load %arg10[%c0_19, %c0_20] : memref<16x16xf32, #tpu.memory_space<vmem>>, vector<16x16xf32>
      %41 = vector.broadcast %30 : vector<16x1xf32> to vector<16x16xf32>
      %42 = arith.mulf %41, %40 : vector<16x16xf32>
      %43 = arith.truncf %33 : vector<16x16xf32> to vector<16x16xbf16>
      %c0_21 = arith.constant 0 : index
      %c0_22 = arith.constant 0 : index
      %44 = vector.load %arg3[%c0_21, %c0_22] : memref<16x16xbf16, #tpu.memory_space<vmem>>, vector<16x16xbf16>
      %cst_23 = arith.constant dense<0.000000e+00> : vector<16x16xf32>
      %45 = tpu.matmul %43, %44, %cst_23 {dimension_numbers = #tpu.dot_dimension_numbers<[1], [0], [0], [1], [0, 0, 1, 1], [], []>} : vector<16x16xbf16>, vector<16x16xbf16>, vector<16x16xf32> -> vector<16x16xf32>
      %46 = arith.addf %42, %45 : vector<16x16xf32>
      %c0_24 = arith.constant 0 : index
      %c0_25 = arith.constant 0 : index
      %47 = vector.load %arg10[%c0_24, %c0_25] : memref<16x16xf32, #tpu.memory_space<vmem>>, vector<16x16xf32>
      tpu.vector_store %arg10[%c0_24, %c0_25], %46 {strides = array<i32>} : memref<16x16xf32, #tpu.memory_space<vmem>>, vector<16x16xf32>,
      %c0_26 = arith.constant 0 : index
      %c0_27 = arith.constant 0 : index
      %48 = vector.load %arg8[%c0_26, %c0_27] : memref<16x1xf32, #tpu.memory_space<vmem>>, vector<16x1xf32>
      tpu.vector_store %arg8[%c0_26, %c0_27], %28 {strides = array<i32>} : memref<16x1xf32, #tpu.memory_space<vmem>>, vector<16x1xf32>,
    } else {
    }
    %c0_i32_3 = arith.constant 0 : i32
    %9 = arith.cmpi eq, %arg1, %c0_i32_3 : i32
    %10 = arith.extui %9 : i1 to i32
    %c0_i32_4 = arith.constant 0 : i32
    %11 = arith.cmpi ne, %10, %c0_i32_4 : i32
    scf.if %11 {
      %c0 = arith.constant 0 : index
      %c0_5 = arith.constant 0 : index
      %12 = vector.load %arg9[%c0, %c0_5] : memref<16x1xf32, #tpu.memory_space<vmem>>, vector<16x1xf32>
      %cst = arith.constant 0.000000e+00 : f32
      %13 = vector.broadcast %cst : f32 to vector<16x1xf32>
      %14 = arith.cmpf ogt, %12, %13 : vector<16x1xf32>
      %cst_6 = arith.constant 1.000000e+00 : f32
      %15 = vector.broadcast %cst_6 : f32 to vector<16x1xf32>
      %16 = arith.select %14, %12, %15 : vector<16x1xi1>, vector<16x1xf32>
      %c0_7 = arith.constant 0 : index
      %c0_8 = arith.constant 0 : index
      %17 = vector.load %arg10[%c0_7, %c0_8] : memref<16x16xf32, #tpu.memory_space<vmem>>, vector<16x16xf32>
      %18 = vector.broadcast %16 : vector<16x1xf32> to vector<16x16xf32>
      %19 = arith.divf %17, %18 : vector<16x16xf32>
      %cst_9 = arith.constant 0.000000e+00 : f32
      %20 = vector.broadcast %cst_9 : f32 to vector<16x16xf32>
      %21 = arith.cmpf ogt, %19, %20 : vector<16x16xf32>
      %cst_10 = arith.constant 0.000000e+00 : f32
      %22 = vector.broadcast %cst_10 : f32 to vector<16x16xf32>
      %23 = arith.minimumf %19, %22 : vector<16x16xf32>
      %24 = math.exp %23 : vector<16x16xf32>
      %cst_11 = arith.constant 1.000000e+00 : f32
      %25 = vector.broadcast %cst_11 : f32 to vector<16x16xf32>
      %26 = arith.subf %24, %25 : vector<16x16xf32>
      %27 = arith.select %21, %19, %26 : vector<16x16xi1>, vector<16x16xf32>
      %28 = arith.truncf %27 : vector<16x16xf32> to vector<16x16xbf16>
      %c0_12 = arith.constant 0 : index
      %c0_13 = arith.constant 0 : index
      %29 = vector.load %arg7[%c0_12, %c0_13] : memref<16x16xbf16, #tpu.memory_space<vmem>>, vector<16x16xbf16>
      tpu.vector_store %arg7[%c0_12, %c0_13], %28 {strides = array<i32>} : memref<16x16xbf16, #tpu.memory_space<vmem>>, vector<16x16xbf16>,
    } else {
    }
    return
  }
  func.func @transform_0(%arg0: i32, %arg1: i32, %arg2: memref<1x1xi32, #tpu.memory_space<smem>>) -> (i32, i32) {
    %c0_i32 = arith.constant 0 : i32
    %c0_i32_0 = arith.constant 0 : i32
    return %arg1, %c0_i32 : i32, i32
  }
  func.func @transform_1(%arg0: i32, %arg1: i32, %arg2: memref<1x1xi32, #tpu.memory_space<smem>>) -> (i32, i32) {
    %c0_i32 = arith.constant 0 : i32
    %c0_i32_0 = arith.constant 0 : i32
    return %arg0, %c0_i32 : i32, i32
  }
  func.func @transform_2(%arg0: i32, %arg1: i32, %arg2: memref<1x1xi32, #tpu.memory_space<smem>>) -> (i32, i32) {
    %c0_i32 = arith.constant 0 : i32
    %c0_i32_0 = arith.constant 0 : i32
    return %c0_i32, %arg1 : i32, i32
  }
  func.func @transform_3(%arg0: i32, %arg1: i32, %arg2: memref<1x1xi32, #tpu.memory_space<smem>>) -> (i32, i32) {
    %c0_i32 = arith.constant 0 : i32
    return %arg0, %arg1 : i32, i32
  }
  func.func @transform_4(%arg0: i32, %arg1: i32, %arg2: memref<1x1xi32, #tpu.memory_space<smem>>) -> (i32, i32) {
    %c0_i32 = arith.constant 0 : i32
    %c0_i32_0 = arith.constant 0 : i32
    return %arg0, %c0_i32 : i32, i32
  }
}

module attributes {stable_mosaic.version = 11 : i64} {
  func.func @_gat_proj_mix_kernel(%arg0: i32, %arg1: memref<16x16xbf16, #tpu.memory_space<vmem>>, %arg2: memref<16x16xf32, #tpu.memory_space<vmem>>, %arg3: memref<16x8xf32, #tpu.memory_space<vmem>>, %arg4: memref<1x8xf32, #tpu.memory_space<vmem>>, %arg5: memref<1x8xf32, #tpu.memory_space<vmem>>, %arg6: memref<16x8xbf16, #tpu.memory_space<vmem>>, %arg7: memref<16x1xf32, #tpu.memory_space<vmem>>, %arg8: memref<16x1xf32, #tpu.memory_space<vmem>>) attributes {dimension_semantics = [#tpu.dimension_semantics<parallel>], iteration_bounds = array<i64: 1>, scalar_prefetch = 0 : i64, scratch_operands = 0 : i64, tpu.core_type = #tpu.core_type<tc>, window_params = [{transform_indices = @transform_0, window_bounds = array<i64: 16, 16>}, {transform_indices = @transform_1, window_bounds = array<i64: 16, 16>}, {pipeline_mode = #tpu.pipeline_mode<synchronous>, transform_indices = @transform_2, window_bounds = array<i64: 16, 8>}, {pipeline_mode = #tpu.pipeline_mode<synchronous>, transform_indices = @transform_3, window_bounds = array<i64: 1, 8>}, {pipeline_mode = #tpu.pipeline_mode<synchronous>, transform_indices = @transform_4, window_bounds = array<i64: 1, 8>}, {transform_indices = @transform_5, window_bounds = array<i64: 16, 8>}, {transform_indices = @transform_6, window_bounds = array<i64: 16, 1>}, {transform_indices = @transform_7, window_bounds = array<i64: 16, 1>}]} {
    %c0 = arith.constant 0 : index
    %c0_0 = arith.constant 0 : index
    %0 = vector.load %arg1[%c0, %c0_0] : memref<16x16xbf16, #tpu.memory_space<vmem>>, vector<16x16xbf16>
    %1 = arith.extf %0 : vector<16x16xbf16> to vector<16x16xf32>
    %cst = arith.constant 5.000000e-01 : f32
    %2 = vector.broadcast %cst : f32 to vector<16x16xf32>
    %3 = arith.mulf %2, %1 : vector<16x16xf32>
    %c0_1 = arith.constant 0 : index
    %c0_2 = arith.constant 0 : index
    %4 = vector.load %arg2[%c0_1, %c0_2] : memref<16x16xf32, #tpu.memory_space<vmem>>, vector<16x16xf32>
    %cst_3 = arith.constant 5.000000e-01 : f32
    %5 = vector.broadcast %cst_3 : f32 to vector<16x16xf32>
    %6 = arith.mulf %5, %4 : vector<16x16xf32>
    %7 = arith.addf %3, %6 : vector<16x16xf32>
    %8 = arith.truncf %7 : vector<16x16xf32> to vector<16x16xbf16>
    %c0_4 = arith.constant 0 : index
    %c0_5 = arith.constant 0 : index
    %9 = vector.load %arg3[%c0_4, %c0_5] : memref<16x8xf32, #tpu.memory_space<vmem>>, vector<16x8xf32>
    %10 = arith.truncf %9 : vector<16x8xf32> to vector<16x8xbf16>
    %cst_6 = arith.constant dense<0.000000e+00> : vector<16x8xf32>
    %11 = tpu.matmul %8, %10, %cst_6 {dimension_numbers = #tpu.dot_dimension_numbers<[1], [0], [0], [1], [0, 0, 1, 1], [], []>} : vector<16x16xbf16>, vector<16x8xbf16>, vector<16x8xf32> -> vector<16x8xf32>
    %12 = arith.truncf %11 : vector<16x8xf32> to vector<16x8xbf16>
    %c0_7 = arith.constant 0 : index
    %c0_8 = arith.constant 0 : index
    %13 = vector.load %arg6[%c0_7, %c0_8] : memref<16x8xbf16, #tpu.memory_space<vmem>>, vector<16x8xbf16>
    tpu.vector_store %arg6[%c0_7, %c0_8], %12 {strides = array<i32>} : memref<16x8xbf16, #tpu.memory_space<vmem>>, vector<16x8xbf16>,
    %c0_9 = arith.constant 0 : index
    %c0_10 = arith.constant 0 : index
    %14 = vector.load %arg4[%c0_9, %c0_10] : memref<1x8xf32, #tpu.memory_space<vmem>>, vector<1x8xf32>
    %15 = vector.broadcast %14 : vector<1x8xf32> to vector<16x8xf32>
    %16 = arith.mulf %11, %15 : vector<16x8xf32>
    %cst_11 = arith.constant dense<0.000000e+00> : vector<16xf32>
    %17 = vector.multi_reduction <add>, %16, %cst_11 [1] : vector<16x8xf32> to vector<16xf32>
    %18 = vector.shape_cast %17 : vector<16xf32> to vector<16x1xf32>
    %c0_12 = arith.constant 0 : index
    %c0_13 = arith.constant 0 : index
    %19 = vector.load %arg7[%c0_12, %c0_13] : memref<16x1xf32, #tpu.memory_space<vmem>>, vector<16x1xf32>
    tpu.vector_store %arg7[%c0_12, %c0_13], %18 {strides = array<i32>} : memref<16x1xf32, #tpu.memory_space<vmem>>, vector<16x1xf32>,
    %c0_14 = arith.constant 0 : index
    %c0_15 = arith.constant 0 : index
    %20 = vector.load %arg5[%c0_14, %c0_15] : memref<1x8xf32, #tpu.memory_space<vmem>>, vector<1x8xf32>
    %21 = vector.broadcast %20 : vector<1x8xf32> to vector<16x8xf32>
    %22 = arith.mulf %11, %21 : vector<16x8xf32>
    %cst_16 = arith.constant dense<0.000000e+00> : vector<16xf32>
    %23 = vector.multi_reduction <add>, %22, %cst_16 [1] : vector<16x8xf32> to vector<16xf32>
    %24 = vector.shape_cast %23 : vector<16xf32> to vector<16x1xf32>
    %c0_17 = arith.constant 0 : index
    %c0_18 = arith.constant 0 : index
    %25 = vector.load %arg8[%c0_17, %c0_18] : memref<16x1xf32, #tpu.memory_space<vmem>>, vector<16x1xf32>
    tpu.vector_store %arg8[%c0_17, %c0_18], %24 {strides = array<i32>} : memref<16x1xf32, #tpu.memory_space<vmem>>, vector<16x1xf32>,
    return
  }
  func.func @transform_0(%arg0: i32) -> (i32, i32) {
    %c0_i32 = arith.constant 0 : i32
    %c0_i32_0 = arith.constant 0 : i32
    return %arg0, %c0_i32 : i32, i32
  }
  func.func @transform_1(%arg0: i32) -> (i32, i32) {
    %c0_i32 = arith.constant 0 : i32
    %c0_i32_0 = arith.constant 0 : i32
    return %arg0, %c0_i32 : i32, i32
  }
  func.func @transform_2(%arg0: i32) -> (i32, i32) {
    %c0_i32 = arith.constant 0 : i32
    %c0_i32_0 = arith.constant 0 : i32
    %c0_i32_1 = arith.constant 0 : i32
    return %c0_i32, %c0_i32_0 : i32, i32
  }
  func.func @transform_3(%arg0: i32) -> (i32, i32) {
    %c0_i32 = arith.constant 0 : i32
    %c0_i32_0 = arith.constant 0 : i32
    %c0_i32_1 = arith.constant 0 : i32
    return %c0_i32, %c0_i32_0 : i32, i32
  }
  func.func @transform_4(%arg0: i32) -> (i32, i32) {
    %c0_i32 = arith.constant 0 : i32
    %c0_i32_0 = arith.constant 0 : i32
    %c0_i32_1 = arith.constant 0 : i32
    return %c0_i32, %c0_i32_0 : i32, i32
  }
  func.func @transform_5(%arg0: i32) -> (i32, i32) {
    %c0_i32 = arith.constant 0 : i32
    %c0_i32_0 = arith.constant 0 : i32
    return %arg0, %c0_i32 : i32, i32
  }
  func.func @transform_6(%arg0: i32) -> (i32, i32) {
    %c0_i32 = arith.constant 0 : i32
    %c0_i32_0 = arith.constant 0 : i32
    return %arg0, %c0_i32 : i32, i32
  }
  func.func @transform_7(%arg0: i32) -> (i32, i32) {
    %c0_i32 = arith.constant 0 : i32
    %c0_i32_0 = arith.constant 0 : i32
    return %arg0, %c0_i32 : i32, i32
  }
}

module attributes {stable_mosaic.version = 11 : i64} {
  func.func @_ae_decoder_kernel(%arg0: i32, %arg1: memref<16x16xf32, #tpu.memory_space<vmem>>, %arg2: memref<16x32xf32, #tpu.memory_space<vmem>>, %arg3: memref<1x32xf32, #tpu.memory_space<vmem>>, %arg4: memref<32x64xf32, #tpu.memory_space<vmem>>, %arg5: memref<1x64xf32, #tpu.memory_space<vmem>>, %arg6: memref<64x64xf32, #tpu.memory_space<vmem>>, %arg7: memref<1x64xf32, #tpu.memory_space<vmem>>, %arg8: memref<64x32xf32, #tpu.memory_space<vmem>>, %arg9: memref<1x32xf32, #tpu.memory_space<vmem>>, %arg10: memref<16x32xf32, #tpu.memory_space<vmem>>) attributes {dimension_semantics = [#tpu.dimension_semantics<parallel>], iteration_bounds = array<i64: 1>, scalar_prefetch = 0 : i64, scratch_operands = 0 : i64, tpu.core_type = #tpu.core_type<tc>, window_params = [{transform_indices = @transform_0, window_bounds = array<i64: 16, 16>}, {pipeline_mode = #tpu.pipeline_mode<synchronous>, transform_indices = @transform_1, window_bounds = array<i64: 16, 32>}, {pipeline_mode = #tpu.pipeline_mode<synchronous>, transform_indices = @transform_2, window_bounds = array<i64: 1, 32>}, {pipeline_mode = #tpu.pipeline_mode<synchronous>, transform_indices = @transform_3, window_bounds = array<i64: 32, 64>}, {pipeline_mode = #tpu.pipeline_mode<synchronous>, transform_indices = @transform_4, window_bounds = array<i64: 1, 64>}, {pipeline_mode = #tpu.pipeline_mode<synchronous>, transform_indices = @transform_5, window_bounds = array<i64: 64, 64>}, {pipeline_mode = #tpu.pipeline_mode<synchronous>, transform_indices = @transform_6, window_bounds = array<i64: 1, 64>}, {pipeline_mode = #tpu.pipeline_mode<synchronous>, transform_indices = @transform_7, window_bounds = array<i64: 64, 32>}, {pipeline_mode = #tpu.pipeline_mode<synchronous>, transform_indices = @transform_8, window_bounds = array<i64: 1, 32>}, {transform_indices = @transform_9, window_bounds = array<i64: 16, 32>}]} {
    %c0 = arith.constant 0 : index
    %c0_0 = arith.constant 0 : index
    %0 = vector.load %arg1[%c0, %c0_0] : memref<16x16xf32, #tpu.memory_space<vmem>>, vector<16x16xf32>
    %1 = arith.truncf %0 : vector<16x16xf32> to vector<16x16xbf16>
    %c0_1 = arith.constant 0 : index
    %c0_2 = arith.constant 0 : index
    %2 = vector.load %arg2[%c0_1, %c0_2] : memref<16x32xf32, #tpu.memory_space<vmem>>, vector<16x32xf32>
    %3 = arith.truncf %2 : vector<16x32xf32> to vector<16x32xbf16>
    %cst = arith.constant dense<0.000000e+00> : vector<16x32xf32>
    %4 = tpu.matmul %1, %3, %cst {dimension_numbers = #tpu.dot_dimension_numbers<[1], [0], [0], [1], [0, 0, 1, 1], [], []>} : vector<16x16xbf16>, vector<16x32xbf16>, vector<16x32xf32> -> vector<16x32xf32>
    %c0_3 = arith.constant 0 : index
    %c0_4 = arith.constant 0 : index
    %5 = vector.load %arg3[%c0_3, %c0_4] : memref<1x32xf32, #tpu.memory_space<vmem>>, vector<1x32xf32>
    %6 = vector.broadcast %5 : vector<1x32xf32> to vector<16x32xf32>
    %7 = arith.addf %4, %6 : vector<16x32xf32>
    %cst_5 = arith.constant 0.000000e+00 : f32
    %8 = vector.broadcast %cst_5 : f32 to vector<16x32xf32>
    %9 = arith.maximumf %7, %8 : vector<16x32xf32>
    %10 = arith.truncf %9 : vector<16x32xf32> to vector<16x32xbf16>
    %c0_6 = arith.constant 0 : index
    %c0_7 = arith.constant 0 : index
    %11 = vector.load %arg4[%c0_6, %c0_7] : memref<32x64xf32, #tpu.memory_space<vmem>>, vector<32x64xf32>
    %12 = arith.truncf %11 : vector<32x64xf32> to vector<32x64xbf16>
    %cst_8 = arith.constant dense<0.000000e+00> : vector<16x64xf32>
    %13 = tpu.matmul %10, %12, %cst_8 {dimension_numbers = #tpu.dot_dimension_numbers<[1], [0], [0], [1], [0, 0, 1, 1], [], []>} : vector<16x32xbf16>, vector<32x64xbf16>, vector<16x64xf32> -> vector<16x64xf32>
    %c0_9 = arith.constant 0 : index
    %c0_10 = arith.constant 0 : index
    %14 = vector.load %arg5[%c0_9, %c0_10] : memref<1x64xf32, #tpu.memory_space<vmem>>, vector<1x64xf32>
    %15 = vector.broadcast %14 : vector<1x64xf32> to vector<16x64xf32>
    %16 = arith.addf %13, %15 : vector<16x64xf32>
    %cst_11 = arith.constant 0.000000e+00 : f32
    %17 = vector.broadcast %cst_11 : f32 to vector<16x64xf32>
    %18 = arith.maximumf %16, %17 : vector<16x64xf32>
    %19 = arith.truncf %18 : vector<16x64xf32> to vector<16x64xbf16>
    %c0_12 = arith.constant 0 : index
    %c0_13 = arith.constant 0 : index
    %20 = vector.load %arg6[%c0_12, %c0_13] : memref<64x64xf32, #tpu.memory_space<vmem>>, vector<64x64xf32>
    %21 = arith.truncf %20 : vector<64x64xf32> to vector<64x64xbf16>
    %cst_14 = arith.constant dense<0.000000e+00> : vector<16x64xf32>
    %22 = tpu.matmul %19, %21, %cst_14 {dimension_numbers = #tpu.dot_dimension_numbers<[1], [0], [0], [1], [0, 0, 1, 1], [], []>} : vector<16x64xbf16>, vector<64x64xbf16>, vector<16x64xf32> -> vector<16x64xf32>
    %c0_15 = arith.constant 0 : index
    %c0_16 = arith.constant 0 : index
    %23 = vector.load %arg7[%c0_15, %c0_16] : memref<1x64xf32, #tpu.memory_space<vmem>>, vector<1x64xf32>
    %24 = vector.broadcast %23 : vector<1x64xf32> to vector<16x64xf32>
    %25 = arith.addf %22, %24 : vector<16x64xf32>
    %cst_17 = arith.constant 0.000000e+00 : f32
    %26 = vector.broadcast %cst_17 : f32 to vector<16x64xf32>
    %27 = arith.maximumf %25, %26 : vector<16x64xf32>
    %28 = arith.truncf %27 : vector<16x64xf32> to vector<16x64xbf16>
    %c0_18 = arith.constant 0 : index
    %c0_19 = arith.constant 0 : index
    %29 = vector.load %arg8[%c0_18, %c0_19] : memref<64x32xf32, #tpu.memory_space<vmem>>, vector<64x32xf32>
    %30 = arith.truncf %29 : vector<64x32xf32> to vector<64x32xbf16>
    %cst_20 = arith.constant dense<0.000000e+00> : vector<16x32xf32>
    %31 = tpu.matmul %28, %30, %cst_20 {dimension_numbers = #tpu.dot_dimension_numbers<[1], [0], [0], [1], [0, 0, 1, 1], [], []>} : vector<16x64xbf16>, vector<64x32xbf16>, vector<16x32xf32> -> vector<16x32xf32>
    %c0_21 = arith.constant 0 : index
    %c0_22 = arith.constant 0 : index
    %32 = vector.load %arg9[%c0_21, %c0_22] : memref<1x32xf32, #tpu.memory_space<vmem>>, vector<1x32xf32>
    %33 = vector.broadcast %32 : vector<1x32xf32> to vector<16x32xf32>
    %34 = arith.addf %31, %33 : vector<16x32xf32>
    %c0_23 = arith.constant 0 : index
    %c0_24 = arith.constant 0 : index
    %35 = vector.load %arg10[%c0_23, %c0_24] : memref<16x32xf32, #tpu.memory_space<vmem>>, vector<16x32xf32>
    tpu.vector_store %arg10[%c0_23, %c0_24], %34 {strides = array<i32>} : memref<16x32xf32, #tpu.memory_space<vmem>>, vector<16x32xf32>,
    return
  }
  func.func @transform_0(%arg0: i32) -> (i32, i32) {
    %c0_i32 = arith.constant 0 : i32
    %c0_i32_0 = arith.constant 0 : i32
    return %arg0, %c0_i32 : i32, i32
  }
  func.func @transform_1(%arg0: i32) -> (i32, i32) {
    %c0_i32 = arith.constant 0 : i32
    %c0_i32_0 = arith.constant 0 : i32
    %c0_i32_1 = arith.constant 0 : i32
    return %c0_i32, %c0_i32_0 : i32, i32
  }
  func.func @transform_2(%arg0: i32) -> (i32, i32) {
    %c0_i32 = arith.constant 0 : i32
    %c0_i32_0 = arith.constant 0 : i32
    %c0_i32_1 = arith.constant 0 : i32
    return %c0_i32, %c0_i32_0 : i32, i32
  }
  func.func @transform_3(%arg0: i32) -> (i32, i32) {
    %c0_i32 = arith.constant 0 : i32
    %c0_i32_0 = arith.constant 0 : i32
    %c0_i32_1 = arith.constant 0 : i32
    return %c0_i32, %c0_i32_0 : i32, i32
  }
  func.func @transform_4(%arg0: i32) -> (i32, i32) {
    %c0_i32 = arith.constant 0 : i32
    %c0_i32_0 = arith.constant 0 : i32
    %c0_i32_1 = arith.constant 0 : i32
    return %c0_i32, %c0_i32_0 : i32, i32
  }
  func.func @transform_5(%arg0: i32) -> (i32, i32) {
    %c0_i32 = arith.constant 0 : i32
    %c0_i32_0 = arith.constant 0 : i32
    %c0_i32_1 = arith.constant 0 : i32
    return %c0_i32, %c0_i32_0 : i32, i32
  }
  func.func @transform_6(%arg0: i32) -> (i32, i32) {
    %c0_i32 = arith.constant 0 : i32
    %c0_i32_0 = arith.constant 0 : i32
    %c0_i32_1 = arith.constant 0 : i32
    return %c0_i32, %c0_i32_0 : i32, i32
  }
  func.func @transform_7(%arg0: i32) -> (i32, i32) {
    %c0_i32 = arith.constant 0 : i32
    %c0_i32_0 = arith.constant 0 : i32
    %c0_i32_1 = arith.constant 0 : i32
    return %c0_i32, %c0_i32_0 : i32, i32
  }
  func.func @transform_8(%arg0: i32) -> (i32, i32) {
    %c0_i32 = arith.constant 0 : i32
    %c0_i32_0 = arith.constant 0 : i32
    %c0_i32_1 = arith.constant 0 : i32
    return %c0_i32, %c0_i32_0 : i32, i32
  }
  func.func @transform_9(%arg0: i32) -> (i32, i32) {
    %c0_i32 = arith.constant 0 : i32
    %c0_i32_0 = arith.constant 0 : i32
    return %arg0, %c0_i32 : i32, i32
  }
}

module attributes {stable_mosaic.version = 11 : i64} {
  func.func @_q_kernel(%arg0: i32, %arg1: memref<16x16xf32, #tpu.memory_space<vmem>>, %arg2: memref<16x8xf32, #tpu.memory_space<vmem>>, %arg3: memref<1x8xf32, #tpu.memory_space<vmem>>, %arg4: memref<16x8xf32, #tpu.memory_space<vmem>>) attributes {dimension_semantics = [#tpu.dimension_semantics<parallel>], iteration_bounds = array<i64: 1>, scalar_prefetch = 0 : i64, scratch_operands = 0 : i64, tpu.core_type = #tpu.core_type<tc>, window_params = [{transform_indices = @transform_0, window_bounds = array<i64: 16, 16>}, {pipeline_mode = #tpu.pipeline_mode<synchronous>, transform_indices = @transform_1, window_bounds = array<i64: 16, 8>}, {pipeline_mode = #tpu.pipeline_mode<synchronous>, transform_indices = @transform_2, window_bounds = array<i64: 1, 8>}, {transform_indices = @transform_3, window_bounds = array<i64: 16, 8>}]} {
    %c0 = arith.constant 0 : index
    %c0_0 = arith.constant 0 : index
    %0 = vector.load %arg1[%c0, %c0_0] : memref<16x16xf32, #tpu.memory_space<vmem>>, vector<16x16xf32>
    %1 = arith.mulf %0, %0 : vector<16x16xf32>
    %cst = arith.constant dense<0.000000e+00> : vector<16xf32>
    %2 = vector.multi_reduction <add>, %1, %cst [1] : vector<16x16xf32> to vector<16xf32>
    %3 = vector.shape_cast %2 : vector<16xf32> to vector<16x1xf32>
    %c0_1 = arith.constant 0 : index
    %c0_2 = arith.constant 0 : index
    %4 = vector.load %arg2[%c0_1, %c0_2] : memref<16x8xf32, #tpu.memory_space<vmem>>, vector<16x8xf32>
    %cst_3 = arith.constant dense<0.000000e+00> : vector<16x8xf32>
    %5 = tpu.matmul %0, %4, %cst_3 {dimension_numbers = #tpu.dot_dimension_numbers<[1], [0], [0], [1], [0, 0, 1, 1], [], []>} : vector<16x16xf32>, vector<16x8xf32>, vector<16x8xf32> -> vector<16x8xf32>
    %c0_4 = arith.constant 0 : index
    %c0_5 = arith.constant 0 : index
    %6 = vector.load %arg3[%c0_4, %c0_5] : memref<1x8xf32, #tpu.memory_space<vmem>>, vector<1x8xf32>
    %7 = vector.broadcast %3 : vector<16x1xf32> to vector<16x8xf32>
    %8 = vector.broadcast %6 : vector<1x8xf32> to vector<16x8xf32>
    %9 = arith.addf %7, %8 : vector<16x8xf32>
    %cst_6 = arith.constant 2.000000e+00 : f32
    %10 = vector.broadcast %cst_6 : f32 to vector<16x8xf32>
    %11 = arith.mulf %10, %5 : vector<16x8xf32>
    %12 = arith.subf %9, %11 : vector<16x8xf32>
    %cst_7 = arith.constant 0.000000e+00 : f32
    %13 = vector.broadcast %cst_7 : f32 to vector<16x8xf32>
    %14 = arith.maximumf %12, %13 : vector<16x8xf32>
    %cst_8 = arith.constant 1.000000e+00 : f32
    %15 = vector.broadcast %cst_8 : f32 to vector<16x8xf32>
    %16 = arith.divf %14, %15 : vector<16x8xf32>
    %cst_9 = arith.constant 1.000000e+00 : f32
    %17 = vector.broadcast %cst_9 : f32 to vector<16x8xf32>
    %18 = arith.addf %17, %16 : vector<16x8xf32>
    %cst_10 = arith.constant 1.000000e+00 : f32
    %19 = vector.broadcast %cst_10 : f32 to vector<16x8xf32>
    %20 = arith.divf %19, %18 : vector<16x8xf32>
    %cst_11 = arith.constant dense<0.000000e+00> : vector<16xf32>
    %21 = vector.multi_reduction <add>, %20, %cst_11 [1] : vector<16x8xf32> to vector<16xf32>
    %22 = vector.shape_cast %21 : vector<16xf32> to vector<16x1xf32>
    %23 = vector.broadcast %22 : vector<16x1xf32> to vector<16x8xf32>
    %24 = arith.divf %20, %23 : vector<16x8xf32>
    %c0_12 = arith.constant 0 : index
    %c0_13 = arith.constant 0 : index
    %25 = vector.load %arg4[%c0_12, %c0_13] : memref<16x8xf32, #tpu.memory_space<vmem>>, vector<16x8xf32>
    tpu.vector_store %arg4[%c0_12, %c0_13], %24 {strides = array<i32>} : memref<16x8xf32, #tpu.memory_space<vmem>>, vector<16x8xf32>,
    return
  }
  func.func @transform_0(%arg0: i32) -> (i32, i32) {
    %c0_i32 = arith.constant 0 : i32
    %c0_i32_0 = arith.constant 0 : i32
    return %arg0, %c0_i32 : i32, i32
  }
  func.func @transform_1(%arg0: i32) -> (i32, i32) {
    %c0_i32 = arith.constant 0 : i32
    %c0_i32_0 = arith.constant 0 : i32
    %c0_i32_1 = arith.constant 0 : i32
    return %c0_i32, %c0_i32_0 : i32, i32
  }
  func.func @transform_2(%arg0: i32) -> (i32, i32) {
    %c0_i32 = arith.constant 0 : i32
    %c0_i32_0 = arith.constant 0 : i32
    %c0_i32_1 = arith.constant 0 : i32
    return %c0_i32, %c0_i32_0 : i32, i32
  }
  func.func @transform_3(%arg0: i32) -> (i32, i32) {
    %c0_i32 = arith.constant 0 : i32
    %c0_i32_0 = arith.constant 0 : i32
    return %arg0, %c0_i32 : i32, i32
  }
}

module attributes {stable_mosaic.version = 11 : i64} {
  func.func @_gat_attn_kernel(%arg0: i32, %arg1: i32, %arg2: memref<1x1xi32, #tpu.memory_space<smem>>, %arg3: memref<16x8xbf16, #tpu.memory_space<vmem>>, %arg4: memref<16x1xf32, #tpu.memory_space<vmem>>, %arg5: memref<1x16xf32, #tpu.memory_space<vmem>>, %arg6: memref<16x16xbf16, #tpu.memory_space<vmem>>, %arg7: memref<16x8xf32, #tpu.memory_space<vmem>>, %arg8: memref<16x1xf32, #tpu.memory_space<vmem>>, %arg9: memref<16x1xf32, #tpu.memory_space<vmem>>, %arg10: memref<16x8xf32, #tpu.memory_space<vmem>>) attributes {dimension_semantics = [#tpu.dimension_semantics<parallel>, #tpu.dimension_semantics<arbitrary>], iteration_bounds = array<i64: 1, 1>, scalar_prefetch = 1 : i64, scratch_operands = 3 : i64, tpu.core_type = #tpu.core_type<tc>, window_params = [{transform_indices = @transform_0, window_bounds = array<i64: 16, 8>}, {transform_indices = @transform_1, window_bounds = array<i64: 16, 1>}, {transform_indices = @transform_2, window_bounds = array<i64: 1, 16>}, {transform_indices = @transform_3, window_bounds = array<i64: 16, 16>}, {transform_indices = @transform_4, window_bounds = array<i64: 16, 8>}]} {
    %c0_i32 = arith.constant 0 : i32
    %0 = arith.cmpi eq, %arg1, %c0_i32 : i32
    %1 = arith.extui %0 : i1 to i32
    %c0_i32_0 = arith.constant 0 : i32
    %2 = arith.cmpi ne, %1, %c0_i32_0 : i32
    scf.if %2 {
      %cst = arith.constant 0xFF800000 : f32
      %12 = vector.broadcast %cst : f32 to vector<16x1xf32>
      %c0 = arith.constant 0 : index
      %c0_5 = arith.constant 0 : index
      %13 = vector.load %arg8[%c0, %c0_5] : memref<16x1xf32, #tpu.memory_space<vmem>>, vector<16x1xf32>
      tpu.vector_store %arg8[%c0, %c0_5], %12 {strides = array<i32>} : memref<16x1xf32, #tpu.memory_space<vmem>>, vector<16x1xf32>,
      %cst_6 = arith.constant 0.000000e+00 : f32
      %14 = vector.broadcast %cst_6 : f32 to vector<16x1xf32>
      %c0_7 = arith.constant 0 : index
      %c0_8 = arith.constant 0 : index
      %15 = vector.load %arg9[%c0_7, %c0_8] : memref<16x1xf32, #tpu.memory_space<vmem>>, vector<16x1xf32>
      tpu.vector_store %arg9[%c0_7, %c0_8], %14 {strides = array<i32>} : memref<16x1xf32, #tpu.memory_space<vmem>>, vector<16x1xf32>,
      %cst_9 = arith.constant 0.000000e+00 : f32
      %16 = vector.broadcast %cst_9 : f32 to vector<16x8xf32>
      %c0_10 = arith.constant 0 : index
      %c0_11 = arith.constant 0 : index
      %17 = vector.load %arg10[%c0_10, %c0_11] : memref<16x8xf32, #tpu.memory_space<vmem>>, vector<16x8xf32>
      tpu.vector_store %arg10[%c0_10, %c0_11], %16 {strides = array<i32>} : memref<16x8xf32, #tpu.memory_space<vmem>>, vector<16x8xf32>,
    } else {
    }
    %3 = arith.index_cast %arg0 : i32 to index
    %4 = arith.index_cast %arg1 : i32 to index
    %5 = memref.load %arg2[%3, %4] : memref<1x1xi32, #tpu.memory_space<smem>>
    %c0_i32_1 = arith.constant 0 : i32
    %6 = arith.cmpi sgt, %5, %c0_i32_1 : i32
    %7 = arith.extui %6 : i1 to i32
    %c0_i32_2 = arith.constant 0 : i32
    %8 = arith.cmpi ne, %7, %c0_i32_2 : i32
    scf.if %8 {
      %c0 = arith.constant 0 : index
      %c0_5 = arith.constant 0 : index
      %12 = vector.load %arg4[%c0, %c0_5] : memref<16x1xf32, #tpu.memory_space<vmem>>, vector<16x1xf32>
      %c0_6 = arith.constant 0 : index
      %c0_7 = arith.constant 0 : index
      %13 = vector.load %arg5[%c0_6, %c0_7] : memref<1x16xf32, #tpu.memory_space<vmem>>, vector<1x16xf32>
      %14 = vector.broadcast %12 : vector<16x1xf32> to vector<16x16xf32>
      %15 = vector.broadcast %13 : vector<1x16xf32> to vector<16x16xf32>
      %16 = arith.addf %14, %15 : vector<16x16xf32>
      %cst = arith.constant 0.000000e+00 : f32
      %17 = vector.broadcast %cst : f32 to vector<16x16xf32>
      %18 = arith.cmpf ogt, %16, %17 : vector<16x16xf32>
      %cst_8 = arith.constant 2.000000e-01 : f32
      %19 = vector.broadcast %cst_8 : f32 to vector<16x16xf32>
      %20 = arith.mulf %19, %16 : vector<16x16xf32>
      %21 = arith.select %18, %16, %20 : vector<16x16xi1>, vector<16x16xf32>
      %c0_9 = arith.constant 0 : index
      %c0_10 = arith.constant 0 : index
      %22 = vector.load %arg6[%c0_9, %c0_10] : memref<16x16xbf16, #tpu.memory_space<vmem>>, vector<16x16xbf16>
      %23 = arith.extf %22 : vector<16x16xbf16> to vector<16x16xf32>
      %24 = arith.addf %21, %23 : vector<16x16xf32>
      %c0_11 = arith.constant 0 : index
      %c0_12 = arith.constant 0 : index
      %25 = vector.load %arg8[%c0_11, %c0_12] : memref<16x1xf32, #tpu.memory_space<vmem>>, vector<16x1xf32>
      %cst_13 = arith.constant dense<0xFF800000> : vector<16xf32>
      %26 = vector.multi_reduction <maximumf>, %24, %cst_13 [1] : vector<16x16xf32> to vector<16xf32>
      %27 = vector.shape_cast %26 : vector<16xf32> to vector<16x1xf32>
      %28 = arith.maximumf %25, %27 : vector<16x1xf32>
      %29 = arith.subf %25, %28 : vector<16x1xf32>
      %30 = math.exp %29 : vector<16x1xf32>
      %31 = vector.broadcast %28 : vector<16x1xf32> to vector<16x16xf32>
      %32 = arith.subf %24, %31 : vector<16x16xf32>
      %33 = math.exp %32 : vector<16x16xf32>
      %c0_14 = arith.constant 0 : index
      %c0_15 = arith.constant 0 : index
      %34 = vector.load %arg9[%c0_14, %c0_15] : memref<16x1xf32, #tpu.memory_space<vmem>>, vector<16x1xf32>
      %35 = arith.mulf %30, %34 : vector<16x1xf32>
      %cst_16 = arith.constant dense<0.000000e+00> : vector<16xf32>
      %36 = vector.multi_reduction <add>, %33, %cst_16 [1] : vector<16x16xf32> to vector<16xf32>
      %37 = vector.shape_cast %36 : vector<16xf32> to vector<16x1xf32>
      %38 = arith.addf %35, %37 : vector<16x1xf32>
      %c0_17 = arith.constant 0 : index
      %c0_18 = arith.constant 0 : index
      %39 = vector.load %arg9[%c0_17, %c0_18] : memref<16x1xf32, #tpu.memory_space<vmem>>, vector<16x1xf32>
      tpu.vector_store %arg9[%c0_17, %c0_18], %38 {strides = array<i32>} : memref<16x1xf32, #tpu.memory_space<vmem>>, vector<16x1xf32>,
      %c0_19 = arith.constant 0 : index
      %c0_20 = arith.constant 0 : index
      %40 = vector.load %arg10[%c0_19, %c0_20] : memref<16x8xf32, #tpu.memory_space<vmem>>, vector<16x8xf32>
      %41 = vector.broadcast %30 : vector<16x1xf32> to vector<16x8xf32>
      %42 = arith.mulf %41, %40 : vector<16x8xf32>
      %43 = arith.truncf %33 : vector<16x16xf32> to vector<16x16xbf16>
      %c0_21 = arith.constant 0 : index
      %c0_22 = arith.constant 0 : index
      %44 = vector.load %arg3[%c0_21, %c0_22] : memref<16x8xbf16, #tpu.memory_space<vmem>>, vector<16x8xbf16>
      %cst_23 = arith.constant dense<0.000000e+00> : vector<16x8xf32>
      %45 = tpu.matmul %43, %44, %cst_23 {dimension_numbers = #tpu.dot_dimension_numbers<[1], [0], [0], [1], [0, 0, 1, 1], [], []>} : vector<16x16xbf16>, vector<16x8xbf16>, vector<16x8xf32> -> vector<16x8xf32>
      %46 = arith.addf %42, %45 : vector<16x8xf32>
      %c0_24 = arith.constant 0 : index
      %c0_25 = arith.constant 0 : index
      %47 = vector.load %arg10[%c0_24, %c0_25] : memref<16x8xf32, #tpu.memory_space<vmem>>, vector<16x8xf32>
      tpu.vector_store %arg10[%c0_24, %c0_25], %46 {strides = array<i32>} : memref<16x8xf32, #tpu.memory_space<vmem>>, vector<16x8xf32>,
      %c0_26 = arith.constant 0 : index
      %c0_27 = arith.constant 0 : index
      %48 = vector.load %arg8[%c0_26, %c0_27] : memref<16x1xf32, #tpu.memory_space<vmem>>, vector<16x1xf32>
      tpu.vector_store %arg8[%c0_26, %c0_27], %28 {strides = array<i32>} : memref<16x1xf32, #tpu.memory_space<vmem>>, vector<16x1xf32>,
    } else {
    }
    %c0_i32_3 = arith.constant 0 : i32
    %9 = arith.cmpi eq, %arg1, %c0_i32_3 : i32
    %10 = arith.extui %9 : i1 to i32
    %c0_i32_4 = arith.constant 0 : i32
    %11 = arith.cmpi ne, %10, %c0_i32_4 : i32
    scf.if %11 {
      %c0 = arith.constant 0 : index
      %c0_5 = arith.constant 0 : index
      %12 = vector.load %arg9[%c0, %c0_5] : memref<16x1xf32, #tpu.memory_space<vmem>>, vector<16x1xf32>
      %cst = arith.constant 0.000000e+00 : f32
      %13 = vector.broadcast %cst : f32 to vector<16x1xf32>
      %14 = arith.cmpf ogt, %12, %13 : vector<16x1xf32>
      %cst_6 = arith.constant 1.000000e+00 : f32
      %15 = vector.broadcast %cst_6 : f32 to vector<16x1xf32>
      %16 = arith.select %14, %12, %15 : vector<16x1xi1>, vector<16x1xf32>
      %c0_7 = arith.constant 0 : index
      %c0_8 = arith.constant 0 : index
      %17 = vector.load %arg10[%c0_7, %c0_8] : memref<16x8xf32, #tpu.memory_space<vmem>>, vector<16x8xf32>
      %18 = vector.broadcast %16 : vector<16x1xf32> to vector<16x8xf32>
      %19 = arith.divf %17, %18 : vector<16x8xf32>
      %cst_9 = arith.constant dense<0xFF800000> : vector<16xf32>
      %20 = vector.multi_reduction <maximumf>, %19, %cst_9 [1] : vector<16x8xf32> to vector<16xf32>
      %21 = vector.shape_cast %20 : vector<16xf32> to vector<16x1xf32>
      %22 = vector.broadcast %21 : vector<16x1xf32> to vector<16x8xf32>
      %23 = arith.subf %19, %22 : vector<16x8xf32>
      %24 = math.exp %23 : vector<16x8xf32>
      %cst_10 = arith.constant dense<0.000000e+00> : vector<16xf32>
      %25 = vector.multi_reduction <add>, %24, %cst_10 [1] : vector<16x8xf32> to vector<16xf32>
      %26 = vector.shape_cast %25 : vector<16xf32> to vector<16x1xf32>
      %27 = vector.broadcast %26 : vector<16x1xf32> to vector<16x8xf32>
      %28 = arith.divf %24, %27 : vector<16x8xf32>
      %c0_11 = arith.constant 0 : index
      %c0_12 = arith.constant 0 : index
      %29 = vector.load %arg7[%c0_11, %c0_12] : memref<16x8xf32, #tpu.memory_space<vmem>>, vector<16x8xf32>
      tpu.vector_store %arg7[%c0_11, %c0_12], %28 {strides = array<i32>} : memref<16x8xf32, #tpu.memory_space<vmem>>, vector<16x8xf32>,
    } else {
    }
    return
  }
  func.func @transform_0(%arg0: i32, %arg1: i32, %arg2: memref<1x1xi32, #tpu.memory_space<smem>>) -> (i32, i32) {
    %c0_i32 = arith.constant 0 : i32
    %c0_i32_0 = arith.constant 0 : i32
    return %arg1, %c0_i32 : i32, i32
  }
  func.func @transform_1(%arg0: i32, %arg1: i32, %arg2: memref<1x1xi32, #tpu.memory_space<smem>>) -> (i32, i32) {
    %c0_i32 = arith.constant 0 : i32
    %c0_i32_0 = arith.constant 0 : i32
    return %arg0, %c0_i32 : i32, i32
  }
  func.func @transform_2(%arg0: i32, %arg1: i32, %arg2: memref<1x1xi32, #tpu.memory_space<smem>>) -> (i32, i32) {
    %c0_i32 = arith.constant 0 : i32
    %c0_i32_0 = arith.constant 0 : i32
    return %c0_i32, %arg1 : i32, i32
  }
  func.func @transform_3(%arg0: i32, %arg1: i32, %arg2: memref<1x1xi32, #tpu.memory_space<smem>>) -> (i32, i32) {
    %c0_i32 = arith.constant 0 : i32
    return %arg0, %arg1 : i32, i32
  }
  func.func @transform_4(%arg0: i32, %arg1: i32, %arg2: memref<1x1xi32, #tpu.memory_space<smem>>) -> (i32, i32) {
    %c0_i32 = arith.constant 0 : i32
    %c0_i32_0 = arith.constant 0 : i32
    return %arg0, %c0_i32 : i32, i32
  }
}

</mosaic_0001>

<llo_original>
// kernel: model_gat_forward.15
$region0: #{model_gat_forward.15}
  #allocation0 [shape = 'u32[]', space=smem, size = 0x4, offset = 0x4, fixed_abs, tag = 'smem constant byte address 0x4 - core index']
  #allocation1 [shape = 'u32[72,128]{1,0:T(1,128)}', space=vmem, size = 0x9000, scoped, tag = 'internal scratch']
  %s0 = inlined_call_operand.vmem [shape: f32[16,32], index: 0, kind: input, shape index: {}]
  %s1 = inlined_call_operand.vmem [shape: f32[32,64], index: 1, kind: input, shape index: {}]
  %s2 = inlined_call_operand.vmem [shape: f32[1,64], index: 2, kind: input, shape index: {}]
  %s3 = inlined_call_operand.vmem [shape: f32[1,64], index: 3, kind: input, shape index: {}]
  %s4 = inlined_call_operand.vmem [shape: bf16[16,64], index: 4, kind: output, shape index: {0}]
  %s5 = inlined_call_operand.vmem [shape: f32[16,1], index: 5, kind: output, shape index: {1}]
  %s6 = inlined_call_operand.vmem [shape: f32[16,1], index: 6, kind: output, shape index: {2}]
  %7 = xla_tuple %s4, %s5, %s6
  %s8 = sld [smem:[#allocation0]]
  $region42: #{model_gat_forward.15} parent=0
    _
  %s10 = ssub.s32 1, %s8
  %s11 = scalar_select 0, %s10, %s8
  // Predicated region
  $region2: #{model_gat_forward.15} parent=0 // pred_check
    _
  $region3: #{model_gat_forward.15} parent=0 // pred_check_branch
    %13 = sbr.rel (0) target = $region5
  $region4: #{model_gat_forward.15} parent=0 // pred_region
    _
  $region5: #{model_gat_forward.15} parent=0 // pred_fallthru
    _
  // Predicated region
  $region6: #{model_gat_forward.15} parent=0 // pred_check
    _
  $region7: #{model_gat_forward.15} parent=0 // pred_check_branch
    %15 = sbr.rel (0) target = $region9
  $region8: #{model_gat_forward.15} parent=0 // pred_region
    _
  $region9: #{model_gat_forward.15} parent=0 // pred_fallthru
    _
  // Predicated region
  $region10: #{model_gat_forward.15} parent=0 // pred_check
    _
  $region11: #{model_gat_forward.15} parent=0 // pred_check_branch
    %17 = sbr.rel (0) target = $region13
  $region12: #{model_gat_forward.15} parent=0 // pred_region
    _
  $region13: #{model_gat_forward.15} parent=0 // pred_fallthru
    _
  // Predicated region
  $region14: #{model_gat_forward.15} parent=0 // pred_check
    _
  $region15: #{model_gat_forward.15} parent=0 // pred_check_branch
    %19 = sbr.rel (0) target = $region17
  $region16: #{model_gat_forward.15} parent=0 // pred_region
    _
  $region17: #{model_gat_forward.15} parent=0 // pred_fallthru
    _
  %v21 = vld [vmem:[%s0] sm:$0xff]
  %v22 = vld [vmem:[%s0 + $0x8] sm:$0xff]
  %v23 = vpack.c.bf16 %v22, %v21
  %v24 = vld [vmem:[%s1] sm:$0xff]
  %v25 = vld [vmem:[%s1 + $0x8] sm:$0xff]
  %v26 = vld [vmem:[%s1 + $0x10] sm:$0xff]
  %v27 = vld [vmem:[%s1 + $0x18] sm:$0xff]
  %v28 = vpack.c.bf16 %v25, %v24
  %v29 = vpack.c.bf16 %v27, %v26
  %vm30 = vcmask 261120
  %v32 = vsel %vm30, %v23, 0
  %34 = vmatpush.bf16.msra.mxu0 0
  %35 = vmatpush.bf16.msra.mxu0 0
  %36 = vmatpush.bf16.msra.mxu0 0
  %37 = vmatpush.bf16.msra.mxu0 0
  %38 = vmatpush.bf16.msra.mxu0 0
  %39 = vmatpush.bf16.msra.mxu0 0
  %40 = vmatpush.bf16.msra.mxu0 %v29
  %41 = vmatpush.bf16.msra.mxu0 %v28
  %42 = vmatmul.bf16.gmra.mxu0 %v32
  %v43 = vpop.f32.mrf.mxu0
  %v44 = vadd.f32 0.0, %v43
  %v45 = vpop.f32.mrf.mxu0
  %v46 = vadd.f32 0.0, %v45
  %47 = vdwg.mxu0
  %v48 = vpack.c.bf16 %v44, %v44
  %v49 = vpack.c.bf16 %v46, %v46
  %vm50 = vcmask 519168
  %51 = vst.msk [vmem:[%s4] sm:$0xf] %vm50, %v48
  %52 = vst.msk [vmem:[%s4 + $0x4] sm:$0xf] %vm50, %v49
  %v53 = vld [vmem:[%s2] sm:$0x1]
  %v55 = vperm.slane %v53, 0
  %v57 = vmul.f32 %v44, %v55
  %v58 = vmul.f32 %v46, %v55
  %vm59 = vcmask 523264
  %v60 = vsel %vm59, %v57, 0.0
  %61 = vadd.xlane.f32.xlu0 %v60
  %v62 = vpop.xlane.xlu0 %61
  %v63 = vsel %vm59, %v58, 0.0
  %64 = vadd.xlane.f32.xlu0 %v63
  %v65 = vpop.xlane.xlu0 %64
  %vm66 = vcmask 7168
  %67 = vst.msk [vmem:[%s5] sm:$0xff] %vm66, %v62
  %68 = vst.msk [vmem:[%s5 + $0x8] sm:$0xff] %vm66, %v65
  %v69 = vld [vmem:[%s3] sm:$0x1]
  %v71 = vperm.slane %v69, 0
  %v73 = vmul.f32 %v44, %v71
  %v74 = vmul.f32 %v46, %v71
  %v75 = vsel %vm59, %v73, 0.0
  %76 = vadd.xlane.f32.xlu0 %v75
  %v77 = vpop.xlane.xlu0 %76
  %v78 = vsel %vm59, %v74, 0.0
  %79 = vadd.xlane.f32.xlu0 %v78
  %v80 = vpop.xlane.xlu0 %79
  %81 = vst.msk [vmem:[%s6] sm:$0xff] %vm66, %v77
  %82 = vst.msk [vmem:[%s6 + $0x8] sm:$0xff] %vm66, %v80
  // Predicated region
  $region18: #{model_gat_forward.15} parent=0 // pred_check
    _
  $region19: #{model_gat_forward.15} parent=0 // pred_check_branch
    %84 = sbr.rel (0) target = $region21
  $region20: #{model_gat_forward.15} parent=0 // pred_region
    _
  $region21: #{model_gat_forward.15} parent=0 // pred_fallthru
    _
  // Predicated region
  $region22: #{model_gat_forward.15} parent=0 // pred_check
    _
  $region23: #{model_gat_forward.15} parent=0 // pred_check_branch
    %86 = sbr.rel (0) target = $region25
  $region24: #{model_gat_forward.15} parent=0 // pred_region
    _
  $region25: #{model_gat_forward.15} parent=0 // pred_fallthru
    _
  // Predicated region
  $region26: #{model_gat_forward.15} parent=0 // pred_check
    _
  $region27: #{model_gat_forward.15} parent=0 // pred_check_branch
    %88 = sbr.rel (0) target = $region29
  $region28: #{model_gat_forward.15} parent=0 // pred_region
    _
  $region29: #{model_gat_forward.15} parent=0 // pred_fallthru
    _
  // Predicated region
  $region30: #{model_gat_forward.15} parent=0 // pred_check
    _
  $region31: #{model_gat_forward.15} parent=0 // pred_check_branch
    %90 = sbr.rel (0) target = $region33
  $region32: #{model_gat_forward.15} parent=0 // pred_region
    _
  $region33: #{model_gat_forward.15} parent=0 // pred_fallthru
    _
  // Predicated region
  $region34: #{model_gat_forward.15} parent=0 // pred_check
    _
  $region35: #{model_gat_forward.15} parent=0 // pred_check_branch
    %92 = sbr.rel (0) target = $region37
  $region36: #{model_gat_forward.15} parent=0 // pred_region
    _
  $region37: #{model_gat_forward.15} parent=0 // pred_fallthru
    _
  // Predicated region
  $region38: #{model_gat_forward.15} parent=0 // pred_check
    _
  $region39: #{model_gat_forward.15} parent=0 // pred_check_branch
    %94 = sbr.rel (0) target = $region41
  $region40: #{model_gat_forward.15} parent=0 // pred_region
    _
  $region41: #{model_gat_forward.15} parent=0 // pred_fallthru
    _

// kernel: model_gat_forward.17
$region0: #{model_gat_forward.17}
  #allocation0 [shape = 'u32[]', space=smem, size = 0x4, offset = 0x4, fixed_abs, tag = 'smem constant byte address 0x4 - core index']
  #allocation1 [shape = 'u32[72,128]{1,0:T(1,128)}', space=vmem, size = 0x9000, scoped, tag = 'internal scratch']
  %s0 = inlined_call_operand.vmem [shape: bf16[16,64], index: 0, kind: input, shape index: {}]
  %s1 = inlined_call_operand.vmem [shape: bf16[16,64], index: 1, kind: input, shape index: {}]
  %s2 = inlined_call_operand.vmem [shape: f32[64,64], index: 2, kind: input, shape index: {}]
  %s3 = inlined_call_operand.vmem [shape: f32[1,64], index: 3, kind: input, shape index: {}]
  %s4 = inlined_call_operand.vmem [shape: f32[1,64], index: 4, kind: input, shape index: {}]
  %s5 = inlined_call_operand.vmem [shape: bf16[16,64], index: 5, kind: output, shape index: {0}]
  %s6 = inlined_call_operand.vmem [shape: f32[16,1], index: 6, kind: output, shape index: {1}]
  %s7 = inlined_call_operand.vmem [shape: f32[16,1], index: 7, kind: output, shape index: {2}]
  %8 = xla_tuple %s5, %s6, %s7
  %s9 = sld [smem:[#allocation0]]
  $region46: #{model_gat_forward.17} parent=0
    _
  %s11 = ssub.s32 1, %s9
  %s12 = scalar_select 0, %s11, %s9
  // Predicated region
  $region2: #{model_gat_forward.17} parent=0 // pred_check
    _
  $region3: #{model_gat_forward.17} parent=0 // pred_check_branch
    %14 = sbr.rel (0) target = $region5
  $region4: #{model_gat_forward.17} parent=0 // pred_region
    _
  $region5: #{model_gat_forward.17} parent=0 // pred_fallthru
    _
  // Predicated region
  $region6: #{model_gat_forward.17} parent=0 // pred_check
    _
  $region7: #{model_gat_forward.17} parent=0 // pred_check_branch
    %16 = sbr.rel (0) target = $region9
  $region8: #{model_gat_forward.17} parent=0 // pred_region
    _
  $region9: #{model_gat_forward.17} parent=0 // pred_fallthru
    _
  // Predicated region
  $region10: #{model_gat_forward.17} parent=0 // pred_check
    _
  $region11: #{model_gat_forward.17} parent=0 // pred_check_branch
    %18 = sbr.rel (0) target = $region13
  $region12: #{model_gat_forward.17} parent=0 // pred_region
    _
  $region13: #{model_gat_forward.17} parent=0 // pred_fallthru
    _
  // Predicated region
  $region14: #{model_gat_forward.17} parent=0 // pred_check
    _
  $region15: #{model_gat_forward.17} parent=0 // pred_check_branch
    %20 = sbr.rel (0) target = $region17
  $region16: #{model_gat_forward.17} parent=0 // pred_region
    _
  $region17: #{model_gat_forward.17} parent=0 // pred_fallthru
    _
  // Predicated region
  $region18: #{model_gat_forward.17} parent=0 // pred_check
    _
  $region19: #{model_gat_forward.17} parent=0 // pred_check_branch
    %22 = sbr.rel (0) target = $region21
  $region20: #{model_gat_forward.17} parent=0 // pred_region
    _
  $region21: #{model_gat_forward.17} parent=0 // pred_fallthru
    _
  %v24 = vld [vmem:[%s0] sm:$0xf]
  %v25 = vld [vmem:[%s0 + $0x4] sm:$0xf]
  %v26 = vunpack.c.l.bf16 %v24
  %v27 = vunpack.c.l.bf16 %v25
  %v28 = vmul.f32 %v26, 0.5
  %v29 = vmul.f32 %v27, 0.5
  %v30 = vld [vmem:[%s1] sm:$0xf]
  %v31 = vld [vmem:[%s1 + $0x4] sm:$0xf]
  %v32 = vunpack.c.l.bf16 %v30
  %v33 = vunpack.c.l.bf16 %v31
  %v34 = vmul.f32 %v32, 0.5
  %v35 = vmul.f32 %v33, 0.5
  %v36 = vadd.f32 %v28, %v34
  %v37 = vadd.f32 %v29, %v35
  %v38 = vpack.c.bf16 %v37, %v36
  %v39 = vld [vmem:[%s2] sm:$0xff]
  %v40 = vld [vmem:[%s2 + $0x8] sm:$0xff]
  %v41 = vld [vmem:[%s2 + $0x10] sm:$0xff]
  %v42 = vld [vmem:[%s2 + $0x18] sm:$0xff]
  %v43 = vld [vmem:[%s2 + $0x20] sm:$0xff]
  %v44 = vld [vmem:[%s2 + $0x28] sm:$0xff]
  %v45 = vld [vmem:[%s2 + $0x30] sm:$0xff]
  %v46 = vld [vmem:[%s2 + $0x38] sm:$0xff]
  %v47 = vpack.c.bf16 %v40, %v39
  %v48 = vpack.c.bf16 %v42, %v41
  %v49 = vpack.c.bf16 %v44, %v43
  %v50 = vpack.c.bf16 %v46, %v45
  %vm51 = vcmask 523264
  %v53 = vsel %vm51, %v38, 0
  %55 = vmatpush.bf16.msra.mxu0 0
  %56 = vmatpush.bf16.msra.mxu0 0
  %57 = vmatpush.bf16.msra.mxu0 0
  %58 = vmatpush.bf16.msra.mxu0 0
  %59 = vmatpush.bf16.msra.mxu0 %v50
  %60 = vmatpush.bf16.msra.mxu0 %v49
  %61 = vmatpush.bf16.msra.mxu0 %v48
  %62 = vmatpush.bf16.msra.mxu0 %v47
  %63 = vmatmul.bf16.gmra.mxu0 %v53
  %v64 = vpop.f32.mrf.mxu0
  %v65 = vadd.f32 0.0, %v64
  %v66 = vpop.f32.mrf.mxu0
  %v67 = vadd.f32 0.0, %v66
  %68 = vdwg.mxu0
  %v69 = vpack.c.bf16 %v65, %v65
  %v70 = vpack.c.bf16 %v67, %v67
  %vm71 = vcmask 519168
  %72 = vst.msk [vmem:[%s5] sm:$0xf] %vm71, %v69
  %73 = vst.msk [vmem:[%s5 + $0x4] sm:$0xf] %vm71, %v70
  %v74 = vld [vmem:[%s3] sm:$0x1]
  %v76 = vperm.slane %v74, 0
  %v78 = vmul.f32 %v65, %v76
  %v79 = vmul.f32 %v67, %v76
  %v80 = vsel %vm51, %v78, 0.0
  %81 = vadd.xlane.f32.xlu0 %v80
  %v82 = vpop.xlane.xlu0 %81
  %v83 = vsel %vm51, %v79, 0.0
  %84 = vadd.xlane.f32.xlu0 %v83
  %v85 = vpop.xlane.xlu0 %84
  %vm86 = vcmask 7168
  %87 = vst.msk [vmem:[%s6] sm:$0xff] %vm86, %v82
  %88 = vst.msk [vmem:[%s6 + $0x8] sm:$0xff] %vm86, %v85
  %v89 = vld [vmem:[%s4] sm:$0x1]
  %v91 = vperm.slane %v89, 0
  %v93 = vmul.f32 %v65, %v91
  %v94 = vmul.f32 %v67, %v91
  %v95 = vsel %vm51, %v93, 0.0
  %96 = vadd.xlane.f32.xlu0 %v95
  %v97 = vpop.xlane.xlu0 %96
  %v98 = vsel %vm51, %v94, 0.0
  %99 = vadd.xlane.f32.xlu0 %v98
  %v100 = vpop.xlane.xlu0 %99
  %101 = vst.msk [vmem:[%s7] sm:$0xff] %vm86, %v97
  %102 = vst.msk [vmem:[%s7 + $0x8] sm:$0xff] %vm86, %v100
  // Predicated region
  $region22: #{model_gat_forward.17} parent=0 // pred_check
    _
  $region23: #{model_gat_forward.17} parent=0 // pred_check_branch
    %104 = sbr.rel (0) target = $region25
  $region24: #{model_gat_forward.17} parent=0 // pred_region
    _
  $region25: #{model_gat_forward.17} parent=0 // pred_fallthru
    _
  // Predicated region
  $region26: #{model_gat_forward.17} parent=0 // pred_check
    _
  $region27: #{model_gat_forward.17} parent=0 // pred_check_branch
    %106 = sbr.rel (0) target = $region29
  $region28: #{model_gat_forward.17} parent=0 // pred_region
    _
  $region29: #{model_gat_forward.17} parent=0 // pred_fallthru
    _
  // Predicated region
  $region30: #{model_gat_forward.17} parent=0 // pred_check
    _
  $region31: #{model_gat_forward.17} parent=0 // pred_check_branch
    %108 = sbr.rel (0) target = $region33
  $region32: #{model_gat_forward.17} parent=0 // pred_region
    _
  $region33: #{model_gat_forward.17} parent=0 // pred_fallthru
    _
  // Predicated region
  $region34: #{model_gat_forward.17} parent=0 // pred_check
    _
  $region35: #{model_gat_forward.17} parent=0 // pred_check_branch
    %110 = sbr.rel (0) target = $region37
  $region36: #{model_gat_forward.17} parent=0 // pred_region
    _
  $region37: #{model_gat_forward.17} parent=0 // pred_fallthru
    _
  // Predicated region
  $region38: #{model_gat_forward.17} parent=0 // pred_check
    _
  $region39: #{model_gat_forward.17} parent=0 // pred_check_branch
    %112 = sbr.rel (0) target = $region41
  $region40: #{model_gat_forward.17} parent=0 // pred_region
    _
  $region41: #{model_gat_forward.17} parent=0 // pred_fallthru
    _
  // Predicated region
  $region42: #{model_gat_forward.17} parent=0 // pred_check
    _
  $region43: #{model_gat_forward.17} parent=0 // pred_check_branch
    %114 = sbr.rel (0) target = $region45
  $region44: #{model_gat_forward.17} parent=0 // pred_region
    _
  $region45: #{model_gat_forward.17} parent=0 // pred_fallthru
    _

// kernel: model_gat_forward.13
$region0: #{model_gat_forward.13}
  #allocation0 [shape = 'u32[]', space=smem, size = 0x4, offset = 0x4, fixed_abs, tag = 'smem constant byte address 0x4 - core index']
  #allocation1 [shape = 'u32[72,128]{1,0:T(1,128)}', space=vmem, size = 0x9000, scoped, tag = 'internal scratch']
  %s0 = inlined_call_operand.vmem [shape: f32[16,32], index: 0, kind: input, shape index: {}]
  %s1 = inlined_call_operand.vmem [shape: f32[32,64], index: 1, kind: input, shape index: {}]
  %s2 = inlined_call_operand.vmem [shape: f32[1,64], index: 2, kind: input, shape index: {}]
  %s3 = inlined_call_operand.vmem [shape: f32[64,64], index: 3, kind: input, shape index: {}]
  %s4 = inlined_call_operand.vmem [shape: f32[1,64], index: 4, kind: input, shape index: {}]
  %s5 = inlined_call_operand.vmem [shape: f32[64,32], index: 5, kind: input, shape index: {}]
  %s6 = inlined_call_operand.vmem [shape: f32[1,32], index: 6, kind: input, shape index: {}]
  %s7 = inlined_call_operand.vmem [shape: f32[32,16], index: 7, kind: input, shape index: {}]
  %s8 = inlined_call_operand.vmem [shape: f32[1,16], index: 8, kind: input, shape index: {}]
  %s9 = inlined_call_operand.vmem [shape: bf16[16,64], index: 9, kind: output, shape index: {0}]
  %s10 = inlined_call_operand.vmem [shape: bf16[16,64], index: 10, kind: output, shape index: {1}]
  %s11 = inlined_call_operand.vmem [shape: bf16[16,32], index: 11, kind: output, shape index: {2}]
  %s12 = inlined_call_operand.vmem [shape: f32[16,16], index: 12, kind: output, shape index: {3}]
  %13 = xla_tuple %s9, %s10, %s11, %s12
  %s14 = sld [smem:[#allocation0]]
  $region70: #{model_gat_forward.13} parent=0
    _
  %s16 = ssub.s32 1, %s14
  %s17 = scalar_select 0, %s16, %s14
  // Predicated region
  $region2: #{model_gat_forward.13} parent=0 // pred_check
    _
  $region3: #{model_gat_forward.13} parent=0 // pred_check_branch
    %19 = sbr.rel (0) target = $region5
  $region4: #{model_gat_forward.13} parent=0 // pred_region
    _
  $region5: #{model_gat_forward.13} parent=0 // pred_fallthru
    _
  // Predicated region
  $region6: #{model_gat_forward.13} parent=0 // pred_check
    _
  $region7: #{model_gat_forward.13} parent=0 // pred_check_branch
    %21 = sbr.rel (0) target = $region9
  $region8: #{model_gat_forward.13} parent=0 // pred_region
    _
  $region9: #{model_gat_forward.13} parent=0 // pred_fallthru
    _
  // Predicated region
  $region10: #{model_gat_forward.13} parent=0 // pred_check
    _
  $region11: #{model_gat_forward.13} parent=0 // pred_check_branch
    %23 = sbr.rel (0) target = $region13
  $region12: #{model_gat_forward.13} parent=0 // pred_region
    _
  $region13: #{model_gat_forward.13} parent=0 // pred_fallthru
    _
  // Predicated region
  $region14: #{model_gat_forward.13} parent=0 // pred_check
    _
  $region15: #{model_gat_forward.13} parent=0 // pred_check_branch
    %25 = sbr.rel (0) target = $region17
  $region16: #{model_gat_forward.13} parent=0 // pred_region
    _
  $region17: #{model_gat_forward.13} parent=0 // pred_fallthru
    _
  // Predicated region
  $region18: #{model_gat_forward.13} parent=0 // pred_check
    _
  $region19: #{model_gat_forward.13} parent=0 // pred_check_branch
    %27 = sbr.rel (0) target = $region21
  $region20: #{model_gat_forward.13} parent=0 // pred_region
    _
  $region21: #{model_gat_forward.13} parent=0 // pred_fallthru
    _
  // Predicated region
  $region22: #{model_gat_forward.13} parent=0 // pred_check
    _
  $region23: #{model_gat_forward.13} parent=0 // pred_check_branch
    %29 = sbr.rel (0) target = $region25
  $region24: #{model_gat_forward.13} parent=0 // pred_region
    _
  $region25: #{model_gat_forward.13} parent=0 // pred_fallthru
    _
  // Predicated region
  $region26: #{model_gat_forward.13} parent=0 // pred_check
    _
  $region27: #{model_gat_forward.13} parent=0 // pred_check_branch
    %31 = sbr.rel (0) target = $region29
  $region28: #{model_gat_forward.13} parent=0 // pred_region
    _
  $region29: #{model_gat_forward.13} parent=0 // pred_fallthru
    _
  // Predicated region
  $region30: #{model_gat_forward.13} parent=0 // pred_check
    _
  $region31: #{model_gat_forward.13} parent=0 // pred_check_branch
    %33 = sbr.rel (0) target = $region33
  $region32: #{model_gat_forward.13} parent=0 // pred_region
    _
  $region33: #{model_gat_forward.13} parent=0 // pred_fallthru
    _
  // Predicated region
  $region34: #{model_gat_forward.13} parent=0 // pred_check
    _
  $region35: #{model_gat_forward.13} parent=0 // pred_check_branch
    %35 = sbr.rel (0) target = $region37
  $region36: #{model_gat_forward.13} parent=0 // pred_region
    _
  $region37: #{model_gat_forward.13} parent=0 // pred_fallthru
    _
  %v37 = vld [vmem:[%s0] sm:$0xff]
  %v38 = vld [vmem:[%s0 + $0x8] sm:$0xff]
  %v39 = vpack.c.bf16 %v38, %v37
  %v40 = vld [vmem:[%s1] sm:$0xff]
  %v41 = vld [vmem:[%s1 + $0x8] sm:$0xff]
  %v42 = vld [vmem:[%s1 + $0x10] sm:$0xff]
  %v43 = vld [vmem:[%s1 + $0x18] sm:$0xff]
  %v44 = vpack.c.bf16 %v41, %v40
  %v45 = vpack.c.bf16 %v43, %v42
  %v46 = vld [vmem:[%s2] sm:$0x1]
  %v48 = vperm.slane %v46, 0
  %vm50 = vcmask 261120
  %v52 = vsel %vm50, %v39, 0
  %54 = vmatpush.bf16.msra.mxu0 0
  %55 = vmatpush.bf16.msra.mxu0 0
  %56 = vmatpush.bf16.msra.mxu0 0
  %57 = vmatpush.bf16.msra.mxu0 0
  %58 = vmatpush.bf16.msra.mxu0 0
  %59 = vmatpush.bf16.msra.mxu0 0
  %60 = vmatpush.bf16.msra.mxu0 %v45
  %61 = vmatpush.bf16.msra.mxu0 %v44
  %62 = vmatmul.bf16.gmra.mxu0 %v52
  %v63 = vpop.f32.mrf.mxu0
  %v64 = vadd.f32 %v48, %v63
  %v65 = vpop.f32.mrf.mxu0
  %v66 = vadd.f32 %v48, %v65
  %67 = vdwg.mxu0
  %v68 = vmax.f32 %v64, 0.0
  %v69 = vmax.f32 %v66, 0.0
  %v70 = vpack.c.bf16 %v68, %v68
  %v71 = vpack.c.bf16 %v69, %v69
  %v72 = vld [vmem:[%s3] sm:$0xff]
  %v73 = vld [vmem:[%s3 + $0x8] sm:$0xff]
  %v74 = vld [vmem:[%s3 + $0x10] sm:$0xff]
  %v75 = vld [vmem:[%s3 + $0x18] sm:$0xff]
  %v76 = vld [vmem:[%s3 + $0x20] sm:$0xff]
  %v77 = vld [vmem:[%s3 + $0x28] sm:$0xff]
  %v78 = vld [vmem:[%s3 + $0x30] sm:$0xff]
  %v79 = vld [vmem:[%s3 + $0x38] sm:$0xff]
  %v80 = vpack.c.bf16 %v73, %v72
  %v81 = vpack.c.bf16 %v75, %v74
  %v82 = vpack.c.bf16 %v77, %v76
  %v83 = vpack.c.bf16 %v79, %v78
  %v84 = vld [vmem:[%s4] sm:$0x1]
  %v86 = vperm.slane %v84, 0
  %v90 = vunpack.c.l.b16 %v70
  %v91 = vunpack.c.l.b16 %v71
  %v92 = vpack.c.b16 %v91, %v90
  %vm93 = vcmask 523264
  %v95 = vsel %vm93, %v92, 0
  %97 = vmatpush.bf16.msra.mxu0 0
  %98 = vmatpush.bf16.msra.mxu0 0
  %99 = vmatpush.bf16.msra.mxu0 0
  %100 = vmatpush.bf16.msra.mxu0 0
  %101 = vmatpush.bf16.msra.mxu0 %v83
  %102 = vmatpush.bf16.msra.mxu0 %v82
  %103 = vmatpush.bf16.msra.mxu0 %v81
  %104 = vmatpush.bf16.msra.mxu0 %v80
  %105 = vmatmul.bf16.gmra.mxu0 %v95
  %v106 = vpop.f32.mrf.mxu0
  %v107 = vadd.f32 %v86, %v106
  %v108 = vpop.f32.mrf.mxu0
  %v109 = vadd.f32 %v86, %v108
  %110 = vdwg.mxu0
  %v111 = vmax.f32 %v107, 0.0
  %v112 = vmax.f32 %v109, 0.0
  %v113 = vpack.c.bf16 %v111, %v111
  %v114 = vpack.c.bf16 %v112, %v112
  %v115 = vld [vmem:[%s5] sm:$0xff]
  %v116 = vld [vmem:[%s5 + $0x8] sm:$0xff]
  %v117 = vld [vmem:[%s5 + $0x10] sm:$0xff]
  %v118 = vld [vmem:[%s5 + $0x18] sm:$0xff]
  %v119 = vld [vmem:[%s5 + $0x20] sm:$0xff]
  %v120 = vld [vmem:[%s5 + $0x28] sm:$0xff]
  %v121 = vld [vmem:[%s5 + $0x30] sm:$0xff]
  %v122 = vld [vmem:[%s5 + $0x38] sm:$0xff]
  %v123 = vpack.c.bf16 %v116, %v115
  %v124 = vpack.c.bf16 %v118, %v117
  %v125 = vpack.c.bf16 %v120, %v119
  %v126 = vpack.c.bf16 %v122, %v121
  %v127 = vld [vmem:[%s6] sm:$0x1]
  %v129 = vperm.slane %v127, 0
  %v133 = vunpack.c.l.b16 %v113
  %v134 = vunpack.c.l.b16 %v114
  %v135 = vpack.c.b16 %v134, %v133
  %v137 = vsel %vm93, %v135, 0
  %139 = vmatpush.bf16.msra.mxu0 0
  %140 = vmatpush.bf16.msra.mxu0 0
  %141 = vmatpush.bf16.msra.mxu0 0
  %142 = vmatpush.bf16.msra.mxu0 0
  %143 = vmatpush.bf16.msra.mxu0 %v126
  %144 = vmatpush.bf16.msra.mxu0 %v125
  %145 = vmatpush.bf16.msra.mxu0 %v124
  %146 = vmatpush.bf16.msra.mxu0 %v123
  %147 = vmatmul.bf16.gmra.mxu0 %v137
  %v148 = vpop.f32.mrf.mxu0
  %v149 = vadd.f32 %v129, %v148
  %v150 = vpop.f32.mrf.mxu0
  %v151 = vadd.f32 %v129, %v150
  %152 = vdwg.mxu0
  %v153 = vmax.f32 %v149, 0.0
  %v154 = vmax.f32 %v151, 0.0
  %v155 = vpack.c.bf16 %v153, %v153
  %v156 = vpack.c.bf16 %v154, %v154
  %v157 = vld [vmem:[%s7] sm:$0xff]
  %v158 = vld [vmem:[%s7 + $0x8] sm:$0xff]
  %v159 = vld [vmem:[%s7 + $0x10] sm:$0xff]
  %v160 = vld [vmem:[%s7 + $0x18] sm:$0xff]
  %v161 = vpack.c.bf16 %v158, %v157
  %v162 = vpack.c.bf16 %v160, %v159
  %v163 = vld [vmem:[%s8] sm:$0x1]
  %v165 = vperm.slane %v163, 0
  %v169 = vunpack.c.l.b16 %v155
  %v170 = vunpack.c.l.b16 %v156
  %v171 = vpack.c.b16 %v170, %v169
  %v173 = vsel %vm50, %v171, 0
  %175 = vmatpush.bf16.msra.mxu0 0
  %176 = vmatpush.bf16.msra.mxu0 0
  %177 = vmatpush.bf16.msra.mxu0 0
  %178 = vmatpush.bf16.msra.mxu0 0
  %179 = vmatpush.bf16.msra.mxu0 0
  %180 = vmatpush.bf16.msra.mxu0 0
  %181 = vmatpush.bf16.msra.mxu0 %v162
  %182 = vmatpush.bf16.msra.mxu0 %v161
  %183 = vmatmul.bf16.gmra.mxu0 %v173
  %v184 = vpop.f32.mrf.mxu0
  %v185 = vadd.f32 %v165, %v184
  %v186 = vpop.f32.mrf.mxu0
  %v187 = vadd.f32 %v165, %v186
  %188 = vdwg.mxu0
  %vm189 = vcmask 519168
  %190 = vst.msk [vmem:[%s9] sm:$0xf] %vm189, %v70
  %191 = vst.msk [vmem:[%s9 + $0x4] sm:$0xf] %vm189, %v71
  %192 = vst.msk [vmem:[%s10] sm:$0xf] %vm189, %v113
  %193 = vst.msk [vmem:[%s10 + $0x4] sm:$0xf] %vm189, %v114
  %vm194 = vcmask 257024
  %195 = vst.msk [vmem:[%s11] sm:$0xf] %vm194, %v155
  %196 = vst.msk [vmem:[%s11 + $0x4] sm:$0xf] %vm194, %v156
  %vm197 = vcmask 130048
  %198 = vst.msk [vmem:[%s12] sm:$0xff] %vm197, %v185
  %199 = vst.msk [vmem:[%s12 + $0x8] sm:$0xff] %vm197, %v187
  // Predicated region
  $region38: #{model_gat_forward.13} parent=0 // pred_check
    _
  $region39: #{model_gat_forward.13} parent=0 // pred_check_branch
    %201 = sbr.rel (0) target = $region41
  $region40: #{model_gat_forward.13} parent=0 // pred_region
    _
  $region41: #{model_gat_forward.13} parent=0 // pred_fallthru
    _
  // Predicated region
  $region42: #{model_gat_forward.13} parent=0 // pred_check
    _
  $region43: #{model_gat_forward.13} parent=0 // pred_check_branch
    %203 = sbr.rel (0) target = $region45
  $region44: #{model_gat_forward.13} parent=0 // pred_region
    _
  $region45: #{model_gat_forward.13} parent=0 // pred_fallthru
    _
  // Predicated region
  $region46: #{model_gat_forward.13} parent=0 // pred_check
    _
  $region47: #{model_gat_forward.13} parent=0 // pred_check_branch
    %205 = sbr.rel (0) target = $region49
  $region48: #{model_gat_forward.13} parent=0 // pred_region
    _
  $region49: #{model_gat_forward.13} parent=0 // pred_fallthru
    _
  // Predicated region
  $region50: #{model_gat_forward.13} parent=0 // pred_check
    _
  $region51: #{model_gat_forward.13} parent=0 // pred_check_branch
    %207 = sbr.rel (0) target = $region53
  $region52: #{model_gat_forward.13} parent=0 // pred_region
    _
  $region53: #{model_gat_forward.13} parent=0 // pred_fallthru
    _
  // Predicated region
  $region54: #{model_gat_forward.13} parent=0 // pred_check
    _
  $region55: #{model_gat_forward.13} parent=0 // pred_check_branch
    %209 = sbr.rel (0) target = $region57
  $region56: #{model_gat_forward.13} parent=0 // pred_region
    _
  $region57: #{model_gat_forward.13} parent=0 // pred_fallthru
    _
  // Predicated region
  $region58: #{model_gat_forward.13} parent=0 // pred_check
    _
  $region59: #{model_gat_forward.13} parent=0 // pred_check_branch
    %211 = sbr.rel (0) target = $region61
  $region60: #{model_gat_forward.13} parent=0 // pred_region
    _
  $region61: #{model_gat_forward.13} parent=0 // pred_fallthru
    _
  // Predicated region
  $region62: #{model_gat_forward.13} parent=0 // pred_check
    _
  $region63: #{model_gat_forward.13} parent=0 // pred_check_branch
    %213 = sbr.rel (0) target = $region65
  $region64: #{model_gat_forward.13} parent=0 // pred_region
    _
  $region65: #{model_gat_forward.13} parent=0 // pred_fallthru
    _
  // Predicated region
  $region66: #{model_gat_forward.13} parent=0 // pred_check
    _
  $region67: #{model_gat_forward.13} parent=0 // pred_check_branch
    %215 = sbr.rel (0) target = $region69
  $region68: #{model_gat_forward.13} parent=0 // pred_region
    _
  $region69: #{model_gat_forward.13} parent=0 // pred_fallthru
    _

// kernel: model_gat_forward.16
$region0: #{model_gat_forward.16}
  #allocation0 [shape = 'u32[]', space=smem, size = 0x4, offset = 0x4, fixed_abs, tag = 'smem constant byte address 0x4 - core index']
  #allocation1 [shape = 'u32[72,128]{1,0:T(1,128)}', space=vmem, size = 0x9000, scoped, tag = 'internal scratch']
  #allocation2 [shape = 'f32[16,1]{1,0:T(8,128)}', space=vmem, size = 0x2000, scoped, tag = 'scratch operand']
  #allocation3 [shape = 'f32[16,1]{1,0:T(8,128)}', space=vmem, size = 0x2000, scoped, tag = 'scratch operand']
  #allocation4 [shape = 'f32[16,64]{1,0:T(8,128)}', space=vmem, size = 0x2000, scoped, tag = 'scratch operand']
  #allocation5 [shape = 's32[1]{0}', space=sflag, size = 0x4, scoped, tag = 'scoped memory for model_gat_forward.16']
  #allocation6 [shape = 's32[1,1]{1,0:T(1,128)S(6)}', space=smem, size = 0x200, scoped, tag = 'prefetched SMEM operand 0']
  %s0 = inlined_call_operand.<no memory space> [shape: s32[1,1], index: 0, kind: input, shape index: {}]
  %s1 = inlined_call_operand.vmem [shape: bf16[16,64], index: 1, kind: input, shape index: {}]
  %s2 = inlined_call_operand.vmem [shape: f32[16,1], index: 2, kind: input, shape index: {}]
  %s3 = inlined_call_operand.vmem [shape: f32[1,16], index: 3, kind: input, shape index: {}]
  %s4 = inlined_call_operand.vmem [shape: bf16[16,16], index: 4, kind: input, shape index: {}]
  %s5 = inlined_call_operand.vmem [shape: bf16[16,64], index: 5, kind: output, shape index: {}]
  %s6 = sld [smem:[#allocation0]]
  $region38: #{model_gat_forward.16} parent=0
    _
  %s8 = ssub.s32 1, %s6
  %s9 = scalar_select 0, %s8, %s6
  %10 = sst [smem:[#allocation6]] %s0
  // Predicated region
  $region2: #{model_gat_forward.16} parent=0 // pred_check
    _
  $region3: #{model_gat_forward.16} parent=0 // pred_check_branch
    %12 = sbr.rel (0) target = $region5
  $region4: #{model_gat_forward.16} parent=0 // pred_region
    _
  $region5: #{model_gat_forward.16} parent=0 // pred_fallthru
    _
  // Predicated region
  $region6: #{model_gat_forward.16} parent=0 // pred_check
    _
  $region7: #{model_gat_forward.16} parent=0 // pred_check_branch
    %14 = sbr.rel (0) target = $region9
  $region8: #{model_gat_forward.16} parent=0 // pred_region
    _
  $region9: #{model_gat_forward.16} parent=0 // pred_fallthru
    _
  // Predicated region
  $region10: #{model_gat_forward.16} parent=0 // pred_check
    _
  $region11: #{model_gat_forward.16} parent=0 // pred_check_branch
    %16 = sbr.rel (0) target = $region13
  $region12: #{model_gat_forward.16} parent=0 // pred_region
    _
  $region13: #{model_gat_forward.16} parent=0 // pred_fallthru
    _
  // Predicated region
  $region14: #{model_gat_forward.16} parent=0 // pred_check
    _
  $region15: #{model_gat_forward.16} parent=0 // pred_check_branch
    %18 = sbr.rel (0) target = $region17
  $region16: #{model_gat_forward.16} parent=0 // pred_region
    _
  $region17: #{model_gat_forward.16} parent=0 // pred_fallthru
    _
  %p20 = scmp.eq.s32.totalorder 0, 0
  // Predicated region
  $region18: #{model_gat_forward.16} parent=0 // pred_check
    %p21 = pneg %p20
  $region19: #{model_gat_forward.16} parent=0 // pred_check_branch
    %23 = sbr.rel (%p21) target = $region21
  $region20: #{model_gat_forward.16} parent=0 // pred_region
    %vm24 = vcmask 7168
    %25 = vst.msk [vmem:[#allocation2] sm:$0xff] %vm24, -inf
    %26 = vst.msk [vmem:[#allocation2 + $0x8] sm:$0xff] %vm24, -inf
    %27 = vst.msk [vmem:[#allocation3] sm:$0xff] %vm24, 0.0
    %28 = vst.msk [vmem:[#allocation3 + $0x8] sm:$0xff] %vm24, 0.0
    %vm29 = vcmask 523264
    %30 = vst.msk [vmem:[#allocation4] sm:$0xff] %vm29, 0.0
    %31 = vst.msk [vmem:[#allocation4 + $0x8] sm:$0xff] %vm29, 0.0
  $region21: #{model_gat_forward.16} parent=0 // pred_fallthru
    _
  %s32 = sadd.s32 0, 0
  %s33 = smul.u32 %s32, 128
  %s34 = sadd.s32 %s33, 0
  %s35 = sld [smem:[#allocation6 + %s34]]
  %p36 = scmp.gt.s32.totalorder %s35, 0
  // Predicated region
  $region22: #{model_gat_forward.16} parent=0 // pred_check
    %p37 = pneg %p36
  $region23: #{model_gat_forward.16} parent=0 // pred_check_branch
    %39 = sbr.rel (%p37) target = $region25
  $region24: #{model_gat_forward.16} parent=0 // pred_region
    %v40 = vld [vmem:[%s2] sm:$0xff]
    %v41 = vld [vmem:[%s2 + $0x8] sm:$0xff]
    %v42 = vld [vmem:[%s3] sm:$0x1]
    %44 = vset.pattern.permute.xlu0 0
    %45 = vperm.xlu0 %44, %v40
    %v46 = vpop.permute.xlu0 %45
    %49 = vset.pattern.permute.xlu0 0
    %50 = vperm.xlu0 %49, %v41
    %v51 = vpop.permute.xlu0 %50
    %v54 = vperm.slane %v42, 0
    %v56 = vadd.f32 %v46, %v54
    %v57 = vadd.f32 %v51, %v54
    %vm58 = vcmp.gt.f32.partialorder %v56, 0.0
    %vm59 = vcmp.gt.f32.partialorder %v57, 0.0
    %v60 = vmul.f32 %v56, 0.2
    %v61 = vmul.f32 %v57, 0.2
    %v62 = vsel %vm58, %v56, %v60
    %v63 = vsel %vm59, %v57, %v61
    %v64 = vld [vmem:[%s4] sm:$0xf]
    %v65 = vld [vmem:[%s4 + $0x4] sm:$0xf]
    %v66 = vunpack.c.l.bf16 %v64
    %v67 = vunpack.c.l.bf16 %v65
    %v68 = vadd.f32 %v62, %v66
    %v69 = vadd.f32 %v63, %v67
    %v70 = vld [vmem:[#allocation2] sm:$0xff]
    %v71 = vld [vmem:[#allocation2 + $0x8] sm:$0xff]
    %vm72 = vcmask 130048
    %v73 = vsel %vm72, %v68, -inf
    %74 = vmax.xlane.f32.xlu0 %v73
    %v75 = vpop.xlane.xlu0 %74
    %v76 = vsel %vm72, %v69, -inf
    %77 = vmax.xlane.f32.xlu0 %v76
    %v78 = vpop.xlane.xlu0 %77
    %v79 = vmax.f32 %v70, %v75
    %v80 = vmax.f32 %v71, %v78
    %v81 = vsub.f32 %v70, %v79
    %v82 = vsub.f32 %v71, %v80
    %v83 = vmul.f32 %v81, 1.442695
    %v84 = vpow.pop %v83
    %v85 = vmul.f32 %v82, 1.442695
    %v86 = vpow.pop %v85
    %88 = vset.pattern.permute.xlu0 0
    %89 = vperm.xlu0 %88, %v79
    %v90 = vpop.permute.xlu0 %89
    %93 = vset.pattern.permute.xlu0 0
    %94 = vperm.xlu0 %93, %v80
    %v95 = vpop.permute.xlu0 %94
    %v97 = vsub.f32 %v68, %v90
    %v98 = vsub.f32 %v69, %v95
    %v99 = vmul.f32 %v97, 1.442695
    %v100 = vpow.pop %v99
    %v101 = vmul.f32 %v98, 1.442695
    %v102 = vpow.pop %v101
    %v103 = vld [vmem:[#allocation3] sm:$0xff]
    %v104 = vld [vmem:[#allocation3 + $0x8] sm:$0xff]
    %v105 = vmul.f32 %v84, %v103
    %v106 = vmul.f32 %v86, %v104
    %v107 = vsel %vm72, %v100, 0.0
    %108 = vadd.xlane.f32.xlu0 %v107
    %v109 = vpop.xlane.xlu0 %108
    %v110 = vsel %vm72, %v102, 0.0
    %111 = vadd.xlane.f32.xlu0 %v110
    %v112 = vpop.xlane.xlu0 %111
    %v113 = vadd.f32 %v105, %v109
    %v114 = vadd.f32 %v106, %v112
    %vm115 = vcmask 7168
    %116 = vst.msk [vmem:[#allocation3] sm:$0xff] %vm115, %v113
    %117 = vst.msk [vmem:[#allocation3 + $0x8] sm:$0xff] %vm115, %v114
    %v118 = vld [vmem:[#allocation4] sm:$0xff]
    %v119 = vld [vmem:[#allocation4 + $0x8] sm:$0xff]
    %121 = vset.pattern.permute.xlu0 0
    %122 = vperm.xlu0 %121, %v84
    %v123 = vpop.permute.xlu0 %122
    %126 = vset.pattern.permute.xlu0 0
    %127 = vperm.xlu0 %126, %v86
    %v128 = vpop.permute.xlu0 %127
    %v130 = vmul.f32 %v123, %v118
    %v131 = vmul.f32 %v128, %v119
    %v132 = vpack.c.bf16 %v102, %v100
    %v133 = vld [vmem:[%s1] sm:$0xf]
    %v134 = vld [vmem:[%s1 + $0x4] sm:$0xf]
    %v137 = vunpack.c.l.b16 %v133
    %v138 = vunpack.c.l.b16 %v134
    %v139 = vpack.c.b16 %v138, %v137
    %v142 = vsel %vm72, %v132, 0
    %144 = vmatpush.bf16.msra.mxu0 0
    %145 = vmatpush.bf16.msra.mxu0 0
    %146 = vmatpush.bf16.msra.mxu0 0
    %147 = vmatpush.bf16.msra.mxu0 0
    %148 = vmatpush.bf16.msra.mxu0 0
    %149 = vmatpush.bf16.msra.mxu0 0
    %150 = vmatpush.bf16.msra.mxu0 0
    %151 = vmatpush.bf16.msra.mxu0 %v139
    %152 = vmatmul.bf16.gmra.mxu0 %v142
    %v153 = vpop.f32.mrf.mxu0
    %v154 = vadd.f32 0.0, %v153
    %v155 = vpop.f32.mrf.mxu0
    %v156 = vadd.f32 0.0, %v155
    %157 = vdwg.mxu0
    %v158 = vadd.f32 %v130, %v154
    %v159 = vadd.f32 %v131, %v156
    %vm160 = vcmask 523264
    %161 = vst.msk [vmem:[#allocation4] sm:$0xff] %vm160, %v158
    %162 = vst.msk [vmem:[#allocation4 + $0x8] sm:$0xff] %vm160, %v159
    %163 = vst.msk [vmem:[#allocation2] sm:$0xff] %vm115, %v79
    %164 = vst.msk [vmem:[#allocation2 + $0x8] sm:$0xff] %vm115, %v80
  $region25: #{model_gat_forward.16} parent=0 // pred_fallthru
    _
  // Predicated region
  $region26: #{model_gat_forward.16} parent=0 // pred_check
    %p165 = pneg %p20
  $region27: #{model_gat_forward.16} parent=0 // pred_check_branch
    %167 = sbr.rel (%p165) target = $region29
  $region28: #{model_gat_forward.16} parent=0 // pred_region
    %v168 = vld [vmem:[#allocation3] sm:$0xff]
    %v169 = vld [vmem:[#allocation3 + $0x8] sm:$0xff]
    %vm170 = vcmp.gt.f32.partialorder %v168, 0.0
    %vm171 = vcmp.gt.f32.partialorder %v169, 0.0
    %v172 = vsel %vm170, %v168, 1.0
    %v173 = vsel %vm171, %v169, 1.0
    %v174 = vld [vmem:[#allocation4] sm:$0xff]
    %v175 = vld [vmem:[#allocation4 + $0x8] sm:$0xff]
    %177 = vset.pattern.permute.xlu0 0
    %178 = vperm.xlu0 %177, %v172
    %v179 = vpop.permute.xlu0 %178
    %182 = vset.pattern.permute.xlu0 0
    %183 = vperm.xlu0 %182, %v173
    %v184 = vpop.permute.xlu0 %183
    %v186 = vrcp.pop %v179
    %v187 = vmul.f32 %v179, %v186
    %v188 = vsub.f32 1.0, %v187
    %v189 = vmul.f32 %v186, %v188
    %v190 = vadd.f32 %v186, %v189
    %vm191 = vweird.f32 %v179
    %vm192 = vweird.f32 %v186
    %vm193 = vmor %vm191, %vm192
    %v194 = vsel %vm193, %v186, %v190
    %v195 = vand.u32 2147483647, %v179
    %vm196 = vcmp.eq.f32.partialorder %v195, 8.507059e+37
    %v197 = vand.u32 %v179, 2147483648
    %v198 = vor.u32 1.1754944e-38, %v197
    %v199 = vsel %vm196, %v198, %v194
    %v200 = vmul.f32 %v174, %v199
    %v201 = vrcp.pop %v184
    %v202 = vmul.f32 %v184, %v201
    %v203 = vsub.f32 1.0, %v202
    %v204 = vmul.f32 %v201, %v203
    %v205 = vadd.f32 %v201, %v204
    %vm206 = vweird.f32 %v184
    %vm207 = vweird.f32 %v201
    %vm208 = vmor %vm206, %vm207
    %v209 = vsel %vm208, %v201, %v205
    %v210 = vand.u32 2147483647, %v184
    %vm211 = vcmp.eq.f32.partialorder %v210, 8.507059e+37
    %v212 = vand.u32 %v184, 2147483648
    %v213 = vor.u32 1.1754944e-38, %v212
    %v214 = vsel %vm211, %v213, %v209
    %v215 = vmul.f32 %v175, %v214
    %vm216 = vcmp.gt.f32.partialorder %v200, 0.0
    %vm217 = vcmp.gt.f32.partialorder %v215, 0.0
    %v218 = vmin.f32 %v200, 0.0
    %v219 = vmin.f32 %v215, 0.0
    %v220 = vmul.f32 %v218, 1.442695
    %v221 = vpow.pop %v220
    %v222 = vmul.f32 %v219, 1.442695
    %v223 = vpow.pop %v222
    %v224 = vsub.f32 %v221, 1.0
    %v225 = vsub.f32 %v223, 1.0
    %v226 = vsel %vm216, %v200, %v224
    %v227 = vsel %vm217, %v215, %v225
    %v228 = vpack.c.bf16 %v226, %v226
    %v229 = vpack.c.bf16 %v227, %v227
    %vm230 = vcmask 519168
    %231 = vst.msk [vmem:[%s5] sm:$0xf] %vm230, %v228
    %232 = vst.msk [vmem:[%s5 + $0x4] sm:$0xf] %vm230, %v229
  $region29: #{model_gat_forward.16} parent=0 // pred_fallthru
    _
  // Predicated region
  $region30: #{model_gat_forward.16} parent=0 // pred_check
    _
  $region31: #{model_gat_forward.16} parent=0 // pred_check_branch
    %234 = sbr.rel (0) target = $region33
  $region32: #{model_gat_forward.16} parent=0 // pred_region
    _
  $region33: #{model_gat_forward.16} parent=0 // pred_fallthru
    _
  // Predicated region
  $region34: #{model_gat_forward.16} parent=0 // pred_check
    _
  $region35: #{model_gat_forward.16} parent=0 // pred_check_branch
    %236 = sbr.rel (0) target = $region37
  $region36: #{model_gat_forward.16} parent=0 // pred_region
    _
  $region37: #{model_gat_forward.16} parent=0 // pred_fallthru
    _

// kernel: model_gat_forward.19
$region0: #{model_gat_forward.19}
  #allocation0 [shape = 'u32[]', space=smem, size = 0x4, offset = 0x4, fixed_abs, tag = 'smem constant byte address 0x4 - core index']
  #allocation1 [shape = 'u32[72,128]{1,0:T(1,128)}', space=vmem, size = 0x9000, scoped, tag = 'internal scratch']
  %s0 = inlined_call_operand.vmem [shape: bf16[16,64], index: 0, kind: input, shape index: {}]
  %s1 = inlined_call_operand.vmem [shape: bf16[16,64], index: 1, kind: input, shape index: {}]
  %s2 = inlined_call_operand.vmem [shape: f32[64,32], index: 2, kind: input, shape index: {}]
  %s3 = inlined_call_operand.vmem [shape: f32[1,32], index: 3, kind: input, shape index: {}]
  %s4 = inlined_call_operand.vmem [shape: f32[1,32], index: 4, kind: input, shape index: {}]
  %s5 = inlined_call_operand.vmem [shape: bf16[16,32], index: 5, kind: output, shape index: {0}]
  %s6 = inlined_call_operand.vmem [shape: f32[16,1], index: 6, kind: output, shape index: {1}]
  %s7 = inlined_call_operand.vmem [shape: f32[16,1], index: 7, kind: output, shape index: {2}]
  %8 = xla_tuple %s5, %s6, %s7
  %s9 = sld [smem:[#allocation0]]
  $region46: #{model_gat_forward.19} parent=0
    _
  %s11 = ssub.s32 1, %s9
  %s12 = scalar_select 0, %s11, %s9
  // Predicated region
  $region2: #{model_gat_forward.19} parent=0 // pred_check
    _
  $region3: #{model_gat_forward.19} parent=0 // pred_check_branch
    %14 = sbr.rel (0) target = $region5
  $region4: #{model_gat_forward.19} parent=0 // pred_region
    _
  $region5: #{model_gat_forward.19} parent=0 // pred_fallthru
    _
  // Predicated region
  $region6: #{model_gat_forward.19} parent=0 // pred_check
    _
  $region7: #{model_gat_forward.19} parent=0 // pred_check_branch
    %16 = sbr.rel (0) target = $region9
  $region8: #{model_gat_forward.19} parent=0 // pred_region
    _
  $region9: #{model_gat_forward.19} parent=0 // pred_fallthru
    _
  // Predicated region
  $region10: #{model_gat_forward.19} parent=0 // pred_check
    _
  $region11: #{model_gat_forward.19} parent=0 // pred_check_branch
    %18 = sbr.rel (0) target = $region13
  $region12: #{model_gat_forward.19} parent=0 // pred_region
    _
  $region13: #{model_gat_forward.19} parent=0 // pred_fallthru
    _
  // Predicated region
  $region14: #{model_gat_forward.19} parent=0 // pred_check
    _
  $region15: #{model_gat_forward.19} parent=0 // pred_check_branch
    %20 = sbr.rel (0) target = $region17
  $region16: #{model_gat_forward.19} parent=0 // pred_region
    _
  $region17: #{model_gat_forward.19} parent=0 // pred_fallthru
    _
  // Predicated region
  $region18: #{model_gat_forward.19} parent=0 // pred_check
    _
  $region19: #{model_gat_forward.19} parent=0 // pred_check_branch
    %22 = sbr.rel (0) target = $region21
  $region20: #{model_gat_forward.19} parent=0 // pred_region
    _
  $region21: #{model_gat_forward.19} parent=0 // pred_fallthru
    _
  %v24 = vld [vmem:[%s0] sm:$0xf]
  %v25 = vld [vmem:[%s0 + $0x4] sm:$0xf]
  %v26 = vunpack.c.l.bf16 %v24
  %v27 = vunpack.c.l.bf16 %v25
  %v28 = vmul.f32 %v26, 0.5
  %v29 = vmul.f32 %v27, 0.5
  %v30 = vld [vmem:[%s1] sm:$0xf]
  %v31 = vld [vmem:[%s1 + $0x4] sm:$0xf]
  %v32 = vunpack.c.l.bf16 %v30
  %v33 = vunpack.c.l.bf16 %v31
  %v34 = vmul.f32 %v32, 0.5
  %v35 = vmul.f32 %v33, 0.5
  %v36 = vadd.f32 %v28, %v34
  %v37 = vadd.f32 %v29, %v35
  %v38 = vpack.c.bf16 %v37, %v36
  %v39 = vld [vmem:[%s2] sm:$0xff]
  %v40 = vld [vmem:[%s2 + $0x8] sm:$0xff]
  %v41 = vld [vmem:[%s2 + $0x10] sm:$0xff]
  %v42 = vld [vmem:[%s2 + $0x18] sm:$0xff]
  %v43 = vld [vmem:[%s2 + $0x20] sm:$0xff]
  %v44 = vld [vmem:[%s2 + $0x28] sm:$0xff]
  %v45 = vld [vmem:[%s2 + $0x30] sm:$0xff]
  %v46 = vld [vmem:[%s2 + $0x38] sm:$0xff]
  %v47 = vpack.c.bf16 %v40, %v39
  %v48 = vpack.c.bf16 %v42, %v41
  %v49 = vpack.c.bf16 %v44, %v43
  %v50 = vpack.c.bf16 %v46, %v45
  %vm51 = vcmask 523264
  %v53 = vsel %vm51, %v38, 0
  %55 = vmatpush.bf16.msra.mxu0 0
  %56 = vmatpush.bf16.msra.mxu0 0
  %57 = vmatpush.bf16.msra.mxu0 0
  %58 = vmatpush.bf16.msra.mxu0 0
  %59 = vmatpush.bf16.msra.mxu0 %v50
  %60 = vmatpush.bf16.msra.mxu0 %v49
  %61 = vmatpush.bf16.msra.mxu0 %v48
  %62 = vmatpush.bf16.msra.mxu0 %v47
  %63 = vmatmul.bf16.gmra.mxu0 %v53
  %v64 = vpop.f32.mrf.mxu0
  %v65 = vadd.f32 0.0, %v64
  %v66 = vpop.f32.mrf.mxu0
  %v67 = vadd.f32 0.0, %v66
  %68 = vdwg.mxu0
  %v69 = vpack.c.bf16 %v65, %v65
  %v70 = vpack.c.bf16 %v67, %v67
  %vm71 = vcmask 257024
  %72 = vst.msk [vmem:[%s5] sm:$0xf] %vm71, %v69
  %73 = vst.msk [vmem:[%s5 + $0x4] sm:$0xf] %vm71, %v70
  %v74 = vld [vmem:[%s3] sm:$0x1]
  %v76 = vperm.slane %v74, 0
  %v78 = vmul.f32 %v65, %v76
  %v79 = vmul.f32 %v67, %v76
  %vm80 = vcmask 261120
  %v81 = vsel %vm80, %v78, 0.0
  %82 = vadd.xlane.f32.xlu0 %v81
  %v83 = vpop.xlane.xlu0 %82
  %v84 = vsel %vm80, %v79, 0.0
  %85 = vadd.xlane.f32.xlu0 %v84
  %v86 = vpop.xlane.xlu0 %85
  %vm87 = vcmask 7168
  %88 = vst.msk [vmem:[%s6] sm:$0xff] %vm87, %v83
  %89 = vst.msk [vmem:[%s6 + $0x8] sm:$0xff] %vm87, %v86
  %v90 = vld [vmem:[%s4] sm:$0x1]
  %v92 = vperm.slane %v90, 0
  %v94 = vmul.f32 %v65, %v92
  %v95 = vmul.f32 %v67, %v92
  %v96 = vsel %vm80, %v94, 0.0
  %97 = vadd.xlane.f32.xlu0 %v96
  %v98 = vpop.xlane.xlu0 %97
  %v99 = vsel %vm80, %v95, 0.0
  %100 = vadd.xlane.f32.xlu0 %v99
  %v101 = vpop.xlane.xlu0 %100
  %102 = vst.msk [vmem:[%s7] sm:$0xff] %vm87, %v98
  %103 = vst.msk [vmem:[%s7 + $0x8] sm:$0xff] %vm87, %v101
  // Predicated region
  $region22: #{model_gat_forward.19} parent=0 // pred_check
    _
  $region23: #{model_gat_forward.19} parent=0 // pred_check_branch
    %105 = sbr.rel (0) target = $region25
  $region24: #{model_gat_forward.19} parent=0 // pred_region
    _
  $region25: #{model_gat_forward.19} parent=0 // pred_fallthru
    _
  // Predicated region
  $region26: #{model_gat_forward.19} parent=0 // pred_check
    _
  $region27: #{model_gat_forward.19} parent=0 // pred_check_branch
    %107 = sbr.rel (0) target = $region29
  $region28: #{model_gat_forward.19} parent=0 // pred_region
    _
  $region29: #{model_gat_forward.19} parent=0 // pred_fallthru
    _
  // Predicated region
  $region30: #{model_gat_forward.19} parent=0 // pred_check
    _
  $region31: #{model_gat_forward.19} parent=0 // pred_check_branch
    %109 = sbr.rel (0) target = $region33
  $region32: #{model_gat_forward.19} parent=0 // pred_region
    _
  $region33: #{model_gat_forward.19} parent=0 // pred_fallthru
    _
  // Predicated region
  $region34: #{model_gat_forward.19} parent=0 // pred_check
    _
  $region35: #{model_gat_forward.19} parent=0 // pred_check_branch
    %111 = sbr.rel (0) target = $region37
  $region36: #{model_gat_forward.19} parent=0 // pred_region
    _
  $region37: #{model_gat_forward.19} parent=0 // pred_fallthru
    _
  // Predicated region
  $region38: #{model_gat_forward.19} parent=0 // pred_check
    _
  $region39: #{model_gat_forward.19} parent=0 // pred_check_branch
    %113 = sbr.rel (0) target = $region41
  $region40: #{model_gat_forward.19} parent=0 // pred_region
    _
  $region41: #{model_gat_forward.19} parent=0 // pred_fallthru
    _
  // Predicated region
  $region42: #{model_gat_forward.19} parent=0 // pred_check
    _
  $region43: #{model_gat_forward.19} parent=0 // pred_check_branch
    %115 = sbr.rel (0) target = $region45
  $region44: #{model_gat_forward.19} parent=0 // pred_region
    _
  $region45: #{model_gat_forward.19} parent=0 // pred_fallthru
    _

// kernel: model_gat_forward.21
$region0: #{model_gat_forward.21}
  #allocation0 [shape = 'u32[]', space=smem, size = 0x4, offset = 0x4, fixed_abs, tag = 'smem constant byte address 0x4 - core index']
  #allocation1 [shape = 'u32[72,128]{1,0:T(1,128)}', space=vmem, size = 0x9000, scoped, tag = 'internal scratch']
  %s0 = inlined_call_operand.vmem [shape: bf16[16,32], index: 0, kind: input, shape index: {}]
  %s1 = inlined_call_operand.vmem [shape: bf16[16,32], index: 1, kind: input, shape index: {}]
  %s2 = inlined_call_operand.vmem [shape: f32[32,16], index: 2, kind: input, shape index: {}]
  %s3 = inlined_call_operand.vmem [shape: f32[1,16], index: 3, kind: input, shape index: {}]
  %s4 = inlined_call_operand.vmem [shape: f32[1,16], index: 4, kind: input, shape index: {}]
  %s5 = inlined_call_operand.vmem [shape: bf16[16,16], index: 5, kind: output, shape index: {0}]
  %s6 = inlined_call_operand.vmem [shape: f32[16,1], index: 6, kind: output, shape index: {1}]
  %s7 = inlined_call_operand.vmem [shape: f32[16,1], index: 7, kind: output, shape index: {2}]
  %8 = xla_tuple %s5, %s6, %s7
  %s9 = sld [smem:[#allocation0]]
  $region46: #{model_gat_forward.21} parent=0
    _
  %s11 = ssub.s32 1, %s9
  %s12 = scalar_select 0, %s11, %s9
  // Predicated region
  $region2: #{model_gat_forward.21} parent=0 // pred_check
    _
  $region3: #{model_gat_forward.21} parent=0 // pred_check_branch
    %14 = sbr.rel (0) target = $region5
  $region4: #{model_gat_forward.21} parent=0 // pred_region
    _
  $region5: #{model_gat_forward.21} parent=0 // pred_fallthru
    _
  // Predicated region
  $region6: #{model_gat_forward.21} parent=0 // pred_check
    _
  $region7: #{model_gat_forward.21} parent=0 // pred_check_branch
    %16 = sbr.rel (0) target = $region9
  $region8: #{model_gat_forward.21} parent=0 // pred_region
    _
  $region9: #{model_gat_forward.21} parent=0 // pred_fallthru
    _
  // Predicated region
  $region10: #{model_gat_forward.21} parent=0 // pred_check
    _
  $region11: #{model_gat_forward.21} parent=0 // pred_check_branch
    %18 = sbr.rel (0) target = $region13
  $region12: #{model_gat_forward.21} parent=0 // pred_region
    _
  $region13: #{model_gat_forward.21} parent=0 // pred_fallthru
    _
  // Predicated region
  $region14: #{model_gat_forward.21} parent=0 // pred_check
    _
  $region15: #{model_gat_forward.21} parent=0 // pred_check_branch
    %20 = sbr.rel (0) target = $region17
  $region16: #{model_gat_forward.21} parent=0 // pred_region
    _
  $region17: #{model_gat_forward.21} parent=0 // pred_fallthru
    _
  // Predicated region
  $region18: #{model_gat_forward.21} parent=0 // pred_check
    _
  $region19: #{model_gat_forward.21} parent=0 // pred_check_branch
    %22 = sbr.rel (0) target = $region21
  $region20: #{model_gat_forward.21} parent=0 // pred_region
    _
  $region21: #{model_gat_forward.21} parent=0 // pred_fallthru
    _
  %v24 = vld [vmem:[%s0] sm:$0xf]
  %v25 = vld [vmem:[%s0 + $0x4] sm:$0xf]
  %v26 = vunpack.c.l.bf16 %v24
  %v27 = vunpack.c.l.bf16 %v25
  %v28 = vmul.f32 %v26, 0.5
  %v29 = vmul.f32 %v27, 0.5
  %v30 = vld [vmem:[%s1] sm:$0xf]
  %v31 = vld [vmem:[%s1 + $0x4] sm:$0xf]
  %v32 = vunpack.c.l.bf16 %v30
  %v33 = vunpack.c.l.bf16 %v31
  %v34 = vmul.f32 %v32, 0.5
  %v35 = vmul.f32 %v33, 0.5
  %v36 = vadd.f32 %v28, %v34
  %v37 = vadd.f32 %v29, %v35
  %v38 = vpack.c.bf16 %v37, %v36
  %v39 = vld [vmem:[%s2] sm:$0xff]
  %v40 = vld [vmem:[%s2 + $0x8] sm:$0xff]
  %v41 = vld [vmem:[%s2 + $0x10] sm:$0xff]
  %v42 = vld [vmem:[%s2 + $0x18] sm:$0xff]
  %v43 = vpack.c.bf16 %v40, %v39
  %v44 = vpack.c.bf16 %v42, %v41
  %vm45 = vcmask 261120
  %v47 = vsel %vm45, %v38, 0
  %49 = vmatpush.bf16.msra.mxu0 0
  %50 = vmatpush.bf16.msra.mxu0 0
  %51 = vmatpush.bf16.msra.mxu0 0
  %52 = vmatpush.bf16.msra.mxu0 0
  %53 = vmatpush.bf16.msra.mxu0 0
  %54 = vmatpush.bf16.msra.mxu0 0
  %55 = vmatpush.bf16.msra.mxu0 %v44
  %56 = vmatpush.bf16.msra.mxu0 %v43
  %57 = vmatmul.bf16.gmra.mxu0 %v47
  %v58 = vpop.f32.mrf.mxu0
  %v59 = vadd.f32 0.0, %v58
  %v60 = vpop.f32.mrf.mxu0
  %v61 = vadd.f32 0.0, %v60
  %62 = vdwg.mxu0
  %v63 = vpack.c.bf16 %v59, %v59
  %v64 = vpack.c.bf16 %v61, %v61
  %vm65 = vcmask 125952
  %66 = vst.msk [vmem:[%s5] sm:$0xf] %vm65, %v63
  %67 = vst.msk [vmem:[%s5 + $0x4] sm:$0xf] %vm65, %v64
  %v68 = vld [vmem:[%s3] sm:$0x1]
  %v70 = vperm.slane %v68, 0
  %v72 = vmul.f32 %v59, %v70
  %v73 = vmul.f32 %v61, %v70
  %vm74 = vcmask 130048
  %v75 = vsel %vm74, %v72, 0.0
  %76 = vadd.xlane.f32.xlu0 %v75
  %v77 = vpop.xlane.xlu0 %76
  %v78 = vsel %vm74, %v73, 0.0
  %79 = vadd.xlane.f32.xlu0 %v78
  %v80 = vpop.xlane.xlu0 %79
  %vm81 = vcmask 7168
  %82 = vst.msk [vmem:[%s6] sm:$0xff] %vm81, %v77
  %83 = vst.msk [vmem:[%s6 + $0x8] sm:$0xff] %vm81, %v80
  %v84 = vld [vmem:[%s4] sm:$0x1]
  %v86 = vperm.slane %v84, 0
  %v88 = vmul.f32 %v59, %v86
  %v89 = vmul.f32 %v61, %v86
  %v90 = vsel %vm74, %v88, 0.0
  %91 = vadd.xlane.f32.xlu0 %v90
  %v92 = vpop.xlane.xlu0 %91
  %v93 = vsel %vm74, %v89, 0.0
  %94 = vadd.xlane.f32.xlu0 %v93
  %v95 = vpop.xlane.xlu0 %94
  %96 = vst.msk [vmem:[%s7] sm:$0xff] %vm81, %v92
  %97 = vst.msk [vmem:[%s7 + $0x8] sm:$0xff] %vm81, %v95
  // Predicated region
  $region22: #{model_gat_forward.21} parent=0 // pred_check
    _
  $region23: #{model_gat_forward.21} parent=0 // pred_check_branch
    %99 = sbr.rel (0) target = $region25
  $region24: #{model_gat_forward.21} parent=0 // pred_region
    _
  $region25: #{model_gat_forward.21} parent=0 // pred_fallthru
    _
  // Predicated region
  $region26: #{model_gat_forward.21} parent=0 // pred_check
    _
  $region27: #{model_gat_forward.21} parent=0 // pred_check_branch
    %101 = sbr.rel (0) target = $region29
  $region28: #{model_gat_forward.21} parent=0 // pred_region
    _
  $region29: #{model_gat_forward.21} parent=0 // pred_fallthru
    _
  // Predicated region
  $region30: #{model_gat_forward.21} parent=0 // pred_check
    _
  $region31: #{model_gat_forward.21} parent=0 // pred_check_branch
    %103 = sbr.rel (0) target = $region33
  $region32: #{model_gat_forward.21} parent=0 // pred_region
    _
  $region33: #{model_gat_forward.21} parent=0 // pred_fallthru
    _
  // Predicated region
  $region34: #{model_gat_forward.21} parent=0 // pred_check
    _
  $region35: #{model_gat_forward.21} parent=0 // pred_check_branch
    %105 = sbr.rel (0) target = $region37
  $region36: #{model_gat_forward.21} parent=0 // pred_region
    _
  $region37: #{model_gat_forward.21} parent=0 // pred_fallthru
    _
  // Predicated region
  $region38: #{model_gat_forward.21} parent=0 // pred_check
    _
  $region39: #{model_gat_forward.21} parent=0 // pred_check_branch
    %107 = sbr.rel (0) target = $region41
  $region40: #{model_gat_forward.21} parent=0 // pred_region
    _
  $region41: #{model_gat_forward.21} parent=0 // pred_fallthru
    _
  // Predicated region
  $region42: #{model_gat_forward.21} parent=0 // pred_check
    _
  $region43: #{model_gat_forward.21} parent=0 // pred_check_branch
    %109 = sbr.rel (0) target = $region45
  $region44: #{model_gat_forward.21} parent=0 // pred_region
    _
  $region45: #{model_gat_forward.21} parent=0 // pred_fallthru
    _

// kernel: model_gat_forward.20
$region0: #{model_gat_forward.20}
  #allocation0 [shape = 'u32[]', space=smem, size = 0x4, offset = 0x4, fixed_abs, tag = 'smem constant byte address 0x4 - core index']
  #allocation1 [shape = 'u32[72,128]{1,0:T(1,128)}', space=vmem, size = 0x9000, scoped, tag = 'internal scratch']
  #allocation2 [shape = 'f32[16,1]{1,0:T(8,128)}', space=vmem, size = 0x2000, scoped, tag = 'scratch operand']
  #allocation3 [shape = 'f32[16,1]{1,0:T(8,128)}', space=vmem, size = 0x2000, scoped, tag = 'scratch operand']
  #allocation4 [shape = 'f32[16,32]{1,0:T(8,128)}', space=vmem, size = 0x2000, scoped, tag = 'scratch operand']
  #allocation5 [shape = 's32[1]{0}', space=sflag, size = 0x4, scoped, tag = 'scoped memory for model_gat_forward.20']
  #allocation6 [shape = 's32[1,1]{1,0:T(1,128)S(6)}', space=smem, size = 0x200, scoped, tag = 'prefetched SMEM operand 0']
  %s0 = inlined_call_operand.<no memory space> [shape: s32[1,1], index: 0, kind: input, shape index: {}]
  %s1 = inlined_call_operand.vmem [shape: bf16[16,32], index: 1, kind: input, shape index: {}]
  %s2 = inlined_call_operand.vmem [shape: f32[16,1], index: 2, kind: input, shape index: {}]
  %s3 = inlined_call_operand.vmem [shape: f32[1,16], index: 3, kind: input, shape index: {}]
  %s4 = inlined_call_operand.vmem [shape: bf16[16,16], index: 4, kind: input, shape index: {}]
  %s5 = inlined_call_operand.vmem [shape: bf16[16,32], index: 5, kind: output, shape index: {}]
  %s6 = sld [smem:[#allocation0]]
  $region38: #{model_gat_forward.20} parent=0
    _
  %s8 = ssub.s32 1, %s6
  %s9 = scalar_select 0, %s8, %s6
  %10 = sst [smem:[#allocation6]] %s0
  // Predicated region
  $region2: #{model_gat_forward.20} parent=0 // pred_check
    _
  $region3: #{model_gat_forward.20} parent=0 // pred_check_branch
    %12 = sbr.rel (0) target = $region5
  $region4: #{model_gat_forward.20} parent=0 // pred_region
    _
  $region5: #{model_gat_forward.20} parent=0 // pred_fallthru
    _
  // Predicated region
  $region6: #{model_gat_forward.20} parent=0 // pred_check
    _
  $region7: #{model_gat_forward.20} parent=0 // pred_check_branch
    %14 = sbr.rel (0) target = $region9
  $region8: #{model_gat_forward.20} parent=0 // pred_region
    _
  $region9: #{model_gat_forward.20} parent=0 // pred_fallthru
    _
  // Predicated region
  $region10: #{model_gat_forward.20} parent=0 // pred_check
    _
  $region11: #{model_gat_forward.20} parent=0 // pred_check_branch
    %16 = sbr.rel (0) target = $region13
  $region12: #{model_gat_forward.20} parent=0 // pred_region
    _
  $region13: #{model_gat_forward.20} parent=0 // pred_fallthru
    _
  // Predicated region
  $region14: #{model_gat_forward.20} parent=0 // pred_check
    _
  $region15: #{model_gat_forward.20} parent=0 // pred_check_branch
    %18 = sbr.rel (0) target = $region17
  $region16: #{model_gat_forward.20} parent=0 // pred_region
    _
  $region17: #{model_gat_forward.20} parent=0 // pred_fallthru
    _
  %p20 = scmp.eq.s32.totalorder 0, 0
  // Predicated region
  $region18: #{model_gat_forward.20} parent=0 // pred_check
    %p21 = pneg %p20
  $region19: #{model_gat_forward.20} parent=0 // pred_check_branch
    %23 = sbr.rel (%p21) target = $region21
  $region20: #{model_gat_forward.20} parent=0 // pred_region
    %vm24 = vcmask 7168
    %25 = vst.msk [vmem:[#allocation2] sm:$0xff] %vm24, -inf
    %26 = vst.msk [vmem:[#allocation2 + $0x8] sm:$0xff] %vm24, -inf
    %27 = vst.msk [vmem:[#allocation3] sm:$0xff] %vm24, 0.0
    %28 = vst.msk [vmem:[#allocation3 + $0x8] sm:$0xff] %vm24, 0.0
    %vm29 = vcmask 261120
    %30 = vst.msk [vmem:[#allocation4] sm:$0xff] %vm29, 0.0
    %31 = vst.msk [vmem:[#allocation4 + $0x8] sm:$0xff] %vm29, 0.0
  $region21: #{model_gat_forward.20} parent=0 // pred_fallthru
    _
  %s32 = sadd.s32 0, 0
  %s33 = smul.u32 %s32, 128
  %s34 = sadd.s32 %s33, 0
  %s35 = sld [smem:[#allocation6 + %s34]]
  %p36 = scmp.gt.s32.totalorder %s35, 0
  // Predicated region
  $region22: #{model_gat_forward.20} parent=0 // pred_check
    %p37 = pneg %p36
  $region23: #{model_gat_forward.20} parent=0 // pred_check_branch
    %39 = sbr.rel (%p37) target = $region25
  $region24: #{model_gat_forward.20} parent=0 // pred_region
    %v40 = vld [vmem:[%s2] sm:$0xff]
    %v41 = vld [vmem:[%s2 + $0x8] sm:$0xff]
    %v42 = vld [vmem:[%s3] sm:$0x1]
    %44 = vset.pattern.permute.xlu0 0
    %45 = vperm.xlu0 %44, %v40
    %v46 = vpop.permute.xlu0 %45
    %49 = vset.pattern.permute.xlu0 0
    %50 = vperm.xlu0 %49, %v41
    %v51 = vpop.permute.xlu0 %50
    %v54 = vperm.slane %v42, 0
    %v56 = vadd.f32 %v46, %v54
    %v57 = vadd.f32 %v51, %v54
    %vm58 = vcmp.gt.f32.partialorder %v56, 0.0
    %vm59 = vcmp.gt.f32.partialorder %v57, 0.0
    %v60 = vmul.f32 %v56, 0.2
    %v61 = vmul.f32 %v57, 0.2
    %v62 = vsel %vm58, %v56, %v60
    %v63 = vsel %vm59, %v57, %v61
    %v64 = vld [vmem:[%s4] sm:$0xf]
    %v65 = vld [vmem:[%s4 + $0x4] sm:$0xf]
    %v66 = vunpack.c.l.bf16 %v64
    %v67 = vunpack.c.l.bf16 %v65
    %v68 = vadd.f32 %v62, %v66
    %v69 = vadd.f32 %v63, %v67
    %v70 = vld [vmem:[#allocation2] sm:$0xff]
    %v71 = vld [vmem:[#allocation2 + $0x8] sm:$0xff]
    %vm72 = vcmask 130048
    %v73 = vsel %vm72, %v68, -inf
    %74 = vmax.xlane.f32.xlu0 %v73
    %v75 = vpop.xlane.xlu0 %74
    %v76 = vsel %vm72, %v69, -inf
    %77 = vmax.xlane.f32.xlu0 %v76
    %v78 = vpop.xlane.xlu0 %77
    %v79 = vmax.f32 %v70, %v75
    %v80 = vmax.f32 %v71, %v78
    %v81 = vsub.f32 %v70, %v79
    %v82 = vsub.f32 %v71, %v80
    %v83 = vmul.f32 %v81, 1.442695
    %v84 = vpow.pop %v83
    %v85 = vmul.f32 %v82, 1.442695
    %v86 = vpow.pop %v85
    %88 = vset.pattern.permute.xlu0 0
    %89 = vperm.xlu0 %88, %v79
    %v90 = vpop.permute.xlu0 %89
    %93 = vset.pattern.permute.xlu0 0
    %94 = vperm.xlu0 %93, %v80
    %v95 = vpop.permute.xlu0 %94
    %v97 = vsub.f32 %v68, %v90
    %v98 = vsub.f32 %v69, %v95
    %v99 = vmul.f32 %v97, 1.442695
    %v100 = vpow.pop %v99
    %v101 = vmul.f32 %v98, 1.442695
    %v102 = vpow.pop %v101
    %v103 = vld [vmem:[#allocation3] sm:$0xff]
    %v104 = vld [vmem:[#allocation3 + $0x8] sm:$0xff]
    %v105 = vmul.f32 %v84, %v103
    %v106 = vmul.f32 %v86, %v104
    %v107 = vsel %vm72, %v100, 0.0
    %108 = vadd.xlane.f32.xlu0 %v107
    %v109 = vpop.xlane.xlu0 %108
    %v110 = vsel %vm72, %v102, 0.0
    %111 = vadd.xlane.f32.xlu0 %v110
    %v112 = vpop.xlane.xlu0 %111
    %v113 = vadd.f32 %v105, %v109
    %v114 = vadd.f32 %v106, %v112
    %vm115 = vcmask 7168
    %116 = vst.msk [vmem:[#allocation3] sm:$0xff] %vm115, %v113
    %117 = vst.msk [vmem:[#allocation3 + $0x8] sm:$0xff] %vm115, %v114
    %v118 = vld [vmem:[#allocation4] sm:$0xff]
    %v119 = vld [vmem:[#allocation4 + $0x8] sm:$0xff]
    %121 = vset.pattern.permute.xlu0 0
    %122 = vperm.xlu0 %121, %v84
    %v123 = vpop.permute.xlu0 %122
    %126 = vset.pattern.permute.xlu0 0
    %127 = vperm.xlu0 %126, %v86
    %v128 = vpop.permute.xlu0 %127
    %v130 = vmul.f32 %v123, %v118
    %v131 = vmul.f32 %v128, %v119
    %v132 = vpack.c.bf16 %v102, %v100
    %v133 = vld [vmem:[%s1] sm:$0xf]
    %v134 = vld [vmem:[%s1 + $0x4] sm:$0xf]
    %v137 = vunpack.c.l.b16 %v133
    %v138 = vunpack.c.l.b16 %v134
    %v139 = vpack.c.b16 %v138, %v137
    %v142 = vsel %vm72, %v132, 0
    %144 = vmatpush.bf16.msra.mxu0 0
    %145 = vmatpush.bf16.msra.mxu0 0
    %146 = vmatpush.bf16.msra.mxu0 0
    %147 = vmatpush.bf16.msra.mxu0 0
    %148 = vmatpush.bf16.msra.mxu0 0
    %149 = vmatpush.bf16.msra.mxu0 0
    %150 = vmatpush.bf16.msra.mxu0 0
    %151 = vmatpush.bf16.msra.mxu0 %v139
    %152 = vmatmul.bf16.gmra.mxu0 %v142
    %v153 = vpop.f32.mrf.mxu0
    %v154 = vadd.f32 0.0, %v153
    %v155 = vpop.f32.mrf.mxu0
    %v156 = vadd.f32 0.0, %v155
    %157 = vdwg.mxu0
    %v158 = vadd.f32 %v130, %v154
    %v159 = vadd.f32 %v131, %v156
    %vm160 = vcmask 261120
    %161 = vst.msk [vmem:[#allocation4] sm:$0xff] %vm160, %v158
    %162 = vst.msk [vmem:[#allocation4 + $0x8] sm:$0xff] %vm160, %v159
    %163 = vst.msk [vmem:[#allocation2] sm:$0xff] %vm115, %v79
    %164 = vst.msk [vmem:[#allocation2 + $0x8] sm:$0xff] %vm115, %v80
  $region25: #{model_gat_forward.20} parent=0 // pred_fallthru
    _
  // Predicated region
  $region26: #{model_gat_forward.20} parent=0 // pred_check
    %p165 = pneg %p20
  $region27: #{model_gat_forward.20} parent=0 // pred_check_branch
    %167 = sbr.rel (%p165) target = $region29
  $region28: #{model_gat_forward.20} parent=0 // pred_region
    %v168 = vld [vmem:[#allocation3] sm:$0xff]
    %v169 = vld [vmem:[#allocation3 + $0x8] sm:$0xff]
    %vm170 = vcmp.gt.f32.partialorder %v168, 0.0
    %vm171 = vcmp.gt.f32.partialorder %v169, 0.0
    %v172 = vsel %vm170, %v168, 1.0
    %v173 = vsel %vm171, %v169, 1.0
    %v174 = vld [vmem:[#allocation4] sm:$0xff]
    %v175 = vld [vmem:[#allocation4 + $0x8] sm:$0xff]
    %177 = vset.pattern.permute.xlu0 0
    %178 = vperm.xlu0 %177, %v172
    %v179 = vpop.permute.xlu0 %178
    %182 = vset.pattern.permute.xlu0 0
    %183 = vperm.xlu0 %182, %v173
    %v184 = vpop.permute.xlu0 %183
    %v186 = vrcp.pop %v179
    %v187 = vmul.f32 %v179, %v186
    %v188 = vsub.f32 1.0, %v187
    %v189 = vmul.f32 %v186, %v188
    %v190 = vadd.f32 %v186, %v189
    %vm191 = vweird.f32 %v179
    %vm192 = vweird.f32 %v186
    %vm193 = vmor %vm191, %vm192
    %v194 = vsel %vm193, %v186, %v190
    %v195 = vand.u32 2147483647, %v179
    %vm196 = vcmp.eq.f32.partialorder %v195, 8.507059e+37
    %v197 = vand.u32 %v179, 2147483648
    %v198 = vor.u32 1.1754944e-38, %v197
    %v199 = vsel %vm196, %v198, %v194
    %v200 = vmul.f32 %v174, %v199
    %v201 = vrcp.pop %v184
    %v202 = vmul.f32 %v184, %v201
    %v203 = vsub.f32 1.0, %v202
    %v204 = vmul.f32 %v201, %v203
    %v205 = vadd.f32 %v201, %v204
    %vm206 = vweird.f32 %v184
    %vm207 = vweird.f32 %v201
    %vm208 = vmor %vm206, %vm207
    %v209 = vsel %vm208, %v201, %v205
    %v210 = vand.u32 2147483647, %v184
    %vm211 = vcmp.eq.f32.partialorder %v210, 8.507059e+37
    %v212 = vand.u32 %v184, 2147483648
    %v213 = vor.u32 1.1754944e-38, %v212
    %v214 = vsel %vm211, %v213, %v209
    %v215 = vmul.f32 %v175, %v214
    %vm216 = vcmp.gt.f32.partialorder %v200, 0.0
    %vm217 = vcmp.gt.f32.partialorder %v215, 0.0
    %v218 = vmin.f32 %v200, 0.0
    %v219 = vmin.f32 %v215, 0.0
    %v220 = vmul.f32 %v218, 1.442695
    %v221 = vpow.pop %v220
    %v222 = vmul.f32 %v219, 1.442695
    %v223 = vpow.pop %v222
    %v224 = vsub.f32 %v221, 1.0
    %v225 = vsub.f32 %v223, 1.0
    %v226 = vsel %vm216, %v200, %v224
    %v227 = vsel %vm217, %v215, %v225
    %v228 = vpack.c.bf16 %v226, %v226
    %v229 = vpack.c.bf16 %v227, %v227
    %vm230 = vcmask 257024
    %231 = vst.msk [vmem:[%s5] sm:$0xf] %vm230, %v228
    %232 = vst.msk [vmem:[%s5 + $0x4] sm:$0xf] %vm230, %v229
  $region29: #{model_gat_forward.20} parent=0 // pred_fallthru
    _
  // Predicated region
  $region30: #{model_gat_forward.20} parent=0 // pred_check
    _
  $region31: #{model_gat_forward.20} parent=0 // pred_check_branch
    %234 = sbr.rel (0) target = $region33
  $region32: #{model_gat_forward.20} parent=0 // pred_region
    _
  $region33: #{model_gat_forward.20} parent=0 // pred_fallthru
    _
  // Predicated region
  $region34: #{model_gat_forward.20} parent=0 // pred_check
    _
  $region35: #{model_gat_forward.20} parent=0 // pred_check_branch
    %236 = sbr.rel (0) target = $region37
  $region36: #{model_gat_forward.20} parent=0 // pred_region
    _
  $region37: #{model_gat_forward.20} parent=0 // pred_fallthru
    _

// kernel: model_gat_forward.22
$region0: #{model_gat_forward.22}
  #allocation0 [shape = 'u32[]', space=smem, size = 0x4, offset = 0x4, fixed_abs, tag = 'smem constant byte address 0x4 - core index']
  #allocation1 [shape = 'u32[72,128]{1,0:T(1,128)}', space=vmem, size = 0x9000, scoped, tag = 'internal scratch']
  #allocation2 [shape = 'f32[16,1]{1,0:T(8,128)}', space=vmem, size = 0x2000, scoped, tag = 'scratch operand']
  #allocation3 [shape = 'f32[16,1]{1,0:T(8,128)}', space=vmem, size = 0x2000, scoped, tag = 'scratch operand']
  #allocation4 [shape = 'f32[16,16]{1,0:T(8,128)}', space=vmem, size = 0x2000, scoped, tag = 'scratch operand']
  #allocation5 [shape = 's32[1]{0}', space=sflag, size = 0x4, scoped, tag = 'scoped memory for model_gat_forward.22']
  #allocation6 [shape = 's32[1,1]{1,0:T(1,128)S(6)}', space=smem, size = 0x200, scoped, tag = 'prefetched SMEM operand 0']
  %s0 = inlined_call_operand.<no memory space> [shape: s32[1,1], index: 0, kind: input, shape index: {}]
  %s1 = inlined_call_operand.vmem [shape: bf16[16,16], index: 1, kind: input, shape index: {}]
  %s2 = inlined_call_operand.vmem [shape: f32[16,1], index: 2, kind: input, shape index: {}]
  %s3 = inlined_call_operand.vmem [shape: f32[1,16], index: 3, kind: input, shape index: {}]
  %s4 = inlined_call_operand.vmem [shape: bf16[16,16], index: 4, kind: input, shape index: {}]
  %s5 = inlined_call_operand.vmem [shape: bf16[16,16], index: 5, kind: output, shape index: {}]
  %s6 = sld [smem:[#allocation0]]
  $region38: #{model_gat_forward.22} parent=0
    _
  %s8 = ssub.s32 1, %s6
  %s9 = scalar_select 0, %s8, %s6
  %10 = sst [smem:[#allocation6]] %s0
  // Predicated region
  $region2: #{model_gat_forward.22} parent=0 // pred_check
    _
  $region3: #{model_gat_forward.22} parent=0 // pred_check_branch
    %12 = sbr.rel (0) target = $region5
  $region4: #{model_gat_forward.22} parent=0 // pred_region
    _
  $region5: #{model_gat_forward.22} parent=0 // pred_fallthru
    _
  // Predicated region
  $region6: #{model_gat_forward.22} parent=0 // pred_check
    _
  $region7: #{model_gat_forward.22} parent=0 // pred_check_branch
    %14 = sbr.rel (0) target = $region9
  $region8: #{model_gat_forward.22} parent=0 // pred_region
    _
  $region9: #{model_gat_forward.22} parent=0 // pred_fallthru
    _
  // Predicated region
  $region10: #{model_gat_forward.22} parent=0 // pred_check
    _
  $region11: #{model_gat_forward.22} parent=0 // pred_check_branch
    %16 = sbr.rel (0) target = $region13
  $region12: #{model_gat_forward.22} parent=0 // pred_region
    _
  $region13: #{model_gat_forward.22} parent=0 // pred_fallthru
    _
  // Predicated region
  $region14: #{model_gat_forward.22} parent=0 // pred_check
    _
  $region15: #{model_gat_forward.22} parent=0 // pred_check_branch
    %18 = sbr.rel (0) target = $region17
  $region16: #{model_gat_forward.22} parent=0 // pred_region
    _
  $region17: #{model_gat_forward.22} parent=0 // pred_fallthru
    _
  %p20 = scmp.eq.s32.totalorder 0, 0
  // Predicated region
  $region18: #{model_gat_forward.22} parent=0 // pred_check
    %p21 = pneg %p20
  $region19: #{model_gat_forward.22} parent=0 // pred_check_branch
    %23 = sbr.rel (%p21) target = $region21
  $region20: #{model_gat_forward.22} parent=0 // pred_region
    %vm24 = vcmask 7168
    %25 = vst.msk [vmem:[#allocation2] sm:$0xff] %vm24, -inf
    %26 = vst.msk [vmem:[#allocation2 + $0x8] sm:$0xff] %vm24, -inf
    %27 = vst.msk [vmem:[#allocation3] sm:$0xff] %vm24, 0.0
    %28 = vst.msk [vmem:[#allocation3 + $0x8] sm:$0xff] %vm24, 0.0
    %vm29 = vcmask 130048
    %30 = vst.msk [vmem:[#allocation4] sm:$0xff] %vm29, 0.0
    %31 = vst.msk [vmem:[#allocation4 + $0x8] sm:$0xff] %vm29, 0.0
  $region21: #{model_gat_forward.22} parent=0 // pred_fallthru
    _
  %s32 = sadd.s32 0, 0
  %s33 = smul.u32 %s32, 128
  %s34 = sadd.s32 %s33, 0
  %s35 = sld [smem:[#allocation6 + %s34]]
  %p36 = scmp.gt.s32.totalorder %s35, 0
  // Predicated region
  $region22: #{model_gat_forward.22} parent=0 // pred_check
    %p37 = pneg %p36
  $region23: #{model_gat_forward.22} parent=0 // pred_check_branch
    %39 = sbr.rel (%p37) target = $region25
  $region24: #{model_gat_forward.22} parent=0 // pred_region
    %v40 = vld [vmem:[%s2] sm:$0xff]
    %v41 = vld [vmem:[%s2 + $0x8] sm:$0xff]
    %v42 = vld [vmem:[%s3] sm:$0x1]
    %44 = vset.pattern.permute.xlu0 0
    %45 = vperm.xlu0 %44, %v40
    %v46 = vpop.permute.xlu0 %45
    %49 = vset.pattern.permute.xlu0 0
    %50 = vperm.xlu0 %49, %v41
    %v51 = vpop.permute.xlu0 %50
    %v54 = vperm.slane %v42, 0
    %v56 = vadd.f32 %v46, %v54
    %v57 = vadd.f32 %v51, %v54
    %vm58 = vcmp.gt.f32.partialorder %v56, 0.0
    %vm59 = vcmp.gt.f32.partialorder %v57, 0.0
    %v60 = vmul.f32 %v56, 0.2
    %v61 = vmul.f32 %v57, 0.2
    %v62 = vsel %vm58, %v56, %v60
    %v63 = vsel %vm59, %v57, %v61
    %v64 = vld [vmem:[%s4] sm:$0xf]
    %v65 = vld [vmem:[%s4 + $0x4] sm:$0xf]
    %v66 = vunpack.c.l.bf16 %v64
    %v67 = vunpack.c.l.bf16 %v65
    %v68 = vadd.f32 %v62, %v66
    %v69 = vadd.f32 %v63, %v67
    %v70 = vld [vmem:[#allocation2] sm:$0xff]
    %v71 = vld [vmem:[#allocation2 + $0x8] sm:$0xff]
    %vm72 = vcmask 130048
    %v73 = vsel %vm72, %v68, -inf
    %74 = vmax.xlane.f32.xlu0 %v73
    %v75 = vpop.xlane.xlu0 %74
    %v76 = vsel %vm72, %v69, -inf
    %77 = vmax.xlane.f32.xlu0 %v76
    %v78 = vpop.xlane.xlu0 %77
    %v79 = vmax.f32 %v70, %v75
    %v80 = vmax.f32 %v71, %v78
    %v81 = vsub.f32 %v70, %v79
    %v82 = vsub.f32 %v71, %v80
    %v83 = vmul.f32 %v81, 1.442695
    %v84 = vpow.pop %v83
    %v85 = vmul.f32 %v82, 1.442695
    %v86 = vpow.pop %v85
    %88 = vset.pattern.permute.xlu0 0
    %89 = vperm.xlu0 %88, %v79
    %v90 = vpop.permute.xlu0 %89
    %93 = vset.pattern.permute.xlu0 0
    %94 = vperm.xlu0 %93, %v80
    %v95 = vpop.permute.xlu0 %94
    %v97 = vsub.f32 %v68, %v90
    %v98 = vsub.f32 %v69, %v95
    %v99 = vmul.f32 %v97, 1.442695
    %v100 = vpow.pop %v99
    %v101 = vmul.f32 %v98, 1.442695
    %v102 = vpow.pop %v101
    %v103 = vld [vmem:[#allocation3] sm:$0xff]
    %v104 = vld [vmem:[#allocation3 + $0x8] sm:$0xff]
    %v105 = vmul.f32 %v84, %v103
    %v106 = vmul.f32 %v86, %v104
    %v107 = vsel %vm72, %v100, 0.0
    %108 = vadd.xlane.f32.xlu0 %v107
    %v109 = vpop.xlane.xlu0 %108
    %v110 = vsel %vm72, %v102, 0.0
    %111 = vadd.xlane.f32.xlu0 %v110
    %v112 = vpop.xlane.xlu0 %111
    %v113 = vadd.f32 %v105, %v109
    %v114 = vadd.f32 %v106, %v112
    %vm115 = vcmask 7168
    %116 = vst.msk [vmem:[#allocation3] sm:$0xff] %vm115, %v113
    %117 = vst.msk [vmem:[#allocation3 + $0x8] sm:$0xff] %vm115, %v114
    %v118 = vld [vmem:[#allocation4] sm:$0xff]
    %v119 = vld [vmem:[#allocation4 + $0x8] sm:$0xff]
    %121 = vset.pattern.permute.xlu0 0
    %122 = vperm.xlu0 %121, %v84
    %v123 = vpop.permute.xlu0 %122
    %126 = vset.pattern.permute.xlu0 0
    %127 = vperm.xlu0 %126, %v86
    %v128 = vpop.permute.xlu0 %127
    %v130 = vmul.f32 %v123, %v118
    %v131 = vmul.f32 %v128, %v119
    %v132 = vpack.c.bf16 %v102, %v100
    %v133 = vld [vmem:[%s1] sm:$0xf]
    %v134 = vld [vmem:[%s1 + $0x4] sm:$0xf]
    %v137 = vunpack.c.l.b16 %v133
    %v138 = vunpack.c.l.b16 %v134
    %v139 = vpack.c.b16 %v138, %v137
    %v142 = vsel %vm72, %v132, 0
    %144 = vmatpush.bf16.msra.mxu0 0
    %145 = vmatpush.bf16.msra.mxu0 0
    %146 = vmatpush.bf16.msra.mxu0 0
    %147 = vmatpush.bf16.msra.mxu0 0
    %148 = vmatpush.bf16.msra.mxu0 0
    %149 = vmatpush.bf16.msra.mxu0 0
    %150 = vmatpush.bf16.msra.mxu0 0
    %151 = vmatpush.bf16.msra.mxu0 %v139
    %152 = vmatmul.bf16.gmra.mxu0 %v142
    %v153 = vpop.f32.mrf.mxu0
    %v154 = vadd.f32 0.0, %v153
    %v155 = vpop.f32.mrf.mxu0
    %v156 = vadd.f32 0.0, %v155
    %157 = vdwg.mxu0
    %v158 = vadd.f32 %v130, %v154
    %v159 = vadd.f32 %v131, %v156
    %160 = vst.msk [vmem:[#allocation4] sm:$0xff] %vm72, %v158
    %161 = vst.msk [vmem:[#allocation4 + $0x8] sm:$0xff] %vm72, %v159
    %162 = vst.msk [vmem:[#allocation2] sm:$0xff] %vm115, %v79
    %163 = vst.msk [vmem:[#allocation2 + $0x8] sm:$0xff] %vm115, %v80
  $region25: #{model_gat_forward.22} parent=0 // pred_fallthru
    _
  // Predicated region
  $region26: #{model_gat_forward.22} parent=0 // pred_check
    %p164 = pneg %p20
  $region27: #{model_gat_forward.22} parent=0 // pred_check_branch
    %166 = sbr.rel (%p164) target = $region29
  $region28: #{model_gat_forward.22} parent=0 // pred_region
    %v167 = vld [vmem:[#allocation3] sm:$0xff]
    %v168 = vld [vmem:[#allocation3 + $0x8] sm:$0xff]
    %vm169 = vcmp.gt.f32.partialorder %v167, 0.0
    %vm170 = vcmp.gt.f32.partialorder %v168, 0.0
    %v171 = vsel %vm169, %v167, 1.0
    %v172 = vsel %vm170, %v168, 1.0
    %v173 = vld [vmem:[#allocation4] sm:$0xff]
    %v174 = vld [vmem:[#allocation4 + $0x8] sm:$0xff]
    %176 = vset.pattern.permute.xlu0 0
    %177 = vperm.xlu0 %176, %v171
    %v178 = vpop.permute.xlu0 %177
    %181 = vset.pattern.permute.xlu0 0
    %182 = vperm.xlu0 %181, %v172
    %v183 = vpop.permute.xlu0 %182
    %v185 = vrcp.pop %v178
    %v186 = vmul.f32 %v178, %v185
    %v187 = vsub.f32 1.0, %v186
    %v188 = vmul.f32 %v185, %v187
    %v189 = vadd.f32 %v185, %v188
    %vm190 = vweird.f32 %v178
    %vm191 = vweird.f32 %v185
    %vm192 = vmor %vm190, %vm191
    %v193 = vsel %vm192, %v185, %v189
    %v194 = vand.u32 2147483647, %v178
    %vm195 = vcmp.eq.f32.partialorder %v194, 8.507059e+37
    %v196 = vand.u32 %v178, 2147483648
    %v197 = vor.u32 1.1754944e-38, %v196
    %v198 = vsel %vm195, %v197, %v193
    %v199 = vmul.f32 %v173, %v198
    %v200 = vrcp.pop %v183
    %v201 = vmul.f32 %v183, %v200
    %v202 = vsub.f32 1.0, %v201
    %v203 = vmul.f32 %v200, %v202
    %v204 = vadd.f32 %v200, %v203
    %vm205 = vweird.f32 %v183
    %vm206 = vweird.f32 %v200
    %vm207 = vmor %vm205, %vm206
    %v208 = vsel %vm207, %v200, %v204
    %v209 = vand.u32 2147483647, %v183
    %vm210 = vcmp.eq.f32.partialorder %v209, 8.507059e+37
    %v211 = vand.u32 %v183, 2147483648
    %v212 = vor.u32 1.1754944e-38, %v211
    %v213 = vsel %vm210, %v212, %v208
    %v214 = vmul.f32 %v174, %v213
    %vm215 = vcmp.gt.f32.partialorder %v199, 0.0
    %vm216 = vcmp.gt.f32.partialorder %v214, 0.0
    %v217 = vmin.f32 %v199, 0.0
    %v218 = vmin.f32 %v214, 0.0
    %v219 = vmul.f32 %v217, 1.442695
    %v220 = vpow.pop %v219
    %v221 = vmul.f32 %v218, 1.442695
    %v222 = vpow.pop %v221
    %v223 = vsub.f32 %v220, 1.0
    %v224 = vsub.f32 %v222, 1.0
    %v225 = vsel %vm215, %v199, %v223
    %v226 = vsel %vm216, %v214, %v224
    %v227 = vpack.c.bf16 %v225, %v225
    %v228 = vpack.c.bf16 %v226, %v226
    %vm229 = vcmask 125952
    %230 = vst.msk [vmem:[%s5] sm:$0xf] %vm229, %v227
    %231 = vst.msk [vmem:[%s5 + $0x4] sm:$0xf] %vm229, %v228
  $region29: #{model_gat_forward.22} parent=0 // pred_fallthru
    _
  // Predicated region
  $region30: #{model_gat_forward.22} parent=0 // pred_check
    _
  $region31: #{model_gat_forward.22} parent=0 // pred_check_branch
    %233 = sbr.rel (0) target = $region33
  $region32: #{model_gat_forward.22} parent=0 // pred_region
    _
  $region33: #{model_gat_forward.22} parent=0 // pred_fallthru
    _
  // Predicated region
  $region34: #{model_gat_forward.22} parent=0 // pred_check
    _
  $region35: #{model_gat_forward.22} parent=0 // pred_check_branch
    %235 = sbr.rel (0) target = $region37
  $region36: #{model_gat_forward.22} parent=0 // pred_region
    _
  $region37: #{model_gat_forward.22} parent=0 // pred_fallthru
    _

// kernel: model_gat_forward.23
$region0: #{model_gat_forward.23}
  #allocation0 [shape = 'u32[]', space=smem, size = 0x4, offset = 0x4, fixed_abs, tag = 'smem constant byte address 0x4 - core index']
  #allocation1 [shape = 'u32[72,128]{1,0:T(1,128)}', space=vmem, size = 0x9000, scoped, tag = 'internal scratch']
  %s0 = inlined_call_operand.vmem [shape: bf16[16,16], index: 0, kind: input, shape index: {}]
  %s1 = inlined_call_operand.vmem [shape: f32[16,16], index: 1, kind: input, shape index: {}]
  %s2 = inlined_call_operand.vmem [shape: f32[16,8], index: 2, kind: input, shape index: {}]
  %s3 = inlined_call_operand.vmem [shape: f32[1,8], index: 3, kind: input, shape index: {}]
  %s4 = inlined_call_operand.vmem [shape: f32[1,8], index: 4, kind: input, shape index: {}]
  %s5 = inlined_call_operand.vmem [shape: bf16[16,8], index: 5, kind: output, shape index: {0}]
  %s6 = inlined_call_operand.vmem [shape: f32[16,1], index: 6, kind: output, shape index: {1}]
  %s7 = inlined_call_operand.vmem [shape: f32[16,1], index: 7, kind: output, shape index: {2}]
  %8 = xla_tuple %s5, %s6, %s7
  %s9 = sld [smem:[#allocation0]]
  $region46: #{model_gat_forward.23} parent=0
    _
  %s11 = ssub.s32 1, %s9
  %s12 = scalar_select 0, %s11, %s9
  // Predicated region
  $region2: #{model_gat_forward.23} parent=0 // pred_check
    _
  $region3: #{model_gat_forward.23} parent=0 // pred_check_branch
    %14 = sbr.rel (0) target = $region5
  $region4: #{model_gat_forward.23} parent=0 // pred_region
    _
  $region5: #{model_gat_forward.23} parent=0 // pred_fallthru
    _
  // Predicated region
  $region6: #{model_gat_forward.23} parent=0 // pred_check
    _
  $region7: #{model_gat_forward.23} parent=0 // pred_check_branch
    %16 = sbr.rel (0) target = $region9
  $region8: #{model_gat_forward.23} parent=0 // pred_region
    _
  $region9: #{model_gat_forward.23} parent=0 // pred_fallthru
    _
  // Predicated region
  $region10: #{model_gat_forward.23} parent=0 // pred_check
    _
  $region11: #{model_gat_forward.23} parent=0 // pred_check_branch
    %18 = sbr.rel (0) target = $region13
  $region12: #{model_gat_forward.23} parent=0 // pred_region
    _
  $region13: #{model_gat_forward.23} parent=0 // pred_fallthru
    _
  // Predicated region
  $region14: #{model_gat_forward.23} parent=0 // pred_check
    _
  $region15: #{model_gat_forward.23} parent=0 // pred_check_branch
    %20 = sbr.rel (0) target = $region17
  $region16: #{model_gat_forward.23} parent=0 // pred_region
    _
  $region17: #{model_gat_forward.23} parent=0 // pred_fallthru
    _
  // Predicated region
  $region18: #{model_gat_forward.23} parent=0 // pred_check
    _
  $region19: #{model_gat_forward.23} parent=0 // pred_check_branch
    %22 = sbr.rel (0) target = $region21
  $region20: #{model_gat_forward.23} parent=0 // pred_region
    _
  $region21: #{model_gat_forward.23} parent=0 // pred_fallthru
    _
  %v24 = vld [vmem:[%s0] sm:$0xf]
  %v25 = vld [vmem:[%s0 + $0x4] sm:$0xf]
  %v26 = vunpack.c.l.bf16 %v24
  %v27 = vunpack.c.l.bf16 %v25
  %v28 = vmul.f32 %v26, 0.5
  %v29 = vmul.f32 %v27, 0.5
  %v30 = vld [vmem:[%s1] sm:$0xff]
  %v31 = vld [vmem:[%s1 + $0x8] sm:$0xff]
  %v32 = vmul.f32 %v30, 0.5
  %v33 = vmul.f32 %v31, 0.5
  %v34 = vadd.f32 %v28, %v32
  %v35 = vadd.f32 %v29, %v33
  %v36 = vpack.c.bf16 %v35, %v34
  %v37 = vld [vmem:[%s2] sm:$0xff]
  %v38 = vld [vmem:[%s2 + $0x8] sm:$0xff]
  %v39 = vpack.c.bf16 %v38, %v37
  %vm40 = vcmask 130048
  %v42 = vsel %vm40, %v36, 0
  %44 = vmatpush.bf16.msra.mxu0 0
  %45 = vmatpush.bf16.msra.mxu0 0
  %46 = vmatpush.bf16.msra.mxu0 0
  %47 = vmatpush.bf16.msra.mxu0 0
  %48 = vmatpush.bf16.msra.mxu0 0
  %49 = vmatpush.bf16.msra.mxu0 0
  %50 = vmatpush.bf16.msra.mxu0 0
  %51 = vmatpush.bf16.msra.mxu0 %v39
  %52 = vmatmul.bf16.gmra.mxu0 %v42
  %v53 = vpop.f32.mrf.mxu0
  %v54 = vadd.f32 0.0, %v53
  %v55 = vpop.f32.mrf.mxu0
  %v56 = vadd.f32 0.0, %v55
  %57 = vdwg.mxu0
  %v58 = vpack.c.bf16 %v54, %v54
  %v59 = vpack.c.bf16 %v56, %v56
  %vm60 = vcmask 60416
  %61 = vst.msk [vmem:[%s5] sm:$0xf] %vm60, %v58
  %62 = vst.msk [vmem:[%s5 + $0x4] sm:$0xf] %vm60, %v59
  %v63 = vld [vmem:[%s3] sm:$0x1]
  %v65 = vperm.slane %v63, 0
  %v67 = vmul.f32 %v54, %v65
  %v68 = vmul.f32 %v56, %v65
  %vm69 = vcmask 64512
  %v70 = vsel %vm69, %v67, 0.0
  %71 = vadd.xlane.f32.xlu0 %v70
  %v72 = vpop.xlane.xlu0 %71
  %v73 = vsel %vm69, %v68, 0.0
  %74 = vadd.xlane.f32.xlu0 %v73
  %v75 = vpop.xlane.xlu0 %74
  %vm76 = vcmask 7168
  %77 = vst.msk [vmem:[%s6] sm:$0xff] %vm76, %v72
  %78 = vst.msk [vmem:[%s6 + $0x8] sm:$0xff] %vm76, %v75
  %v79 = vld [vmem:[%s4] sm:$0x1]
  %v81 = vperm.slane %v79, 0
  %v83 = vmul.f32 %v54, %v81
  %v84 = vmul.f32 %v56, %v81
  %v85 = vsel %vm69, %v83, 0.0
  %86 = vadd.xlane.f32.xlu0 %v85
  %v87 = vpop.xlane.xlu0 %86
  %v88 = vsel %vm69, %v84, 0.0
  %89 = vadd.xlane.f32.xlu0 %v88
  %v90 = vpop.xlane.xlu0 %89
  %91 = vst.msk [vmem:[%s7] sm:$0xff] %vm76, %v87
  %92 = vst.msk [vmem:[%s7 + $0x8] sm:$0xff] %vm76, %v90
  // Predicated region
  $region22: #{model_gat_forward.23} parent=0 // pred_check
    _
  $region23: #{model_gat_forward.23} parent=0 // pred_check_branch
    %94 = sbr.rel (0) target = $region25
  $region24: #{model_gat_forward.23} parent=0 // pred_region
    _
  $region25: #{model_gat_forward.23} parent=0 // pred_fallthru
    _
  // Predicated region
  $region26: #{model_gat_forward.23} parent=0 // pred_check
    _
  $region27: #{model_gat_forward.23} parent=0 // pred_check_branch
    %96 = sbr.rel (0) target = $region29
  $region28: #{model_gat_forward.23} parent=0 // pred_region
    _
  $region29: #{model_gat_forward.23} parent=0 // pred_fallthru
    _
  // Predicated region
  $region30: #{model_gat_forward.23} parent=0 // pred_check
    _
  $region31: #{model_gat_forward.23} parent=0 // pred_check_branch
    %98 = sbr.rel (0) target = $region33
  $region32: #{model_gat_forward.23} parent=0 // pred_region
    _
  $region33: #{model_gat_forward.23} parent=0 // pred_fallthru
    _
  // Predicated region
  $region34: #{model_gat_forward.23} parent=0 // pred_check
    _
  $region35: #{model_gat_forward.23} parent=0 // pred_check_branch
    %100 = sbr.rel (0) target = $region37
  $region36: #{model_gat_forward.23} parent=0 // pred_region
    _
  $region37: #{model_gat_forward.23} parent=0 // pred_fallthru
    _
  // Predicated region
  $region38: #{model_gat_forward.23} parent=0 // pred_check
    _
  $region39: #{model_gat_forward.23} parent=0 // pred_check_branch
    %102 = sbr.rel (0) target = $region41
  $region40: #{model_gat_forward.23} parent=0 // pred_region
    _
  $region41: #{model_gat_forward.23} parent=0 // pred_fallthru
    _
  // Predicated region
  $region42: #{model_gat_forward.23} parent=0 // pred_check
    _
  $region43: #{model_gat_forward.23} parent=0 // pred_check_branch
    %104 = sbr.rel (0) target = $region45
  $region44: #{model_gat_forward.23} parent=0 // pred_region
    _
  $region45: #{model_gat_forward.23} parent=0 // pred_fallthru
    _

// kernel: model_gat_forward.14
$region0: #{model_gat_forward.14}
  #allocation0 [shape = 'u32[]', space=smem, size = 0x4, offset = 0x4, fixed_abs, tag = 'smem constant byte address 0x4 - core index']
  #allocation1 [shape = 'u32[72,128]{1,0:T(1,128)}', space=vmem, size = 0x9000, scoped, tag = 'internal scratch']
  %s0 = inlined_call_operand.vmem [shape: f32[16,16], index: 0, kind: input, shape index: {}]
  %s1 = inlined_call_operand.vmem [shape: f32[16,32], index: 1, kind: input, shape index: {}]
  %s2 = inlined_call_operand.vmem [shape: f32[1,32], index: 2, kind: input, shape index: {}]
  %s3 = inlined_call_operand.vmem [shape: f32[32,64], index: 3, kind: input, shape index: {}]
  %s4 = inlined_call_operand.vmem [shape: f32[1,64], index: 4, kind: input, shape index: {}]
  %s5 = inlined_call_operand.vmem [shape: f32[64,64], index: 5, kind: input, shape index: {}]
  %s6 = inlined_call_operand.vmem [shape: f32[1,64], index: 6, kind: input, shape index: {}]
  %s7 = inlined_call_operand.vmem [shape: f32[64,32], index: 7, kind: input, shape index: {}]
  %s8 = inlined_call_operand.vmem [shape: f32[1,32], index: 8, kind: input, shape index: {}]
  %s9 = inlined_call_operand.hbm [shape: f32[16,32], index: 9, kind: output, shape index: {}]
  %s10 = sld [smem:[#allocation0]]
  $region46: #{model_gat_forward.14} parent=0
    _
  %s12 = ssub.s32 1, %s10
  %s13 = scalar_select 0, %s12, %s10
  $region1: #{model_gat_forward.14} parent=0
    #allocation2 [shape = 'u8[8192]{0}', space=vmem, size = 0x2000, scoped, tag = 'output window, operand 0, single buffered']
    #allocation3 [shape = 's32[1]{0}', space=sflag, size = 0x4, scoped, tag = 'scoped memory for model_gat_forward.14']
    %14 = vsyncpa [#allocation3], 0
    // Predicated region
    $region2: #{model_gat_forward.14} parent=1 // pred_check
      _
    $region3: #{model_gat_forward.14} parent=1 // pred_check_branch
      %16 = sbr.rel (0) target = $region5
    $region4: #{model_gat_forward.14} parent=1 // pred_region
      _
    $region5: #{model_gat_forward.14} parent=1 // pred_fallthru
      _
    // Predicated region
    $region6: #{model_gat_forward.14} parent=1 // pred_check
      _
    $region7: #{model_gat_forward.14} parent=1 // pred_check_branch
      %18 = sbr.rel (0) target = $region9
    $region8: #{model_gat_forward.14} parent=1 // pred_region
      _
    $region9: #{model_gat_forward.14} parent=1 // pred_fallthru
      _
    // Predicated region
    $region10: #{model_gat_forward.14} parent=1 // pred_check
      _
    $region11: #{model_gat_forward.14} parent=1 // pred_check_branch
      %20 = sbr.rel (0) target = $region13
    $region12: #{model_gat_forward.14} parent=1 // pred_region
      _
    $region13: #{model_gat_forward.14} parent=1 // pred_fallthru
      _
    // Predicated region
    $region14: #{model_gat_forward.14} parent=1 // pred_check
      _
    $region15: #{model_gat_forward.14} parent=1 // pred_check_branch
      %22 = sbr.rel (0) target = $region17
    $region16: #{model_gat_forward.14} parent=1 // pred_region
      _
    $region17: #{model_gat_forward.14} parent=1 // pred_fallthru
      _
    // Predicated region
    $region18: #{model_gat_forward.14} parent=1 // pred_check
      _
    $region19: #{model_gat_forward.14} parent=1 // pred_check_branch
      %24 = sbr.rel (0) target = $region21
    $region20: #{model_gat_forward.14} parent=1 // pred_region
      _
    $region21: #{model_gat_forward.14} parent=1 // pred_fallthru
      _
    // Predicated region
    $region22: #{model_gat_forward.14} parent=1 // pred_check
      _
    $region23: #{model_gat_forward.14} parent=1 // pred_check_branch
      %26 = sbr.rel (0) target = $region25
    $region24: #{model_gat_forward.14} parent=1 // pred_region
      _
    $region25: #{model_gat_forward.14} parent=1 // pred_fallthru
      _
    // Predicated region
    $region26: #{model_gat_forward.14} parent=1 // pred_check
      _
    $region27: #{model_gat_forward.14} parent=1 // pred_check_branch
      %28 = sbr.rel (0) target = $region29
    $region28: #{model_gat_forward.14} parent=1 // pred_region
      _
    $region29: #{model_gat_forward.14} parent=1 // pred_fallthru
      _
    // Predicated region
    $region30: #{model_gat_forward.14} parent=1 // pred_check
      _
    $region31: #{model_gat_forward.14} parent=1 // pred_check_branch
      %30 = sbr.rel (0) target = $region33
    $region32: #{model_gat_forward.14} parent=1 // pred_region
      _
    $region33: #{model_gat_forward.14} parent=1 // pred_fallthru
      _
    // Predicated region
    $region34: #{model_gat_forward.14} parent=1 // pred_check
      _
    $region35: #{model_gat_forward.14} parent=1 // pred_check_branch
      %32 = sbr.rel (0) target = $region37
    $region36: #{model_gat_forward.14} parent=1 // pred_region
      _
    $region37: #{model_gat_forward.14} parent=1 // pred_fallthru
      _
    %v34 = vld [vmem:[%s0] sm:$0xff]
    %v35 = vld [vmem:[%s0 + $0x8] sm:$0xff]
    %v36 = vpack.c.bf16 %v35, %v34
    %v37 = vld [vmem:[%s1] sm:$0xff]
    %v38 = vld [vmem:[%s1 + $0x8] sm:$0xff]
    %v39 = vpack.c.bf16 %v38, %v37
    %v40 = vld [vmem:[%s2] sm:$0x1]
    %v42 = vperm.slane %v40, 0
    %vm44 = vcmask 130048
    %v46 = vsel %vm44, %v36, 0
    %48 = vmatpush.bf16.msra.mxu0 0
    %49 = vmatpush.bf16.msra.mxu0 0
    %50 = vmatpush.bf16.msra.mxu0 0
    %51 = vmatpush.bf16.msra.mxu0 0
    %52 = vmatpush.bf16.msra.mxu0 0
    %53 = vmatpush.bf16.msra.mxu0 0
    %54 = vmatpush.bf16.msra.mxu0 0
    %55 = vmatpush.bf16.msra.mxu0 %v39
    %56 = vmatmul.bf16.gmra.mxu0 %v46
    %v57 = vpop.f32.mrf.mxu0
    %v58 = vadd.f32 %v42, %v57
    %v59 = vpop.f32.mrf.mxu0
    %v60 = vadd.f32 %v42, %v59
    %61 = vdwg.mxu0
    %v62 = vmax.f32 %v58, 0.0
    %v63 = vmax.f32 %v60, 0.0
    %v64 = vpack.c.bf16 %v63, %v62
    %v65 = vld [vmem:[%s3] sm:$0xff]
    %v66 = vld [vmem:[%s3 + $0x8] sm:$0xff]
    %v67 = vld [vmem:[%s3 + $0x10] sm:$0xff]
    %v68 = vld [vmem:[%s3 + $0x18] sm:$0xff]
    %v69 = vpack.c.bf16 %v66, %v65
    %v70 = vpack.c.bf16 %v68, %v67
    %v71 = vld [vmem:[%s4] sm:$0x1]
    %v73 = vperm.slane %v71, 0
    %vm75 = vcmask 261120
    %v77 = vsel %vm75, %v64, 0
    %79 = vmatpush.bf16.msra.mxu0 0
    %80 = vmatpush.bf16.msra.mxu0 0
    %81 = vmatpush.bf16.msra.mxu0 0
    %82 = vmatpush.bf16.msra.mxu0 0
    %83 = vmatpush.bf16.msra.mxu0 0
    %84 = vmatpush.bf16.msra.mxu0 0
    %85 = vmatpush.bf16.msra.mxu0 %v70
    %86 = vmatpush.bf16.msra.mxu0 %v69
    %87 = vmatmul.bf16.gmra.mxu0 %v77
    %v88 = vpop.f32.mrf.mxu0
    %v89 = vadd.f32 %v73, %v88
    %v90 = vpop.f32.mrf.mxu0
    %v91 = vadd.f32 %v73, %v90
    %92 = vdwg.mxu0
    %v93 = vmax.f32 %v89, 0.0
    %v94 = vmax.f32 %v91, 0.0
    %v95 = vpack.c.bf16 %v94, %v93
    %v96 = vld [vmem:[%s5] sm:$0xff]
    %v97 = vld [vmem:[%s5 + $0x8] sm:$0xff]
    %v98 = vld [vmem:[%s5 + $0x10] sm:$0xff]
    %v99 = vld [vmem:[%s5 + $0x18] sm:$0xff]
    %v100 = vld [vmem:[%s5 + $0x20] sm:$0xff]
    %v101 = vld [vmem:[%s5 + $0x28] sm:$0xff]
    %v102 = vld [vmem:[%s5 + $0x30] sm:$0xff]
    %v103 = vld [vmem:[%s5 + $0x38] sm:$0xff]
    %v104 = vpack.c.bf16 %v97, %v96
    %v105 = vpack.c.bf16 %v99, %v98
    %v106 = vpack.c.bf16 %v101, %v100
    %v107 = vpack.c.bf16 %v103, %v102
    %v108 = vld [vmem:[%s6] sm:$0x1]
    %v110 = vperm.slane %v108, 0
    %vm112 = vcmask 523264
    %v114 = vsel %vm112, %v95, 0
    %116 = vmatpush.bf16.msra.mxu0 0
    %117 = vmatpush.bf16.msra.mxu0 0
    %118 = vmatpush.bf16.msra.mxu0 0
    %119 = vmatpush.bf16.msra.mxu0 0
    %120 = vmatpush.bf16.msra.mxu0 %v107
    %121 = vmatpush.bf16.msra.mxu0 %v106
    %122 = vmatpush.bf16.msra.mxu0 %v105
    %123 = vmatpush.bf16.msra.mxu0 %v104
    %124 = vmatmul.bf16.gmra.mxu0 %v114
    %v125 = vpop.f32.mrf.mxu0
    %v126 = vadd.f32 %v110, %v125
    %v127 = vpop.f32.mrf.mxu0
    %v128 = vadd.f32 %v110, %v127
    %129 = vdwg.mxu0
    %v130 = vmax.f32 %v126, 0.0
    %v131 = vmax.f32 %v128, 0.0
    %v132 = vpack.c.bf16 %v131, %v130
    %v133 = vld [vmem:[%s7] sm:$0xff]
    %v134 = vld [vmem:[%s7 + $0x8] sm:$0xff]
    %v135 = vld [vmem:[%s7 + $0x10] sm:$0xff]
    %v136 = vld [vmem:[%s7 + $0x18] sm:$0xff]
    %v137 = vld [vmem:[%s7 + $0x20] sm:$0xff]
    %v138 = vld [vmem:[%s7 + $0x28] sm:$0xff]
    %v139 = vld [vmem:[%s7 + $0x30] sm:$0xff]
    %v140 = vld [vmem:[%s7 + $0x38] sm:$0xff]
    %v141 = vpack.c.bf16 %v134, %v133
    %v142 = vpack.c.bf16 %v136, %v135
    %v143 = vpack.c.bf16 %v138, %v137
    %v144 = vpack.c.bf16 %v140, %v139
    %v145 = vld [vmem:[%s8] sm:$0x1]
    %v147 = vperm.slane %v145, 0
    %v150 = vsel %vm112, %v132, 0
    %152 = vmatpush.bf16.msra.mxu0 0
    %153 = vmatpush.bf16.msra.mxu0 0
    %154 = vmatpush.bf16.msra.mxu0 0
    %155 = vmatpush.bf16.msra.mxu0 0
    %156 = vmatpush.bf16.msra.mxu0 %v144
    %157 = vmatpush.bf16.msra.mxu0 %v143
    %158 = vmatpush.bf16.msra.mxu0 %v142
    %159 = vmatpush.bf16.msra.mxu0 %v141
    %160 = vmatmul.bf16.gmra.mxu0 %v150
    %v161 = vpop.f32.mrf.mxu0
    %v162 = vadd.f32 %v147, %v161
    %v163 = vpop.f32.mrf.mxu0
    %v164 = vadd.f32 %v147, %v163
    %165 = vdwg.mxu0
    %166 = vst.msk [vmem:[#allocation2] sm:$0xff] %vm75, %v162
    %167 = vst.msk [vmem:[#allocation2 + $0x8] sm:$0xff] %vm75, %v164
    // Predicated region
    $region38: #{model_gat_forward.14} parent=1 // pred_check
      _
    $region39: #{model_gat_forward.14} parent=1 // pred_check_branch
      %169 = sbr.rel (0) target = $region41
    $region40: #{model_gat_forward.14} parent=1 // pred_region
      %171 = vsyncadd [#allocation3], 0
      %s172 = sshll.u32 [#allocation2], 4
      %s173 = int_to_ptr.vmem [resolvable:$true] %s172
      %s174 = sshll.u32 %s9, 4
      %s175 = int_to_ptr.hbm [resolvable:$true] %s174
      %180 = dma.vmem_to_hbm [thread:$0]  %s173, 256, %s175, [#allocation3], 128, 128, 8
    $region41: #{model_gat_forward.14} parent=1 // pred_fallthru
      _
    // Predicated region
    $region42: #{model_gat_forward.14} parent=1 // pred_check
      _
    $region43: #{model_gat_forward.14} parent=1 // pred_check_branch
      %182 = sbr.rel (0) target = $region45
    $region44: #{model_gat_forward.14} parent=1 // pred_region
      %184 = dma.done [#allocation3], 256
    $region45: #{model_gat_forward.14} parent=1 // pred_fallthru
      _
    %185 = vsyncpa [#allocation3], 1

// kernel: model_gat_forward.25
$region0: #{model_gat_forward.25}
  #allocation0 [shape = 'u32[]', space=smem, size = 0x4, offset = 0x4, fixed_abs, tag = 'smem constant byte address 0x4 - core index']
  #allocation1 [shape = 'u32[72,128]{1,0:T(1,128)}', space=vmem, size = 0x9000, scoped, tag = 'internal scratch']
  %s0 = inlined_call_operand.vmem [shape: f32[16,16], index: 0, kind: input, shape index: {}]
  %s1 = inlined_call_operand.vmem [shape: f32[16,8], index: 1, kind: input, shape index: {}]
  %s2 = inlined_call_operand.vmem [shape: f32[1,8], index: 2, kind: input, shape index: {}]
  %s3 = inlined_call_operand.vmem [shape: f32[16,8], index: 3, kind: output, shape index: {}]
  %s4 = sld [smem:[#allocation0]]
  $region22: #{model_gat_forward.25} parent=0
    _
  %s6 = ssub.s32 1, %s4
  %s7 = scalar_select 0, %s6, %s4
  // Predicated region
  $region2: #{model_gat_forward.25} parent=0 // pred_check
    _
  $region3: #{model_gat_forward.25} parent=0 // pred_check_branch
    %9 = sbr.rel (0) target = $region5
  $region4: #{model_gat_forward.25} parent=0 // pred_region
    _
  $region5: #{model_gat_forward.25} parent=0 // pred_fallthru
    _
  // Predicated region
  $region6: #{model_gat_forward.25} parent=0 // pred_check
    _
  $region7: #{model_gat_forward.25} parent=0 // pred_check_branch
    %11 = sbr.rel (0) target = $region9
  $region8: #{model_gat_forward.25} parent=0 // pred_region
    _
  $region9: #{model_gat_forward.25} parent=0 // pred_fallthru
    _
  // Predicated region
  $region10: #{model_gat_forward.25} parent=0 // pred_check
    _
  $region11: #{model_gat_forward.25} parent=0 // pred_check_branch
    %13 = sbr.rel (0) target = $region13
  $region12: #{model_gat_forward.25} parent=0 // pred_region
    _
  $region13: #{model_gat_forward.25} parent=0 // pred_fallthru
    _
  %v14 = vld [vmem:[%s0] sm:$0xff]
  %v15 = vld [vmem:[%s0 + $0x8] sm:$0xff]
  %v16 = vmul.f32 %v14, %v14
  %v17 = vmul.f32 %v15, %v15
  %vm18 = vcmask 130048
  %v19 = vsel %vm18, %v16, 0.0
  %20 = vadd.xlane.f32.xlu0 %v19
  %v21 = vpop.xlane.xlu0 %20
  %v22 = vsel %vm18, %v17, 0.0
  %23 = vadd.xlane.f32.xlu0 %v22
  %v24 = vpop.xlane.xlu0 %23
  %v25 = vld [vmem:[%s1] sm:$0xff]
  %v26 = vld [vmem:[%s1 + $0x8] sm:$0xff]
  %v28 = vsel %vm18, %v14, 0
  %v31 = vsel %vm18, %v15, 0
  %33 = vmatpush.msra.mxu0 0.0
  %34 = vmatpush.msra.mxu0 0.0
  %35 = vmatpush.msra.mxu0 0.0
  %36 = vmatpush.msra.mxu0 0.0
  %37 = vmatpush.msra.mxu0 0.0
  %38 = vmatpush.msra.mxu0 0.0
  %39 = vmatpush.msra.mxu0 0.0
  %40 = vmatpush.msra.mxu0 0.0
  %41 = vmatpush.msra.mxu0 0.0
  %42 = vmatpush.msra.mxu0 0.0
  %43 = vmatpush.msra.mxu0 0.0
  %44 = vmatpush.msra.mxu0 0.0
  %45 = vmatpush.msra.mxu0 0.0
  %46 = vmatpush.msra.mxu0 0.0
  %47 = vmatpush.msra.mxu0 %v26
  %48 = vmatpush.msra.mxu0 %v25
  %49 = vmatmul.f32.gmra.mxu0 %v28
  %v50 = vpop.f32.mrf.mxu0
  %v51 = vadd.f32 0.0, %v50
  %52 = vmatmul.f32.gmra.mxu0 %v31
  %v53 = vpop.f32.mrf.mxu0
  %v54 = vadd.f32 0.0, %v53
  %55 = vdwg.mxu0
  %v56 = vld [vmem:[%s2] sm:$0x1]
  %v58 = vperm.slane %v56, 0
  %v60 = vadd.f32 %v21, %v58
  %v61 = vadd.f32 %v24, %v58
  %v62 = vmul.f32 %v51, 2.0
  %v63 = vmul.f32 %v54, 2.0
  %v64 = vsub.f32 %v60, %v62
  %v65 = vsub.f32 %v61, %v63
  %v66 = vmax.f32 %v64, 0.0
  %v67 = vmax.f32 %v65, 0.0
  %v68 = vadd.f32 %v66, 1.0
  %v69 = vadd.f32 %v67, 1.0
  %v70 = vrcp.pop %v68
  %v71 = vmul.f32 %v68, %v70
  %v72 = vsub.f32 1.0, %v71
  %v73 = vmul.f32 %v70, %v72
  %v74 = vadd.f32 %v70, %v73
  %vm75 = vweird.f32 %v68
  %vm76 = vweird.f32 %v70
  %vm77 = vmor %vm75, %vm76
  %v78 = vsel %vm77, %v70, %v74
  %v79 = vand.u32 2147483647, %v68
  %vm80 = vcmp.eq.f32.partialorder %v79, 8.507059e+37
  %v81 = vand.u32 %v68, 2147483648
  %v82 = vor.u32 1.1754944e-38, %v81
  %v83 = vsel %vm80, %v82, %v78
  %v84 = vmul.f32 1.0, %v83
  %v85 = vrcp.pop %v69
  %v86 = vmul.f32 %v69, %v85
  %v87 = vsub.f32 1.0, %v86
  %v88 = vmul.f32 %v85, %v87
  %v89 = vadd.f32 %v85, %v88
  %vm90 = vweird.f32 %v69
  %vm91 = vweird.f32 %v85
  %vm92 = vmor %vm90, %vm91
  %v93 = vsel %vm92, %v85, %v89
  %v94 = vand.u32 2147483647, %v69
  %vm95 = vcmp.eq.f32.partialorder %v94, 8.507059e+37
  %v96 = vand.u32 %v69, 2147483648
  %v97 = vor.u32 1.1754944e-38, %v96
  %v98 = vsel %vm95, %v97, %v93
  %v99 = vmul.f32 1.0, %v98
  %vm100 = vcmask 64512
  %v101 = vsel %vm100, %v84, 0.0
  %102 = vadd.xlane.f32.xlu0 %v101
  %v103 = vpop.xlane.xlu0 %102
  %v104 = vsel %vm100, %v99, 0.0
  %105 = vadd.xlane.f32.xlu0 %v104
  %v106 = vpop.xlane.xlu0 %105
  %v107 = vrcp.pop %v103
  %v108 = vmul.f32 %v103, %v107
  %v109 = vsub.f32 1.0, %v108
  %v110 = vmul.f32 %v107, %v109
  %v111 = vadd.f32 %v107, %v110
  %vm112 = vweird.f32 %v103
  %vm113 = vweird.f32 %v107
  %vm114 = vmor %vm112, %vm113
  %v115 = vsel %vm114, %v107, %v111
  %v116 = vand.u32 2147483647, %v103
  %vm117 = vcmp.eq.f32.partialorder %v116, 8.507059e+37
  %v118 = vand.u32 %v103, 2147483648
  %v119 = vor.u32 1.1754944e-38, %v118
  %v120 = vsel %vm117, %v119, %v115
  %v121 = vmul.f32 %v84, %v120
  %v122 = vrcp.pop %v106
  %v123 = vmul.f32 %v106, %v122
  %v124 = vsub.f32 1.0, %v123
  %v125 = vmul.f32 %v122, %v124
  %v126 = vadd.f32 %v122, %v125
  %vm127 = vweird.f32 %v106
  %vm128 = vweird.f32 %v122
  %vm129 = vmor %vm127, %vm128
  %v130 = vsel %vm129, %v122, %v126
  %v131 = vand.u32 2147483647, %v106
  %vm132 = vcmp.eq.f32.partialorder %v131, 8.507059e+37
  %v133 = vand.u32 %v106, 2147483648
  %v134 = vor.u32 1.1754944e-38, %v133
  %v135 = vsel %vm132, %v134, %v130
  %v136 = vmul.f32 %v99, %v135
  %137 = vst.msk [vmem:[%s3] sm:$0xff] %vm100, %v121
  %138 = vst.msk [vmem:[%s3 + $0x8] sm:$0xff] %vm100, %v136
  // Predicated region
  $region14: #{model_gat_forward.25} parent=0 // pred_check
    _
  $region15: #{model_gat_forward.25} parent=0 // pred_check_branch
    %140 = sbr.rel (0) target = $region17
  $region16: #{model_gat_forward.25} parent=0 // pred_region
    _
  $region17: #{model_gat_forward.25} parent=0 // pred_fallthru
    _
  // Predicated region
  $region18: #{model_gat_forward.25} parent=0 // pred_check
    _
  $region19: #{model_gat_forward.25} parent=0 // pred_check_branch
    %142 = sbr.rel (0) target = $region21
  $region20: #{model_gat_forward.25} parent=0 // pred_region
    _
  $region21: #{model_gat_forward.25} parent=0 // pred_fallthru
    _

// kernel: model_gat_forward.24
$region0: #{model_gat_forward.24}
  #allocation0 [shape = 'u32[]', space=smem, size = 0x4, offset = 0x4, fixed_abs, tag = 'smem constant byte address 0x4 - core index']
  #allocation1 [shape = 'u32[72,128]{1,0:T(1,128)}', space=vmem, size = 0x9000, scoped, tag = 'internal scratch']
  #allocation2 [shape = 'f32[16,1]{1,0:T(8,128)}', space=vmem, size = 0x2000, scoped, tag = 'scratch operand']
  #allocation3 [shape = 'f32[16,1]{1,0:T(8,128)}', space=vmem, size = 0x2000, scoped, tag = 'scratch operand']
  #allocation4 [shape = 'f32[16,8]{1,0:T(8,128)}', space=vmem, size = 0x2000, scoped, tag = 'scratch operand']
  #allocation5 [shape = 's32[1]{0}', space=sflag, size = 0x4, scoped, tag = 'scoped memory for model_gat_forward.24']
  #allocation6 [shape = 's32[1,1]{1,0:T(1,128)S(6)}', space=smem, size = 0x200, scoped, tag = 'prefetched SMEM operand 0']
  %s0 = inlined_call_operand.<no memory space> [shape: s32[1,1], index: 0, kind: input, shape index: {}]
  %s1 = inlined_call_operand.vmem [shape: bf16[16,8], index: 1, kind: input, shape index: {}]
  %s2 = inlined_call_operand.vmem [shape: f32[16,1], index: 2, kind: input, shape index: {}]
  %s3 = inlined_call_operand.vmem [shape: f32[1,16], index: 3, kind: input, shape index: {}]
  %s4 = inlined_call_operand.vmem [shape: bf16[16,16], index: 4, kind: input, shape index: {}]
  %s5 = inlined_call_operand.vmem [shape: f32[16,8], index: 5, kind: output, shape index: {}]
  %s6 = sld [smem:[#allocation0]]
  $region38: #{model_gat_forward.24} parent=0
    _
  %s8 = ssub.s32 1, %s6
  %s9 = scalar_select 0, %s8, %s6
  %10 = sst [smem:[#allocation6]] %s0
  // Predicated region
  $region2: #{model_gat_forward.24} parent=0 // pred_check
    _
  $region3: #{model_gat_forward.24} parent=0 // pred_check_branch
    %12 = sbr.rel (0) target = $region5
  $region4: #{model_gat_forward.24} parent=0 // pred_region
    _
  $region5: #{model_gat_forward.24} parent=0 // pred_fallthru
    _
  // Predicated region
  $region6: #{model_gat_forward.24} parent=0 // pred_check
    _
  $region7: #{model_gat_forward.24} parent=0 // pred_check_branch
    %14 = sbr.rel (0) target = $region9
  $region8: #{model_gat_forward.24} parent=0 // pred_region
    _
  $region9: #{model_gat_forward.24} parent=0 // pred_fallthru
    _
  // Predicated region
  $region10: #{model_gat_forward.24} parent=0 // pred_check
    _
  $region11: #{model_gat_forward.24} parent=0 // pred_check_branch
    %16 = sbr.rel (0) target = $region13
  $region12: #{model_gat_forward.24} parent=0 // pred_region
    _
  $region13: #{model_gat_forward.24} parent=0 // pred_fallthru
    _
  // Predicated region
  $region14: #{model_gat_forward.24} parent=0 // pred_check
    _
  $region15: #{model_gat_forward.24} parent=0 // pred_check_branch
    %18 = sbr.rel (0) target = $region17
  $region16: #{model_gat_forward.24} parent=0 // pred_region
    _
  $region17: #{model_gat_forward.24} parent=0 // pred_fallthru
    _
  %p20 = scmp.eq.s32.totalorder 0, 0
  // Predicated region
  $region18: #{model_gat_forward.24} parent=0 // pred_check
    %p21 = pneg %p20
  $region19: #{model_gat_forward.24} parent=0 // pred_check_branch
    %23 = sbr.rel (%p21) target = $region21
  $region20: #{model_gat_forward.24} parent=0 // pred_region
    %vm24 = vcmask 7168
    %25 = vst.msk [vmem:[#allocation2] sm:$0xff] %vm24, -inf
    %26 = vst.msk [vmem:[#allocation2 + $0x8] sm:$0xff] %vm24, -inf
    %27 = vst.msk [vmem:[#allocation3] sm:$0xff] %vm24, 0.0
    %28 = vst.msk [vmem:[#allocation3 + $0x8] sm:$0xff] %vm24, 0.0
    %vm29 = vcmask 64512
    %30 = vst.msk [vmem:[#allocation4] sm:$0xff] %vm29, 0.0
    %31 = vst.msk [vmem:[#allocation4 + $0x8] sm:$0xff] %vm29, 0.0
  $region21: #{model_gat_forward.24} parent=0 // pred_fallthru
    _
  %s32 = sadd.s32 0, 0
  %s33 = smul.u32 %s32, 128
  %s34 = sadd.s32 %s33, 0
  %s35 = sld [smem:[#allocation6 + %s34]]
  %p36 = scmp.gt.s32.totalorder %s35, 0
  // Predicated region
  $region22: #{model_gat_forward.24} parent=0 // pred_check
    %p37 = pneg %p36
  $region23: #{model_gat_forward.24} parent=0 // pred_check_branch
    %39 = sbr.rel (%p37) target = $region25
  $region24: #{model_gat_forward.24} parent=0 // pred_region
    %v40 = vld [vmem:[%s2] sm:$0xff]
    %v41 = vld [vmem:[%s2 + $0x8] sm:$0xff]
    %v42 = vld [vmem:[%s3] sm:$0x1]
    %44 = vset.pattern.permute.xlu0 0
    %45 = vperm.xlu0 %44, %v40
    %v46 = vpop.permute.xlu0 %45
    %49 = vset.pattern.permute.xlu0 0
    %50 = vperm.xlu0 %49, %v41
    %v51 = vpop.permute.xlu0 %50
    %v54 = vperm.slane %v42, 0
    %v56 = vadd.f32 %v46, %v54
    %v57 = vadd.f32 %v51, %v54
    %vm58 = vcmp.gt.f32.partialorder %v56, 0.0
    %vm59 = vcmp.gt.f32.partialorder %v57, 0.0
    %v60 = vmul.f32 %v56, 0.2
    %v61 = vmul.f32 %v57, 0.2
    %v62 = vsel %vm58, %v56, %v60
    %v63 = vsel %vm59, %v57, %v61
    %v64 = vld [vmem:[%s4] sm:$0xf]
    %v65 = vld [vmem:[%s4 + $0x4] sm:$0xf]
    %v66 = vunpack.c.l.bf16 %v64
    %v67 = vunpack.c.l.bf16 %v65
    %v68 = vadd.f32 %v62, %v66
    %v69 = vadd.f32 %v63, %v67
    %v70 = vld [vmem:[#allocation2] sm:$0xff]
    %v71 = vld [vmem:[#allocation2 + $0x8] sm:$0xff]
    %vm72 = vcmask 130048
    %v73 = vsel %vm72, %v68, -inf
    %74 = vmax.xlane.f32.xlu0 %v73
    %v75 = vpop.xlane.xlu0 %74
    %v76 = vsel %vm72, %v69, -inf
    %77 = vmax.xlane.f32.xlu0 %v76
    %v78 = vpop.xlane.xlu0 %77
    %v79 = vmax.f32 %v70, %v75
    %v80 = vmax.f32 %v71, %v78
    %v81 = vsub.f32 %v70, %v79
    %v82 = vsub.f32 %v71, %v80
    %v83 = vmul.f32 %v81, 1.442695
    %v84 = vpow.pop %v83
    %v85 = vmul.f32 %v82, 1.442695
    %v86 = vpow.pop %v85
    %88 = vset.pattern.permute.xlu0 0
    %89 = vperm.xlu0 %88, %v79
    %v90 = vpop.permute.xlu0 %89
    %93 = vset.pattern.permute.xlu0 0
    %94 = vperm.xlu0 %93, %v80
    %v95 = vpop.permute.xlu0 %94
    %v97 = vsub.f32 %v68, %v90
    %v98 = vsub.f32 %v69, %v95
    %v99 = vmul.f32 %v97, 1.442695
    %v100 = vpow.pop %v99
    %v101 = vmul.f32 %v98, 1.442695
    %v102 = vpow.pop %v101
    %v103 = vld [vmem:[#allocation3] sm:$0xff]
    %v104 = vld [vmem:[#allocation3 + $0x8] sm:$0xff]
    %v105 = vmul.f32 %v84, %v103
    %v106 = vmul.f32 %v86, %v104
    %v107 = vsel %vm72, %v100, 0.0
    %108 = vadd.xlane.f32.xlu0 %v107
    %v109 = vpop.xlane.xlu0 %108
    %v110 = vsel %vm72, %v102, 0.0
    %111 = vadd.xlane.f32.xlu0 %v110
    %v112 = vpop.xlane.xlu0 %111
    %v113 = vadd.f32 %v105, %v109
    %v114 = vadd.f32 %v106, %v112
    %vm115 = vcmask 7168
    %116 = vst.msk [vmem:[#allocation3] sm:$0xff] %vm115, %v113
    %117 = vst.msk [vmem:[#allocation3 + $0x8] sm:$0xff] %vm115, %v114
    %v118 = vld [vmem:[#allocation4] sm:$0xff]
    %v119 = vld [vmem:[#allocation4 + $0x8] sm:$0xff]
    %121 = vset.pattern.permute.xlu0 0
    %122 = vperm.xlu0 %121, %v84
    %v123 = vpop.permute.xlu0 %122
    %126 = vset.pattern.permute.xlu0 0
    %127 = vperm.xlu0 %126, %v86
    %v128 = vpop.permute.xlu0 %127
    %v130 = vmul.f32 %v123, %v118
    %v131 = vmul.f32 %v128, %v119
    %v132 = vpack.c.bf16 %v102, %v100
    %v133 = vld [vmem:[%s1] sm:$0xf]
    %v134 = vld [vmem:[%s1 + $0x4] sm:$0xf]
    %v137 = vunpack.c.l.b16 %v133
    %v138 = vunpack.c.l.b16 %v134
    %v139 = vpack.c.b16 %v138, %v137
    %v142 = vsel %vm72, %v132, 0
    %144 = vmatpush.bf16.msra.mxu0 0
    %145 = vmatpush.bf16.msra.mxu0 0
    %146 = vmatpush.bf16.msra.mxu0 0
    %147 = vmatpush.bf16.msra.mxu0 0
    %148 = vmatpush.bf16.msra.mxu0 0
    %149 = vmatpush.bf16.msra.mxu0 0
    %150 = vmatpush.bf16.msra.mxu0 0
    %151 = vmatpush.bf16.msra.mxu0 %v139
    %152 = vmatmul.bf16.gmra.mxu0 %v142
    %v153 = vpop.f32.mrf.mxu0
    %v154 = vadd.f32 0.0, %v153
    %v155 = vpop.f32.mrf.mxu0
    %v156 = vadd.f32 0.0, %v155
    %157 = vdwg.mxu0
    %v158 = vadd.f32 %v130, %v154
    %v159 = vadd.f32 %v131, %v156
    %vm160 = vcmask 64512
    %161 = vst.msk [vmem:[#allocation4] sm:$0xff] %vm160, %v158
    %162 = vst.msk [vmem:[#allocation4 + $0x8] sm:$0xff] %vm160, %v159
    %163 = vst.msk [vmem:[#allocation2] sm:$0xff] %vm115, %v79
    %164 = vst.msk [vmem:[#allocation2 + $0x8] sm:$0xff] %vm115, %v80
  $region25: #{model_gat_forward.24} parent=0 // pred_fallthru
    _
  // Predicated region
  $region26: #{model_gat_forward.24} parent=0 // pred_check
    %p165 = pneg %p20
  $region27: #{model_gat_forward.24} parent=0 // pred_check_branch
    %167 = sbr.rel (%p165) target = $region29
  $region28: #{model_gat_forward.24} parent=0 // pred_region
    %v168 = vld [vmem:[#allocation3] sm:$0xff]
    %v169 = vld [vmem:[#allocation3 + $0x8] sm:$0xff]
    %vm170 = vcmp.gt.f32.partialorder %v168, 0.0
    %vm171 = vcmp.gt.f32.partialorder %v169, 0.0
    %v172 = vsel %vm170, %v168, 1.0
    %v173 = vsel %vm171, %v169, 1.0
    %v174 = vld [vmem:[#allocation4] sm:$0xff]
    %v175 = vld [vmem:[#allocation4 + $0x8] sm:$0xff]
    %177 = vset.pattern.permute.xlu0 0
    %178 = vperm.xlu0 %177, %v172
    %v179 = vpop.permute.xlu0 %178
    %182 = vset.pattern.permute.xlu0 0
    %183 = vperm.xlu0 %182, %v173
    %v184 = vpop.permute.xlu0 %183
    %v186 = vrcp.pop %v179
    %v187 = vmul.f32 %v179, %v186
    %v188 = vsub.f32 1.0, %v187
    %v189 = vmul.f32 %v186, %v188
    %v190 = vadd.f32 %v186, %v189
    %vm191 = vweird.f32 %v179
    %vm192 = vweird.f32 %v186
    %vm193 = vmor %vm191, %vm192
    %v194 = vsel %vm193, %v186, %v190
    %v195 = vand.u32 2147483647, %v179
    %vm196 = vcmp.eq.f32.partialorder %v195, 8.507059e+37
    %v197 = vand.u32 %v179, 2147483648
    %v198 = vor.u32 1.1754944e-38, %v197
    %v199 = vsel %vm196, %v198, %v194
    %v200 = vmul.f32 %v174, %v199
    %v201 = vrcp.pop %v184
    %v202 = vmul.f32 %v184, %v201
    %v203 = vsub.f32 1.0, %v202
    %v204 = vmul.f32 %v201, %v203
    %v205 = vadd.f32 %v201, %v204
    %vm206 = vweird.f32 %v184
    %vm207 = vweird.f32 %v201
    %vm208 = vmor %vm206, %vm207
    %v209 = vsel %vm208, %v201, %v205
    %v210 = vand.u32 2147483647, %v184
    %vm211 = vcmp.eq.f32.partialorder %v210, 8.507059e+37
    %v212 = vand.u32 %v184, 2147483648
    %v213 = vor.u32 1.1754944e-38, %v212
    %v214 = vsel %vm211, %v213, %v209
    %v215 = vmul.f32 %v175, %v214
    %vm216 = vcmask 64512
    %v217 = vsel %vm216, %v200, -inf
    %218 = vmax.xlane.f32.xlu0 %v217
    %v219 = vpop.xlane.xlu0 %218
    %v220 = vsel %vm216, %v215, -inf
    %221 = vmax.xlane.f32.xlu0 %v220
    %v222 = vpop.xlane.xlu0 %221
    %v223 = vsub.f32 %v200, %v219
    %v224 = vsub.f32 %v215, %v222
    %v225 = vmul.f32 %v223, 1.442695
    %v226 = vpow.pop %v225
    %v227 = vmul.f32 %v224, 1.442695
    %v228 = vpow.pop %v227
    %v229 = vsel %vm216, %v226, 0.0
    %230 = vadd.xlane.f32.xlu0 %v229
    %v231 = vpop.xlane.xlu0 %230
    %v232 = vsel %vm216, %v228, 0.0
    %233 = vadd.xlane.f32.xlu0 %v232
    %v234 = vpop.xlane.xlu0 %233
    %v235 = vrcp.pop %v231
    %v236 = vmul.f32 %v231, %v235
    %v237 = vsub.f32 1.0, %v236
    %v238 = vmul.f32 %v235, %v237
    %v239 = vadd.f32 %v235, %v238
    %vm240 = vweird.f32 %v231
    %vm241 = vweird.f32 %v235
    %vm242 = vmor %vm240, %vm241
    %v243 = vsel %vm242, %v235, %v239
    %v244 = vand.u32 2147483647, %v231
    %vm245 = vcmp.eq.f32.partialorder %v244, 8.507059e+37
    %v246 = vand.u32 %v231, 2147483648
    %v247 = vor.u32 1.1754944e-38, %v246
    %v248 = vsel %vm245, %v247, %v243
    %v249 = vmul.f32 %v226, %v248
    %v250 = vrcp.pop %v234
    %v251 = vmul.f32 %v234, %v250
    %v252 = vsub.f32 1.0, %v251
    %v253 = vmul.f32 %v250, %v252
    %v254 = vadd.f32 %v250, %v253
    %vm255 = vweird.f32 %v234
    %vm256 = vweird.f32 %v250
    %vm257 = vmor %vm255, %vm256
    %v258 = vsel %vm257, %v250, %v254
    %v259 = vand.u32 2147483647, %v234
    %vm260 = vcmp.eq.f32.partialorder %v259, 8.507059e+37
    %v261 = vand.u32 %v234, 2147483648
    %v262 = vor.u32 1.1754944e-38, %v261
    %v263 = vsel %vm260, %v262, %v258
    %v264 = vmul.f32 %v228, %v263
    %265 = vst.msk [vmem:[%s5] sm:$0xff] %vm216, %v249
    %266 = vst.msk [vmem:[%s5 + $0x8] sm:$0xff] %vm216, %v264
  $region29: #{model_gat_forward.24} parent=0 // pred_fallthru
    _
  // Predicated region
  $region30: #{model_gat_forward.24} parent=0 // pred_check
    _
  $region31: #{model_gat_forward.24} parent=0 // pred_check_branch
    %268 = sbr.rel (0) target = $region33
  $region32: #{model_gat_forward.24} parent=0 // pred_region
    _
  $region33: #{model_gat_forward.24} parent=0 // pred_fallthru
    _
  // Predicated region
  $region34: #{model_gat_forward.24} parent=0 // pred_check
    _
  $region35: #{model_gat_forward.24} parent=0 // pred_check_branch
    %270 = sbr.rel (0) target = $region37
  $region36: #{model_gat_forward.24} parent=0 // pred_region
    _
  $region37: #{model_gat_forward.24} parent=0 // pred_fallthru
    _

</llo_original>
